<compile_context>
chip_gen: v6e
topology: v6e:2x2x1
jax: 0.10.0
libtpu: 0.0.40
codegen_flags: <defaults>
</compile_context>

<pallas_src>
import math
import functools

import jax
import jax.numpy as jnp
from jax.experimental import pallas as pl
from jax.experimental.pallas import tpu as pltpu

# ---------------- configuration (small shapes consistent with the module) -----
D_IN = 4
D_OUT = 5
BATCH = 2
LENGTH = 300          # conv strides 5,3,2,1 -> T = 10
D_MODEL = 64
NHEAD = 4
NUM_LAYERS = 2
DIM_FF = 128
MAX_LEN = 32
LN_EPS = 1e-5
BN_EPS = 1e-5
NEG_INF = -1e30       # TPU-friendly stand-in for -inf in additive masks

CONV_CHANNELS = (D_IN, 16, 32, 64, D_MODEL)
CONV_STRIDES = (5, 3, 2, 1)


def _seq_lens(length, strides):
    lens = [length]
    for s in strides:
        lens.append((lens[-1] + 2 - 3) // s + 1)
    return tuple(lens)


SEQ_LENS = _seq_lens(LENGTH, CONV_STRIDES)      # (300, 60, 20, 10, 10)
assert SEQ_LENS == (300, 60, 20, 10, 10)

L0 = SEQ_LENS[0]                                 # 300
T_OUT = SEQ_LENS[4]                              # 10
NGROUP = SEQ_LENS[1] // T_OUT                    # 6  (= stride2 * stride3)
BT = BATCH * T_OUT                               # 20 rows (row = b*T + t)
DH = D_MODEL // NHEAD                            # 16
HBT = NHEAD * BT                                 # 80 stacked head*batch*time rows
OUT_PAD = 128                                    # lane-padded decoder output width


# ---------------- small in-kernel helpers --------------------------------------
def _mm(a, b):
    """MXU matmul with bf16 operands and f32 accumulation."""
    return jnp.dot(a.astype(jnp.bfloat16), b.astype(jnp.bfloat16),
                   preferred_element_type=jnp.float32)


def _layer_norm(v, g, b):
    mu = jnp.mean(v, axis=-1, keepdims=True)
    vc = v - mu
    var = jnp.mean(vc * vc, axis=-1, keepdims=True)   # biased variance (PyTorch LN)
    return vc * jax.lax.rsqrt(var + LN_EPS) * g + b


# ---------------- the single fused forward kernel ------------------------------
def _fused_forward_kernel(
        x1_ref, w1_ref, b1_ref, w2_ref, b2_ref, w3_ref, b3_ref, w4_ref, b4_ref,
        pe_ref, amask_ref,
        in_wT_ref, in_b_ref, out_wT_ref, out_b_ref,
        ln1_g_ref, ln1_b_ref, ff1_wT_ref, ff1_b_ref, ff2_wT_ref, ff2_b_ref,
        ln2_g_ref, ln2_b_ref,
        fln_g_ref, fln_b_ref, dw1_ref, db1_ref, dw2_ref, db2_ref,
        o_ref):
    f32 = jnp.float32

    # per-batch-boundary masks for the row-shift helpers (the conv zero padding)
    row = jax.lax.broadcasted_iota(jnp.int32, (BT, 1), 0)
    first = row == 0
    last = row == T_OUT - 1
    for b in range(1, BATCH):
        first = jnp.logical_or(first, row == b * T_OUT)
        last = jnp.logical_or(last, row == b * T_OUT + T_OUT - 1)
    m_dn = jnp.where(first, 0.0, 1.0).astype(f32)
    m_up = jnp.where(last, 0.0, 1.0).astype(f32)

    def shift_down(v):          # v[i] -> v[i-1], zero at each batch's first row
        s = jnp.concatenate([jnp.zeros((1, v.shape[1]), v.dtype), v[:-1, :]],
                            axis=0)
        return s * m_dn

    def shift_up(v):            # v[i] -> v[i+1], zero at each batch's last row
        s = jnp.concatenate([v[1:, :], jnp.zeros((1, v.shape[1]), v.dtype)],
                            axis=0)
        return s * m_up

    # ---------------- conv stack (BatchNorm folded, eval mode) ----------------
    # stage 1 (stride 5): one [6*BT, 5*Cin] @ [5*Cin, 16] matmul; rows were
    # pre-grouped in the wrapper by (output_row mod 6) so that the stride-3 and
    # stride-2 stages below become pure lane concats (no strided selection).
    y1 = jnp.maximum(_mm(x1_ref[...], w1_ref[...]) + b1_ref[...], 0.0)  # [6*BT,16]
    g = [y1[k * BT:(k + 1) * BT, :] for k in range(NGROUP)]             # [BT,16] each

    # stage 2 (stride 3): even / odd output rows, taps packed along lanes
    x2e = jnp.concatenate([shift_down(g[5]), g[0], g[1]], axis=-1)      # [BT, 48]
    x2o = jnp.concatenate([g[2], g[3], g[4]], axis=-1)
    y2e = jnp.maximum(_mm(x2e, w2_ref[...]) + b2_ref[...], 0.0)         # [BT, 32]
    y2o = jnp.maximum(_mm(x2o, w2_ref[...]) + b2_ref[...], 0.0)

    # stage 3 (stride 2)
    x3 = jnp.concatenate([shift_down(y2o), y2e, y2o], axis=-1)          # [BT, 96]
    y3 = jnp.maximum(_mm(x3, w3_ref[...]) + b3_ref[...], 0.0)           # [BT, 64]

    # stage 4 (stride 1) + positional encoding (dropouts identity in eval mode)
    x4 = jnp.concatenate([shift_down(y3), y3, shift_up(y3)], axis=-1)   # [BT, 192]
    x = jnp.maximum(_mm(x4, w4_ref[...]) + b4_ref[...], 0.0) + pe_ref[...]

    # ---------------- transformer encoder (post-norm layers) ------------------
    amask = amask_ref[...]                                   # [H*BT, H*BT] additive
    for l in range(NUM_LAYERS):
        qkv = _mm(x, in_wT_ref[l]) + in_b_ref[l]             # [BT, 3D]; q pre-scaled
        qs = jnp.concatenate(
            [qkv[:, h * DH:(h + 1) * DH] for h in range(NHEAD)], axis=0)
        ks = jnp.concatenate(
            [qkv[:, D_MODEL + h * DH:D_MODEL + (h + 1) * DH]
             for h in range(NHEAD)], axis=0)
        vs = jnp.concatenate(
            [qkv[:, 2 * D_MODEL + h * DH:2 * D_MODEL + (h + 1) * DH]
             for h in range(NHEAD)], axis=0)                 # [H*BT, DH]

        # one score matmul + one block-diagonal causal softmax for all B*H heads
        s = jax.lax.dot_general(
            qs.astype(jnp.bfloat16), ks.astype(jnp.bfloat16),
            (((1,), (1,)), ((), ())), preferred_element_type=f32) + amask
        p = jnp.exp(s - jnp.max(s, axis=-1, keepdims=True))
        p = p * pl.reciprocal(jnp.sum(p, axis=-1, keepdims=True), approx=True)
        o = _mm(p, vs)                                       # [H*BT, DH]
        o = jnp.concatenate([o[h * BT:(h + 1) * BT, :] for h in range(NHEAD)],
                            axis=-1)                         # [BT, D] head-major
        attn = _mm(o, out_wT_ref[l]) + out_b_ref[l]

        x = _layer_norm(x + attn, ln1_g_ref[l], ln1_b_ref[l])
        h1 = jnp.maximum(_mm(x, ff1_wT_ref[l]) + ff1_b_ref[l], 0.0)
        x = _layer_norm(x + _mm(h1, ff2_wT_ref[l]) + ff2_b_ref[l],
                        ln2_g_ref[l], ln2_b_ref[l])

    # ---------------- decoder head: final LN + MLP + log_softmax --------------
    xn = _layer_norm(x, fln_g_ref[...], fln_b_ref[...])
    d1 = jnp.maximum(_mm(xn, dw1_ref[...]) + db1_ref[...], 0.0)
    d2 = _mm(d1, dw2_ref[...]) + db2_ref[...]                # [BT, 128] lane-padded
    lane = jax.lax.broadcasted_iota(jnp.int32, (1, OUT_PAD), 1)
    d2 = jnp.where(lane < D_OUT, d2, NEG_INF)                # mask the padded lanes
    z = d2 - jnp.max(d2, axis=-1, keepdims=True)
    lse = jnp.log(jnp.sum(jnp.exp(z), axis=-1, keepdims=True))
    o_ref[...] = z - lse


# ---------------- single-step pallas_call helper --------------------------------
def _zero_idx(i, nd):
    return (0,) * nd


def _call_fused(kernel, inputs, out_shape):
    """One grid step; every input/output is a full-array VMEM block."""
    in_specs = [pl.BlockSpec(a.shape, functools.partial(_zero_idx, nd=a.ndim))
                for a in inputs]
    return pl.pallas_call(
        kernel,
        out_shape=jax.ShapeDtypeStruct(out_shape, jnp.float32),
        grid=(1,),
        in_specs=in_specs,
        out_specs=pl.BlockSpec(out_shape,
                               functools.partial(_zero_idx, nd=len(out_shape))),
        compiler_params=pltpu.CompilerParams(dimension_semantics=("arbitrary",)),
    )(*inputs)


# ---------------- one-time parameter preparation --------------------------------
def make_positional_encoding(max_len, d_model):
    position = jnp.arange(max_len, dtype=jnp.float32)[:, None]
    div_term = jnp.exp(jnp.arange(0, d_model, 2, dtype=jnp.float32)
                       * (-math.log(10000.0) / d_model))
    ang = position * div_term
    pe = jnp.stack([jnp.sin(ang), jnp.cos(ang)], axis=-1).reshape(max_len, d_model)
    return pe                                                  # matches 0::2 / 1::2


def _stacked_causal_mask():
    # rows/cols indexed (head*BATCH + batch)*T + t ; a query may attend to a key
    # iff same (head, batch) block and key position <= query position.
    idx = jnp.arange(HBT)
    blk = idx // T_OUT
    t = idx % T_OUT
    ok = (blk[:, None] == blk[None, :]) & (t[None, :] <= t[:, None])
    return jnp.where(ok, 0.0, NEG_INF).astype(jnp.float32)


def prepare_params(params):
    """Fold BatchNorm into conv weights, flatten conv taps for im2col matmuls,
    transpose/stack/cast transformer weights, fold the 1/sqrt(Dh) q-scale, pad
    the decoder output to 128 lanes and precompute the head-stacked mask + PE.
    Run ONCE; the per-call wrapper does no parameter work."""
    f32, bf16 = jnp.float32, jnp.bfloat16

    conv_w, conv_b = [], []
    for i, cp in enumerate(params["convs"]):
        scale = cp["gamma"] / jnp.sqrt(cp["rvar"] + BN_EPS)
        w = cp["w"] * scale[:, None, None]                      # [Cout, Cin, 3]
        bias = cp["b"] * scale + cp["beta"] - cp["rmean"] * scale
        cout, cin, _ = w.shape
        wt = jnp.transpose(w, (2, 1, 0)).reshape(3 * cin, cout)  # row = tap*Cin + c
        if i == 0:
            # stride-5 windows carry 5 input rows; window taps 3,4 never hit
            wt = jnp.concatenate([wt, jnp.zeros((2 * cin, cout), wt.dtype)], axis=0)
        conv_w.append(wt.astype(bf16))
        conv_b.append(bias.reshape(1, -1).astype(f32))

    scale_q = 1.0 / math.sqrt(DH)

    def stk(fn, dtype):
        return jnp.stack([fn(lp) for lp in params["layers"]], axis=0).astype(dtype)

    return dict(
        conv_w=conv_w,
        conv_b=conv_b,
        pe=jnp.tile(params["pe"][:T_OUT], (BATCH, 1)).astype(f32),
        attn_mask=_stacked_causal_mask(),
        in_wT=stk(lambda lp: lp["in_w"].at[:D_MODEL, :].multiply(scale_q).T, bf16),
        in_b=stk(lambda lp: lp["in_b"].at[:D_MODEL].multiply(scale_q)
                 .reshape(1, -1), f32),
        out_wT=stk(lambda lp: lp["out_w"].T, bf16),
        out_b=stk(lambda lp: lp["out_b"].reshape(1, -1), f32),
        ln1_g=stk(lambda lp: lp["ln1_g"].reshape(1, -1), f32),
        ln1_b=stk(lambda lp: lp["ln1_b"].reshape(1, -1), f32),
        ff1_wT=stk(lambda lp: lp["ff1_w"].T, bf16),
        ff1_b=stk(lambda lp: lp["ff1_b"].reshape(1, -1), f32),
        ff2_wT=stk(lambda lp: lp["ff2_w"].T, bf16),
        ff2_b=stk(lambda lp: lp["ff2_b"].reshape(1, -1), f32),
        ln2_g=stk(lambda lp: lp["ln2_g"].reshape(1, -1), f32),
        ln2_b=stk(lambda lp: lp["ln2_b"].reshape(1, -1), f32),
        fln_g=params["final_ln_g"].reshape(1, -1).astype(f32),
        fln_b=params["final_ln_b"].reshape(1, -1).astype(f32),
        dw1T=params["dec_w1"].T.astype(bf16),
        db1=params["dec_b1"].reshape(1, -1).astype(f32),
        dw2T=jnp.pad(params["dec_w2"].T, ((0, 0), (0, OUT_PAD - D_OUT))).astype(bf16),
        db2=jnp.pad(params["dec_b2"], (0, OUT_PAD - D_OUT)).reshape(1, -1).astype(f32),
    )


# ---------------- forward pass ---------------------------------------------------
def transformer_model_forward(src, prep):
    """src: [B, d_in, L] (NCW, like the PyTorch module) -> [B, T, d_out] log-probs."""
    assert src.shape == (BATCH, D_IN, LENGTH), src.shape
    B = BATCH

    # Per-call input prep (a handful of tiny XLA ops): NCW->NWC, left zero pad
    # (conv padding=1), contiguous 5-sample windows (stride 5 >= kernel 3), and
    # grouping of the 60 stage-1 output rows by (row mod 6) so the kernel never
    # needs strided row selection.
    x = jnp.transpose(src, (0, 2, 1)).astype(jnp.float32)              # [B, 300, 4]
    xp = jnp.concatenate(
        [jnp.zeros((B, 1, D_IN), jnp.float32), x[:, :L0 - 1, :]], axis=1)
    win = xp.reshape(B, SEQ_LENS[1], CONV_STRIDES[0] * D_IN)           # [B, 60, 20]
    win = win.reshape(B, T_OUT, NGROUP, CONV_STRIDES[0] * D_IN)        # r = 6u + g
    x1 = jnp.transpose(win, (2, 0, 1, 3)).reshape(
        NGROUP * B * T_OUT, CONV_STRIDES[0] * D_IN).astype(jnp.bfloat16)

    inputs = [
        x1,
        prep["conv_w"][0], prep["conv_b"][0], prep["conv_w"][1], prep["conv_b"][1],
        prep["conv_w"][2], prep["conv_b"][2], prep["conv_w"][3], prep["conv_b"][3],
        prep["pe"], prep["attn_mask"],
        prep["in_wT"], prep["in_b"], prep["out_wT"], prep["out_b"],
        prep["ln1_g"], prep["ln1_b"], prep["ff1_wT"], prep["ff1_b"],
        prep["ff2_wT"], prep["ff2_b"], prep["ln2_g"], prep["ln2_b"],
        prep["fln_g"], prep["fln_b"], prep["dw1T"], prep["db1"],
        prep["dw2T"], prep["db2"],
    ]
    out = _call_fused(_fused_forward_kernel, inputs, (B * T_OUT, OUT_PAD))
    return out[:, :D_OUT].reshape(B, T_OUT, D_OUT)                     # [B, T, d_out]


# ---------------- deterministic parameter initialization -------------------------
def init_params(key):
    keys = iter(jax.random.split(key, 256))

    def nrm(shape, scale=0.05):
        return scale * jax.random.normal(next(keys), shape, dtype=jnp.float32)

    convs = []
    for cin, cout in zip(CONV_CHANNELS[:-1], CONV_CHANNELS[1:]):
        convs.append(dict(
            w=nrm((cout, cin, 3), 0.1),
            b=nrm((cout,), 0.1),
            gamma=1.0 + nrm((cout,), 0.05),
            beta=nrm((cout,), 0.05),
            rmean=nrm((cout,), 0.05),
            rvar=1.0 + 0.1 * jax.random.uniform(next(keys), (cout,), dtype=jnp.float32),
        ))

    layers = []
    for _ in range(NUM_LAYERS):
        layers.append(dict(
            in_w=nrm((3 * D_MODEL, D_MODEL)),
            in_b=nrm((3 * D_MODEL,)),
            out_w=nrm((D_MODEL, D_MODEL)),
            out_b=nrm((D_MODEL,)),
            ln1_g=1.0 + nrm((D_MODEL,), 0.02),
            ln1_b=nrm((D_MODEL,), 0.02),
            ff1_w=nrm((DIM_FF, D_MODEL)),
            ff1_b=nrm((DIM_FF,)),
            ff2_w=nrm((D_MODEL, DIM_FF)),
            ff2_b=nrm((D_MODEL,)),
            ln2_g=1.0 + nrm((D_MODEL,), 0.02),
            ln2_b=nrm((D_MODEL,), 0.02),
        ))

    return dict(
        convs=convs,
        layers=layers,
        pe=make_positional_encoding(MAX_LEN, D_MODEL),
        final_ln_g=1.0 + nrm((D_MODEL,), 0.02),
        final_ln_b=nrm((D_MODEL,), 0.02),
        dec_w1=nrm((D_MODEL, D_MODEL)),
        dec_b1=nrm((D_MODEL,)),
        dec_w2=nrm((D_OUT, D_MODEL)),
        dec_b2=nrm((D_OUT,)),
    )


# TODO(synk): training-mode Dropout / batch-statistics BatchNorm are not modeled
# (eval-mode semantics only), matching deterministic inference of the module.

if __name__ == "__main__":
    key = jax.random.PRNGKey(0)
    pkey, xkey = jax.random.split(key)
    params = init_params(pkey)
    prep = prepare_params(params)          # one-time parameter transform
    src = jax.random.normal(xkey, (BATCH, D_IN, LENGTH), dtype=jnp.float32)

    fwd = jax.jit(transformer_model_forward)
    out = jax.block_until_ready(fwd(src, prep))

    expected_T = 10   # 300 -> 60 -> 20 -> 10 -> 10 through strides 5,3,2,1
    assert out.shape == (BATCH, expected_T, D_OUT), out.shape
    assert bool(jnp.all(jnp.isfinite(out)))
    # rows of log_softmax must exponentiate to probability distributions
    sums = jnp.sum(jnp.exp(out), axis=-1)
    assert bool(jnp.all(jnp.abs(sums - 1.0) < 1e-3))
    print("KERNEL_OK")
</pallas_src>

<mosaic_0001>
module attributes {stable_mosaic.version = 11 : i64} {
  func.func @_fused_forward_kernel(%arg0: i32, %arg1: memref<120x20xbf16, #tpu.memory_space<vmem>>, %arg2: memref<20x16xbf16, #tpu.memory_space<vmem>>, %arg3: memref<1x16xf32, #tpu.memory_space<vmem>>, %arg4: memref<48x32xbf16, #tpu.memory_space<vmem>>, %arg5: memref<1x32xf32, #tpu.memory_space<vmem>>, %arg6: memref<96x64xbf16, #tpu.memory_space<vmem>>, %arg7: memref<1x64xf32, #tpu.memory_space<vmem>>, %arg8: memref<192x64xbf16, #tpu.memory_space<vmem>>, %arg9: memref<1x64xf32, #tpu.memory_space<vmem>>, %arg10: memref<20x64xf32, #tpu.memory_space<vmem>>, %arg11: memref<80x80xf32, #tpu.memory_space<vmem>>, %arg12: memref<2x64x192xbf16, #tpu.memory_space<vmem>>, %arg13: memref<2x1x192xf32, #tpu.memory_space<vmem>>, %arg14: memref<2x64x64xbf16, #tpu.memory_space<vmem>>, %arg15: memref<2x1x64xf32, #tpu.memory_space<vmem>>, %arg16: memref<2x1x64xf32, #tpu.memory_space<vmem>>, %arg17: memref<2x1x64xf32, #tpu.memory_space<vmem>>, %arg18: memref<2x64x128xbf16, #tpu.memory_space<vmem>>, %arg19: memref<2x1x128xf32, #tpu.memory_space<vmem>>, %arg20: memref<2x128x64xbf16, #tpu.memory_space<vmem>>, %arg21: memref<2x1x64xf32, #tpu.memory_space<vmem>>, %arg22: memref<2x1x64xf32, #tpu.memory_space<vmem>>, %arg23: memref<2x1x64xf32, #tpu.memory_space<vmem>>, %arg24: memref<1x64xf32, #tpu.memory_space<vmem>>, %arg25: memref<1x64xf32, #tpu.memory_space<vmem>>, %arg26: memref<64x64xbf16, #tpu.memory_space<vmem>>, %arg27: memref<1x64xf32, #tpu.memory_space<vmem>>, %arg28: memref<64x128xbf16, #tpu.memory_space<vmem>>, %arg29: memref<1x128xf32, #tpu.memory_space<vmem>>, %arg30: memref<20x128xf32, #tpu.memory_space<vmem>>) attributes {dimension_semantics = [#tpu.dimension_semantics<arbitrary>], iteration_bounds = array<i64: 1>, scalar_prefetch = 0 : i64, scratch_operands = 0 : i64, tpu.core_type = #tpu.core_type<tc>, window_params = [{pipeline_mode = #tpu.pipeline_mode<synchronous>, transform_indices = @transform_0, window_bounds = array<i64: 120, 20>}, {pipeline_mode = #tpu.pipeline_mode<synchronous>, transform_indices = @transform_1, window_bounds = array<i64: 20, 16>}, {pipeline_mode = #tpu.pipeline_mode<synchronous>, transform_indices = @transform_2, window_bounds = array<i64: 1, 16>}, {pipeline_mode = #tpu.pipeline_mode<synchronous>, transform_indices = @transform_3, window_bounds = array<i64: 48, 32>}, {pipeline_mode = #tpu.pipeline_mode<synchronous>, transform_indices = @transform_4, window_bounds = array<i64: 1, 32>}, {pipeline_mode = #tpu.pipeline_mode<synchronous>, transform_indices = @transform_5, window_bounds = array<i64: 96, 64>}, {pipeline_mode = #tpu.pipeline_mode<synchronous>, transform_indices = @transform_6, window_bounds = array<i64: 1, 64>}, {pipeline_mode = #tpu.pipeline_mode<synchronous>, transform_indices = @transform_7, window_bounds = array<i64: 192, 64>}, {pipeline_mode = #tpu.pipeline_mode<synchronous>, transform_indices = @transform_8, window_bounds = array<i64: 1, 64>}, {pipeline_mode = #tpu.pipeline_mode<synchronous>, transform_indices = @transform_9, window_bounds = array<i64: 20, 64>}, {pipeline_mode = #tpu.pipeline_mode<synchronous>, transform_indices = @transform_10, window_bounds = array<i64: 80, 80>}, {pipeline_mode = #tpu.pipeline_mode<synchronous>, transform_indices = @transform_11, window_bounds = array<i64: 2, 64, 192>}, {pipeline_mode = #tpu.pipeline_mode<synchronous>, transform_indices = @transform_12, window_bounds = array<i64: 2, 1, 192>}, {pipeline_mode = #tpu.pipeline_mode<synchronous>, transform_indices = @transform_13, window_bounds = array<i64: 2, 64, 64>}, {pipeline_mode = #tpu.pipeline_mode<synchronous>, transform_indices = @transform_14, window_bounds = array<i64: 2, 1, 64>}, {pipeline_mode = #tpu.pipeline_mode<synchronous>, transform_indices = @transform_15, window_bounds = array<i64: 2, 1, 64>}, {pipeline_mode = #tpu.pipeline_mode<synchronous>, transform_indices = @transform_16, window_bounds = array<i64: 2, 1, 64>}, {pipeline_mode = #tpu.pipeline_mode<synchronous>, transform_indices = @transform_17, window_bounds = array<i64: 2, 64, 128>}, {pipeline_mode = #tpu.pipeline_mode<synchronous>, transform_indices = @transform_18, window_bounds = array<i64: 2, 1, 128>}, {pipeline_mode = #tpu.pipeline_mode<synchronous>, transform_indices = @transform_19, window_bounds = array<i64: 2, 128, 64>}, {pipeline_mode = #tpu.pipeline_mode<synchronous>, transform_indices = @transform_20, window_bounds = array<i64: 2, 1, 64>}, {pipeline_mode = #tpu.pipeline_mode<synchronous>, transform_indices = @transform_21, window_bounds = array<i64: 2, 1, 64>}, {pipeline_mode = #tpu.pipeline_mode<synchronous>, transform_indices = @transform_22, window_bounds = array<i64: 2, 1, 64>}, {pipeline_mode = #tpu.pipeline_mode<synchronous>, transform_indices = @transform_23, window_bounds = array<i64: 1, 64>}, {pipeline_mode = #tpu.pipeline_mode<synchronous>, transform_indices = @transform_24, window_bounds = array<i64: 1, 64>}, {pipeline_mode = #tpu.pipeline_mode<synchronous>, transform_indices = @transform_25, window_bounds = array<i64: 64, 64>}, {pipeline_mode = #tpu.pipeline_mode<synchronous>, transform_indices = @transform_26, window_bounds = array<i64: 1, 64>}, {pipeline_mode = #tpu.pipeline_mode<synchronous>, transform_indices = @transform_27, window_bounds = array<i64: 64, 128>}, {pipeline_mode = #tpu.pipeline_mode<synchronous>, transform_indices = @transform_28, window_bounds = array<i64: 1, 128>}, {pipeline_mode = #tpu.pipeline_mode<synchronous>, transform_indices = @transform_29, window_bounds = array<i64: 20, 128>}]} {
    %0 = tpu.iota {dimensions = array<i32: 0>} : vector<20x1xi32>
    %c0_i32 = arith.constant 0 : i32
    %1 = vector.broadcast %c0_i32 : i32 to vector<20x1xi32>
    %2 = arith.cmpi eq, %0, %1 : vector<20x1xi32>
    %c9_i32 = arith.constant 9 : i32
    %3 = vector.broadcast %c9_i32 : i32 to vector<20x1xi32>
    %4 = arith.cmpi eq, %0, %3 : vector<20x1xi32>
    %c10_i32 = arith.constant 10 : i32
    %5 = vector.broadcast %c10_i32 : i32 to vector<20x1xi32>
    %6 = arith.cmpi eq, %0, %5 : vector<20x1xi32>
    %7 = arith.ori %2, %6 : vector<20x1xi1>
    %c19_i32 = arith.constant 19 : i32
    %8 = vector.broadcast %c19_i32 : i32 to vector<20x1xi32>
    %9 = arith.cmpi eq, %0, %8 : vector<20x1xi32>
    %10 = arith.ori %4, %9 : vector<20x1xi1>
    %cst = arith.constant 0.000000e+00 : f32
    %cst_0 = arith.constant 1.000000e+00 : f32
    %11 = vector.broadcast %cst : f32 to vector<20x1xf32>
    %12 = vector.broadcast %cst_0 : f32 to vector<20x1xf32>
    %13 = arith.select %7, %11, %12 : vector<20x1xi1>, vector<20x1xf32>
    %cst_1 = arith.constant 0.000000e+00 : f32
    %cst_2 = arith.constant 1.000000e+00 : f32
    %14 = vector.broadcast %cst_1 : f32 to vector<20x1xf32>
    %15 = vector.broadcast %cst_2 : f32 to vector<20x1xf32>
    %16 = arith.select %10, %14, %15 : vector<20x1xi1>, vector<20x1xf32>
    %c0 = arith.constant 0 : index
    %c0_3 = arith.constant 0 : index
    %17 = vector.load %arg1[%c0, %c0_3] : memref<120x20xbf16, #tpu.memory_space<vmem>>, vector<120x20xbf16>
    %c0_4 = arith.constant 0 : index
    %c0_5 = arith.constant 0 : index
    %18 = vector.load %arg2[%c0_4, %c0_5] : memref<20x16xbf16, #tpu.memory_space<vmem>>, vector<20x16xbf16>
    %cst_6 = arith.constant dense<0.000000e+00> : vector<120x16xf32>
    %19 = tpu.matmul %17, %18, %cst_6 {dimension_numbers = #tpu.dot_dimension_numbers<[1], [0], [0], [1], [0, 0, 1, 1], [], []>} : vector<120x20xbf16>, vector<20x16xbf16>, vector<120x16xf32> -> vector<120x16xf32>
    %c0_7 = arith.constant 0 : index
    %c0_8 = arith.constant 0 : index
    %20 = vector.load %arg3[%c0_7, %c0_8] : memref<1x16xf32, #tpu.memory_space<vmem>>, vector<1x16xf32>
    %21 = vector.broadcast %20 : vector<1x16xf32> to vector<120x16xf32>
    %22 = arith.addf %19, %21 : vector<120x16xf32>
    %cst_9 = arith.constant 0.000000e+00 : f32
    %23 = vector.broadcast %cst_9 : f32 to vector<120x16xf32>
    %24 = arith.maximumf %22, %23 : vector<120x16xf32>
    %25 = vector.extract_strided_slice %24 {offsets = [0, 0], sizes = [20, 16], strides = [1, 1]} : vector<120x16xf32> to vector<20x16xf32>
    %26 = vector.extract_strided_slice %24 {offsets = [20, 0], sizes = [20, 16], strides = [1, 1]} : vector<120x16xf32> to vector<20x16xf32>
    %27 = vector.extract_strided_slice %24 {offsets = [40, 0], sizes = [20, 16], strides = [1, 1]} : vector<120x16xf32> to vector<20x16xf32>
    %28 = vector.extract_strided_slice %24 {offsets = [60, 0], sizes = [20, 16], strides = [1, 1]} : vector<120x16xf32> to vector<20x16xf32>
    %29 = vector.extract_strided_slice %24 {offsets = [80, 0], sizes = [20, 16], strides = [1, 1]} : vector<120x16xf32> to vector<20x16xf32>
    %30 = vector.extract_strided_slice %24 {offsets = [100, 0], sizes = [20, 16], strides = [1, 1]} : vector<120x16xf32> to vector<20x16xf32>
    %cst_10 = arith.constant 0.000000e+00 : f32
    %31 = vector.broadcast %cst_10 : f32 to vector<1x16xf32>
    %32 = vector.extract_strided_slice %30 {offsets = [0, 0], sizes = [19, 16], strides = [1, 1]} : vector<20x16xf32> to vector<19x16xf32>
    %33 = tpu.concatenate %31, %32 in 0 : vector<1x16xf32>, vector<19x16xf32> -> vector<20x16xf32>
    %34 = vector.broadcast %13 : vector<20x1xf32> to vector<20x16xf32>
    %35 = arith.mulf %33, %34 : vector<20x16xf32>
    %36 = tpu.concatenate %35, %25, %26 in 1 : vector<20x16xf32>, vector<20x16xf32>, vector<20x16xf32> -> vector<20x48xf32>
    %37 = tpu.concatenate %27, %28, %29 in 1 : vector<20x16xf32>, vector<20x16xf32>, vector<20x16xf32> -> vector<20x48xf32>
    %c0_11 = arith.constant 0 : index
    %c0_12 = arith.constant 0 : index
    %38 = vector.load %arg4[%c0_11, %c0_12] : memref<48x32xbf16, #tpu.memory_space<vmem>>, vector<48x32xbf16>
    %39 = arith.truncf %36 : vector<20x48xf32> to vector<20x48xbf16>
    %cst_13 = arith.constant dense<0.000000e+00> : vector<20x32xf32>
    %40 = tpu.matmul %39, %38, %cst_13 {dimension_numbers = #tpu.dot_dimension_numbers<[1], [0], [0], [1], [0, 0, 1, 1], [], []>} : vector<20x48xbf16>, vector<48x32xbf16>, vector<20x32xf32> -> vector<20x32xf32>
    %c0_14 = arith.constant 0 : index
    %c0_15 = arith.constant 0 : index
    %41 = vector.load %arg5[%c0_14, %c0_15] : memref<1x32xf32, #tpu.memory_space<vmem>>, vector<1x32xf32>
    %42 = vector.broadcast %41 : vector<1x32xf32> to vector<20x32xf32>
    %43 = arith.addf %40, %42 : vector<20x32xf32>
    %cst_16 = arith.constant 0.000000e+00 : f32
    %44 = vector.broadcast %cst_16 : f32 to vector<20x32xf32>
    %45 = arith.maximumf %43, %44 : vector<20x32xf32>
    %c0_17 = arith.constant 0 : index
    %c0_18 = arith.constant 0 : index
    %46 = vector.load %arg4[%c0_17, %c0_18] : memref<48x32xbf16, #tpu.memory_space<vmem>>, vector<48x32xbf16>
    %47 = arith.truncf %37 : vector<20x48xf32> to vector<20x48xbf16>
    %cst_19 = arith.constant dense<0.000000e+00> : vector<20x32xf32>
    %48 = tpu.matmul %47, %46, %cst_19 {dimension_numbers = #tpu.dot_dimension_numbers<[1], [0], [0], [1], [0, 0, 1, 1], [], []>} : vector<20x48xbf16>, vector<48x32xbf16>, vector<20x32xf32> -> vector<20x32xf32>
    %c0_20 = arith.constant 0 : index
    %c0_21 = arith.constant 0 : index
    %49 = vector.load %arg5[%c0_20, %c0_21] : memref<1x32xf32, #tpu.memory_space<vmem>>, vector<1x32xf32>
    %50 = vector.broadcast %49 : vector<1x32xf32> to vector<20x32xf32>
    %51 = arith.addf %48, %50 : vector<20x32xf32>
    %cst_22 = arith.constant 0.000000e+00 : f32
    %52 = vector.broadcast %cst_22 : f32 to vector<20x32xf32>
    %53 = arith.maximumf %51, %52 : vector<20x32xf32>
    %cst_23 = arith.constant 0.000000e+00 : f32
    %54 = vector.broadcast %cst_23 : f32 to vector<1x32xf32>
    %55 = vector.extract_strided_slice %53 {offsets = [0, 0], sizes = [19, 32], strides = [1, 1]} : vector<20x32xf32> to vector<19x32xf32>
    %56 = tpu.concatenate %54, %55 in 0 : vector<1x32xf32>, vector<19x32xf32> -> vector<20x32xf32>
    %57 = vector.broadcast %13 : vector<20x1xf32> to vector<20x32xf32>
    %58 = arith.mulf %56, %57 : vector<20x32xf32>
    %59 = tpu.concatenate %58, %45, %53 in 1 : vector<20x32xf32>, vector<20x32xf32>, vector<20x32xf32> -> vector<20x96xf32>
    %c0_24 = arith.constant 0 : index
    %c0_25 = arith.constant 0 : index
    %60 = vector.load %arg6[%c0_24, %c0_25] : memref<96x64xbf16, #tpu.memory_space<vmem>>, vector<96x64xbf16>
    %61 = arith.truncf %59 : vector<20x96xf32> to vector<20x96xbf16>
    %cst_26 = arith.constant dense<0.000000e+00> : vector<20x64xf32>
    %62 = tpu.matmul %61, %60, %cst_26 {dimension_numbers = #tpu.dot_dimension_numbers<[1], [0], [0], [1], [0, 0, 1, 1], [], []>} : vector<20x96xbf16>, vector<96x64xbf16>, vector<20x64xf32> -> vector<20x64xf32>
    %c0_27 = arith.constant 0 : index
    %c0_28 = arith.constant 0 : index
    %63 = vector.load %arg7[%c0_27, %c0_28] : memref<1x64xf32, #tpu.memory_space<vmem>>, vector<1x64xf32>
    %64 = vector.broadcast %63 : vector<1x64xf32> to vector<20x64xf32>
    %65 = arith.addf %62, %64 : vector<20x64xf32>
    %cst_29 = arith.constant 0.000000e+00 : f32
    %66 = vector.broadcast %cst_29 : f32 to vector<20x64xf32>
    %67 = arith.maximumf %65, %66 : vector<20x64xf32>
    %cst_30 = arith.constant 0.000000e+00 : f32
    %68 = vector.broadcast %cst_30 : f32 to vector<1x64xf32>
    %69 = vector.extract_strided_slice %67 {offsets = [0, 0], sizes = [19, 64], strides = [1, 1]} : vector<20x64xf32> to vector<19x64xf32>
    %70 = tpu.concatenate %68, %69 in 0 : vector<1x64xf32>, vector<19x64xf32> -> vector<20x64xf32>
    %71 = vector.broadcast %13 : vector<20x1xf32> to vector<20x64xf32>
    %72 = arith.mulf %70, %71 : vector<20x64xf32>
    %73 = vector.extract_strided_slice %67 {offsets = [1, 0], sizes = [19, 64], strides = [1, 1]} : vector<20x64xf32> to vector<19x64xf32>
    %cst_31 = arith.constant 0.000000e+00 : f32
    %74 = vector.broadcast %cst_31 : f32 to vector<1x64xf32>
    %75 = tpu.concatenate %73, %74 in 0 : vector<19x64xf32>, vector<1x64xf32> -> vector<20x64xf32>
    %76 = vector.broadcast %16 : vector<20x1xf32> to vector<20x64xf32>
    %77 = arith.mulf %75, %76 : vector<20x64xf32>
    %78 = tpu.concatenate %72, %67, %77 in 1 : vector<20x64xf32>, vector<20x64xf32>, vector<20x64xf32> -> vector<20x192xf32>
    %c0_32 = arith.constant 0 : index
    %c0_33 = arith.constant 0 : index
    %79 = vector.load %arg8[%c0_32, %c0_33] : memref<192x64xbf16, #tpu.memory_space<vmem>>, vector<192x64xbf16>
    %80 = arith.truncf %78 : vector<20x192xf32> to vector<20x192xbf16>
    %cst_34 = arith.constant dense<0.000000e+00> : vector<20x64xf32>
    %81 = tpu.matmul %80, %79, %cst_34 {dimension_numbers = #tpu.dot_dimension_numbers<[1], [0], [0], [1], [0, 0, 1, 1], [], []>} : vector<20x192xbf16>, vector<192x64xbf16>, vector<20x64xf32> -> vector<20x64xf32>
    %c0_35 = arith.constant 0 : index
    %c0_36 = arith.constant 0 : index
    %82 = vector.load %arg9[%c0_35, %c0_36] : memref<1x64xf32, #tpu.memory_space<vmem>>, vector<1x64xf32>
    %83 = vector.broadcast %82 : vector<1x64xf32> to vector<20x64xf32>
    %84 = arith.addf %81, %83 : vector<20x64xf32>
    %cst_37 = arith.constant 0.000000e+00 : f32
    %85 = vector.broadcast %cst_37 : f32 to vector<20x64xf32>
    %86 = arith.maximumf %84, %85 : vector<20x64xf32>
    %c0_38 = arith.constant 0 : index
    %c0_39 = arith.constant 0 : index
    %87 = vector.load %arg10[%c0_38, %c0_39] : memref<20x64xf32, #tpu.memory_space<vmem>>, vector<20x64xf32>
    %88 = arith.addf %86, %87 : vector<20x64xf32>
    %c0_40 = arith.constant 0 : index
    %c0_41 = arith.constant 0 : index
    %89 = vector.load %arg11[%c0_40, %c0_41] : memref<80x80xf32, #tpu.memory_space<vmem>>, vector<80x80xf32>
    %c0_42 = arith.constant 0 : index
    %c0_43 = arith.constant 0 : index
    %c0_44 = arith.constant 0 : index
    %90 = vector.load %arg12[%c0_42, %c0_43, %c0_44] : memref<2x64x192xbf16, #tpu.memory_space<vmem>>, vector<1x64x192xbf16>
    %91 = vector.shape_cast %90 : vector<1x64x192xbf16> to vector<64x192xbf16>
    %92 = arith.truncf %88 : vector<20x64xf32> to vector<20x64xbf16>
    %cst_45 = arith.constant dense<0.000000e+00> : vector<20x192xf32>
    %93 = tpu.matmul %92, %91, %cst_45 {dimension_numbers = #tpu.dot_dimension_numbers<[1], [0], [0], [1], [0, 0, 1, 1], [], []>} : vector<20x64xbf16>, vector<64x192xbf16>, vector<20x192xf32> -> vector<20x192xf32>
    %c0_46 = arith.constant 0 : index
    %c0_47 = arith.constant 0 : index
    %c0_48 = arith.constant 0 : index
    %94 = vector.load %arg13[%c0_46, %c0_47, %c0_48] : memref<2x1x192xf32, #tpu.memory_space<vmem>>, vector<1x1x192xf32>
    %95 = vector.shape_cast %94 : vector<1x1x192xf32> to vector<1x192xf32>
    %96 = vector.broadcast %95 : vector<1x192xf32> to vector<20x192xf32>
    %97 = arith.addf %93, %96 : vector<20x192xf32>
    %98 = vector.extract_strided_slice %97 {offsets = [0, 0], sizes = [20, 16], strides = [1, 1]} : vector<20x192xf32> to vector<20x16xf32>
    %99 = vector.extract_strided_slice %97 {offsets = [0, 16], sizes = [20, 16], strides = [1, 1]} : vector<20x192xf32> to vector<20x16xf32>
    %100 = vector.extract_strided_slice %97 {offsets = [0, 32], sizes = [20, 16], strides = [1, 1]} : vector<20x192xf32> to vector<20x16xf32>
    %101 = vector.extract_strided_slice %97 {offsets = [0, 48], sizes = [20, 16], strides = [1, 1]} : vector<20x192xf32> to vector<20x16xf32>
    %102 = tpu.concatenate %98, %99, %100, %101 in 0 : vector<20x16xf32>, vector<20x16xf32>, vector<20x16xf32>, vector<20x16xf32> -> vector<80x16xf32>
    %103 = vector.extract_strided_slice %97 {offsets = [0, 64], sizes = [20, 16], strides = [1, 1]} : vector<20x192xf32> to vector<20x16xf32>
    %104 = vector.extract_strided_slice %97 {offsets = [0, 80], sizes = [20, 16], strides = [1, 1]} : vector<20x192xf32> to vector<20x16xf32>
    %105 = vector.extract_strided_slice %97 {offsets = [0, 96], sizes = [20, 16], strides = [1, 1]} : vector<20x192xf32> to vector<20x16xf32>
    %106 = vector.extract_strided_slice %97 {offsets = [0, 112], sizes = [20, 16], strides = [1, 1]} : vector<20x192xf32> to vector<20x16xf32>
    %107 = tpu.concatenate %103, %104, %105, %106 in 0 : vector<20x16xf32>, vector<20x16xf32>, vector<20x16xf32>, vector<20x16xf32> -> vector<80x16xf32>
    %108 = vector.extract_strided_slice %97 {offsets = [0, 128], sizes = [20, 16], strides = [1, 1]} : vector<20x192xf32> to vector<20x16xf32>
    %109 = vector.extract_strided_slice %97 {offsets = [0, 144], sizes = [20, 16], strides = [1, 1]} : vector<20x192xf32> to vector<20x16xf32>
    %110 = vector.extract_strided_slice %97 {offsets = [0, 160], sizes = [20, 16], strides = [1, 1]} : vector<20x192xf32> to vector<20x16xf32>
    %111 = vector.extract_strided_slice %97 {offsets = [0, 176], sizes = [20, 16], strides = [1, 1]} : vector<20x192xf32> to vector<20x16xf32>
    %112 = tpu.concatenate %108, %109, %110, %111 in 0 : vector<20x16xf32>, vector<20x16xf32>, vector<20x16xf32>, vector<20x16xf32> -> vector<80x16xf32>
    %113 = arith.truncf %102 : vector<80x16xf32> to vector<80x16xbf16>
    %114 = arith.truncf %107 : vector<80x16xf32> to vector<80x16xbf16>
    %cst_49 = arith.constant dense<0.000000e+00> : vector<80x80xf32>
    %115 = tpu.matmul %113, %114, %cst_49 {dimension_numbers = #tpu.dot_dimension_numbers<[1], [1], [0], [0], [0, 0, 1, 0], [], []>} : vector<80x16xbf16>, vector<80x16xbf16>, vector<80x80xf32> -> vector<80x80xf32>
    %116 = arith.addf %115, %89 : vector<80x80xf32>
    %cst_50 = arith.constant dense<0xFF800000> : vector<80xf32>
    %117 = vector.multi_reduction <maximumf>, %116, %cst_50 [1] : vector<80x80xf32> to vector<80xf32>
    %118 = vector.shape_cast %117 : vector<80xf32> to vector<80x1xf32>
    %119 = vector.broadcast %118 : vector<80x1xf32> to vector<80x80xf32>
    %120 = arith.subf %116, %119 : vector<80x80xf32>
    %121 = math.exp %120 : vector<80x80xf32>
    %cst_51 = arith.constant dense<0.000000e+00> : vector<80xf32>
    %122 = vector.multi_reduction <add>, %121, %cst_51 [1] : vector<80x80xf32> to vector<80xf32>
    %123 = vector.shape_cast %122 : vector<80xf32> to vector<80x1xf32>
    %124 = tpu.reciprocal %123 {approx = true} : vector<80x1xf32> -> vector<80x1xf32>
    %125 = vector.broadcast %124 : vector<80x1xf32> to vector<80x80xf32>
    %126 = arith.mulf %121, %125 : vector<80x80xf32>
    %127 = arith.truncf %126 : vector<80x80xf32> to vector<80x80xbf16>
    %128 = arith.truncf %112 : vector<80x16xf32> to vector<80x16xbf16>
    %cst_52 = arith.constant dense<0.000000e+00> : vector<80x16xf32>
    %129 = tpu.matmul %127, %128, %cst_52 {dimension_numbers = #tpu.dot_dimension_numbers<[1], [0], [0], [1], [0, 0, 1, 1], [], []>} : vector<80x80xbf16>, vector<80x16xbf16>, vector<80x16xf32> -> vector<80x16xf32>
    %130 = vector.extract_strided_slice %129 {offsets = [0, 0], sizes = [20, 16], strides = [1, 1]} : vector<80x16xf32> to vector<20x16xf32>
    %131 = vector.extract_strided_slice %129 {offsets = [20, 0], sizes = [20, 16], strides = [1, 1]} : vector<80x16xf32> to vector<20x16xf32>
    %132 = vector.extract_strided_slice %129 {offsets = [40, 0], sizes = [20, 16], strides = [1, 1]} : vector<80x16xf32> to vector<20x16xf32>
    %133 = vector.extract_strided_slice %129 {offsets = [60, 0], sizes = [20, 16], strides = [1, 1]} : vector<80x16xf32> to vector<20x16xf32>
    %134 = tpu.concatenate %130, %131, %132, %133 in 1 : vector<20x16xf32>, vector<20x16xf32>, vector<20x16xf32>, vector<20x16xf32> -> vector<20x64xf32>
    %c0_53 = arith.constant 0 : index
    %c0_54 = arith.constant 0 : index
    %c0_55 = arith.constant 0 : index
    %135 = vector.load %arg14[%c0_53, %c0_54, %c0_55] : memref<2x64x64xbf16, #tpu.memory_space<vmem>>, vector<1x64x64xbf16>
    %136 = vector.shape_cast %135 : vector<1x64x64xbf16> to vector<64x64xbf16>
    %137 = arith.truncf %134 : vector<20x64xf32> to vector<20x64xbf16>
    %cst_56 = arith.constant dense<0.000000e+00> : vector<20x64xf32>
    %138 = tpu.matmul %137, %136, %cst_56 {dimension_numbers = #tpu.dot_dimension_numbers<[1], [0], [0], [1], [0, 0, 1, 1], [], []>} : vector<20x64xbf16>, vector<64x64xbf16>, vector<20x64xf32> -> vector<20x64xf32>
    %c0_57 = arith.constant 0 : index
    %c0_58 = arith.constant 0 : index
    %c0_59 = arith.constant 0 : index
    %139 = vector.load %arg15[%c0_57, %c0_58, %c0_59] : memref<2x1x64xf32, #tpu.memory_space<vmem>>, vector<1x1x64xf32>
    %140 = vector.shape_cast %139 : vector<1x1x64xf32> to vector<1x64xf32>
    %141 = vector.broadcast %140 : vector<1x64xf32> to vector<20x64xf32>
    %142 = arith.addf %138, %141 : vector<20x64xf32>
    %143 = arith.addf %88, %142 : vector<20x64xf32>
    %c0_60 = arith.constant 0 : index
    %c0_61 = arith.constant 0 : index
    %c0_62 = arith.constant 0 : index
    %144 = vector.load %arg16[%c0_60, %c0_61, %c0_62] : memref<2x1x64xf32, #tpu.memory_space<vmem>>, vector<1x1x64xf32>
    %145 = vector.shape_cast %144 : vector<1x1x64xf32> to vector<1x64xf32>
    %c0_63 = arith.constant 0 : index
    %c0_64 = arith.constant 0 : index
    %c0_65 = arith.constant 0 : index
    %146 = vector.load %arg17[%c0_63, %c0_64, %c0_65] : memref<2x1x64xf32, #tpu.memory_space<vmem>>, vector<1x1x64xf32>
    %147 = vector.shape_cast %146 : vector<1x1x64xf32> to vector<1x64xf32>
    %cst_66 = arith.constant dense<0.000000e+00> : vector<20xf32>
    %148 = vector.multi_reduction <add>, %143, %cst_66 [1] : vector<20x64xf32> to vector<20xf32>
    %149 = vector.shape_cast %148 : vector<20xf32> to vector<20x1xf32>
    %cst_67 = arith.constant 6.400000e+01 : f32
    %150 = vector.broadcast %cst_67 : f32 to vector<20x1xf32>
    %151 = arith.divf %149, %150 : vector<20x1xf32>
    %152 = vector.broadcast %151 : vector<20x1xf32> to vector<20x64xf32>
    %153 = arith.subf %143, %152 : vector<20x64xf32>
    %154 = arith.mulf %153, %153 : vector<20x64xf32>
    %cst_68 = arith.constant dense<0.000000e+00> : vector<20xf32>
    %155 = vector.multi_reduction <add>, %154, %cst_68 [1] : vector<20x64xf32> to vector<20xf32>
    %156 = vector.shape_cast %155 : vector<20xf32> to vector<20x1xf32>
    %cst_69 = arith.constant 6.400000e+01 : f32
    %157 = vector.broadcast %cst_69 : f32 to vector<20x1xf32>
    %158 = arith.divf %156, %157 : vector<20x1xf32>
    %cst_70 = arith.constant 9.99999974E-6 : f32
    %159 = vector.broadcast %cst_70 : f32 to vector<20x1xf32>
    %160 = arith.addf %158, %159 : vector<20x1xf32>
    %161 = math.rsqrt %160 : vector<20x1xf32>
    %162 = vector.broadcast %161 : vector<20x1xf32> to vector<20x64xf32>
    %163 = arith.mulf %153, %162 : vector<20x64xf32>
    %164 = vector.broadcast %145 : vector<1x64xf32> to vector<20x64xf32>
    %165 = arith.mulf %163, %164 : vector<20x64xf32>
    %166 = vector.broadcast %147 : vector<1x64xf32> to vector<20x64xf32>
    %167 = arith.addf %165, %166 : vector<20x64xf32>
    %c0_71 = arith.constant 0 : index
    %c0_72 = arith.constant 0 : index
    %c0_73 = arith.constant 0 : index
    %168 = vector.load %arg18[%c0_71, %c0_72, %c0_73] : memref<2x64x128xbf16, #tpu.memory_space<vmem>>, vector<1x64x128xbf16>
    %169 = vector.shape_cast %168 : vector<1x64x128xbf16> to vector<64x128xbf16>
    %170 = arith.truncf %167 : vector<20x64xf32> to vector<20x64xbf16>
    %cst_74 = arith.constant dense<0.000000e+00> : vector<20x128xf32>
    %171 = tpu.matmul %170, %169, %cst_74 {dimension_numbers = #tpu.dot_dimension_numbers<[1], [0], [0], [1], [0, 0, 1, 1], [], []>} : vector<20x64xbf16>, vector<64x128xbf16>, vector<20x128xf32> -> vector<20x128xf32>
    %c0_75 = arith.constant 0 : index
    %c0_76 = arith.constant 0 : index
    %c0_77 = arith.constant 0 : index
    %172 = vector.load %arg19[%c0_75, %c0_76, %c0_77] : memref<2x1x128xf32, #tpu.memory_space<vmem>>, vector<1x1x128xf32>
    %173 = vector.shape_cast %172 : vector<1x1x128xf32> to vector<1x128xf32>
    %174 = vector.broadcast %173 : vector<1x128xf32> to vector<20x128xf32>
    %175 = arith.addf %171, %174 : vector<20x128xf32>
    %cst_78 = arith.constant 0.000000e+00 : f32
    %176 = vector.broadcast %cst_78 : f32 to vector<20x128xf32>
    %177 = arith.maximumf %175, %176 : vector<20x128xf32>
    %c0_79 = arith.constant 0 : index
    %c0_80 = arith.constant 0 : index
    %c0_81 = arith.constant 0 : index
    %178 = vector.load %arg20[%c0_79, %c0_80, %c0_81] : memref<2x128x64xbf16, #tpu.memory_space<vmem>>, vector<1x128x64xbf16>
    %179 = vector.shape_cast %178 : vector<1x128x64xbf16> to vector<128x64xbf16>
    %180 = arith.truncf %177 : vector<20x128xf32> to vector<20x128xbf16>
    %cst_82 = arith.constant dense<0.000000e+00> : vector<20x64xf32>
    %181 = tpu.matmul %180, %179, %cst_82 {dimension_numbers = #tpu.dot_dimension_numbers<[1], [0], [0], [1], [0, 0, 1, 1], [], []>} : vector<20x128xbf16>, vector<128x64xbf16>, vector<20x64xf32> -> vector<20x64xf32>
    %182 = arith.addf %167, %181 : vector<20x64xf32>
    %c0_83 = arith.constant 0 : index
    %c0_84 = arith.constant 0 : index
    %c0_85 = arith.constant 0 : index
    %183 = vector.load %arg21[%c0_83, %c0_84, %c0_85] : memref<2x1x64xf32, #tpu.memory_space<vmem>>, vector<1x1x64xf32>
    %184 = vector.shape_cast %183 : vector<1x1x64xf32> to vector<1x64xf32>
    %185 = vector.broadcast %184 : vector<1x64xf32> to vector<20x64xf32>
    %186 = arith.addf %182, %185 : vector<20x64xf32>
    %c0_86 = arith.constant 0 : index
    %c0_87 = arith.constant 0 : index
    %c0_88 = arith.constant 0 : index
    %187 = vector.load %arg22[%c0_86, %c0_87, %c0_88] : memref<2x1x64xf32, #tpu.memory_space<vmem>>, vector<1x1x64xf32>
    %188 = vector.shape_cast %187 : vector<1x1x64xf32> to vector<1x64xf32>
    %c0_89 = arith.constant 0 : index
    %c0_90 = arith.constant 0 : index
    %c0_91 = arith.constant 0 : index
    %189 = vector.load %arg23[%c0_89, %c0_90, %c0_91] : memref<2x1x64xf32, #tpu.memory_space<vmem>>, vector<1x1x64xf32>
    %190 = vector.shape_cast %189 : vector<1x1x64xf32> to vector<1x64xf32>
    %cst_92 = arith.constant dense<0.000000e+00> : vector<20xf32>
    %191 = vector.multi_reduction <add>, %186, %cst_92 [1] : vector<20x64xf32> to vector<20xf32>
    %192 = vector.shape_cast %191 : vector<20xf32> to vector<20x1xf32>
    %cst_93 = arith.constant 6.400000e+01 : f32
    %193 = vector.broadcast %cst_93 : f32 to vector<20x1xf32>
    %194 = arith.divf %192, %193 : vector<20x1xf32>
    %195 = vector.broadcast %194 : vector<20x1xf32> to vector<20x64xf32>
    %196 = arith.subf %186, %195 : vector<20x64xf32>
    %197 = arith.mulf %196, %196 : vector<20x64xf32>
    %cst_94 = arith.constant dense<0.000000e+00> : vector<20xf32>
    %198 = vector.multi_reduction <add>, %197, %cst_94 [1] : vector<20x64xf32> to vector<20xf32>
    %199 = vector.shape_cast %198 : vector<20xf32> to vector<20x1xf32>
    %cst_95 = arith.constant 6.400000e+01 : f32
    %200 = vector.broadcast %cst_95 : f32 to vector<20x1xf32>
    %201 = arith.divf %199, %200 : vector<20x1xf32>
    %cst_96 = arith.constant 9.99999974E-6 : f32
    %202 = vector.broadcast %cst_96 : f32 to vector<20x1xf32>
    %203 = arith.addf %201, %202 : vector<20x1xf32>
    %204 = math.rsqrt %203 : vector<20x1xf32>
    %205 = vector.broadcast %204 : vector<20x1xf32> to vector<20x64xf32>
    %206 = arith.mulf %196, %205 : vector<20x64xf32>
    %207 = vector.broadcast %188 : vector<1x64xf32> to vector<20x64xf32>
    %208 = arith.mulf %206, %207 : vector<20x64xf32>
    %209 = vector.broadcast %190 : vector<1x64xf32> to vector<20x64xf32>
    %210 = arith.addf %208, %209 : vector<20x64xf32>
    %c1 = arith.constant 1 : index
    %c0_97 = arith.constant 0 : index
    %c0_98 = arith.constant 0 : index
    %211 = vector.load %arg12[%c1, %c0_97, %c0_98] : memref<2x64x192xbf16, #tpu.memory_space<vmem>>, vector<1x64x192xbf16>
    %212 = vector.shape_cast %211 : vector<1x64x192xbf16> to vector<64x192xbf16>
    %213 = arith.truncf %210 : vector<20x64xf32> to vector<20x64xbf16>
    %cst_99 = arith.constant dense<0.000000e+00> : vector<20x192xf32>
    %214 = tpu.matmul %213, %212, %cst_99 {dimension_numbers = #tpu.dot_dimension_numbers<[1], [0], [0], [1], [0, 0, 1, 1], [], []>} : vector<20x64xbf16>, vector<64x192xbf16>, vector<20x192xf32> -> vector<20x192xf32>
    %c1_100 = arith.constant 1 : index
    %c0_101 = arith.constant 0 : index
    %c0_102 = arith.constant 0 : index
    %215 = vector.load %arg13[%c1_100, %c0_101, %c0_102] : memref<2x1x192xf32, #tpu.memory_space<vmem>>, vector<1x1x192xf32>
    %216 = vector.shape_cast %215 : vector<1x1x192xf32> to vector<1x192xf32>
    %217 = vector.broadcast %216 : vector<1x192xf32> to vector<20x192xf32>
    %218 = arith.addf %214, %217 : vector<20x192xf32>
    %219 = vector.extract_strided_slice %218 {offsets = [0, 0], sizes = [20, 16], strides = [1, 1]} : vector<20x192xf32> to vector<20x16xf32>
    %220 = vector.extract_strided_slice %218 {offsets = [0, 16], sizes = [20, 16], strides = [1, 1]} : vector<20x192xf32> to vector<20x16xf32>
    %221 = vector.extract_strided_slice %218 {offsets = [0, 32], sizes = [20, 16], strides = [1, 1]} : vector<20x192xf32> to vector<20x16xf32>
    %222 = vector.extract_strided_slice %218 {offsets = [0, 48], sizes = [20, 16], strides = [1, 1]} : vector<20x192xf32> to vector<20x16xf32>
    %223 = tpu.concatenate %219, %220, %221, %222 in 0 : vector<20x16xf32>, vector<20x16xf32>, vector<20x16xf32>, vector<20x16xf32> -> vector<80x16xf32>
    %224 = vector.extract_strided_slice %218 {offsets = [0, 64], sizes = [20, 16], strides = [1, 1]} : vector<20x192xf32> to vector<20x16xf32>
    %225 = vector.extract_strided_slice %218 {offsets = [0, 80], sizes = [20, 16], strides = [1, 1]} : vector<20x192xf32> to vector<20x16xf32>
    %226 = vector.extract_strided_slice %218 {offsets = [0, 96], sizes = [20, 16], strides = [1, 1]} : vector<20x192xf32> to vector<20x16xf32>
    %227 = vector.extract_strided_slice %218 {offsets = [0, 112], sizes = [20, 16], strides = [1, 1]} : vector<20x192xf32> to vector<20x16xf32>
    %228 = tpu.concatenate %224, %225, %226, %227 in 0 : vector<20x16xf32>, vector<20x16xf32>, vector<20x16xf32>, vector<20x16xf32> -> vector<80x16xf32>
    %229 = vector.extract_strided_slice %218 {offsets = [0, 128], sizes = [20, 16], strides = [1, 1]} : vector<20x192xf32> to vector<20x16xf32>
    %230 = vector.extract_strided_slice %218 {offsets = [0, 144], sizes = [20, 16], strides = [1, 1]} : vector<20x192xf32> to vector<20x16xf32>
    %231 = vector.extract_strided_slice %218 {offsets = [0, 160], sizes = [20, 16], strides = [1, 1]} : vector<20x192xf32> to vector<20x16xf32>
    %232 = vector.extract_strided_slice %218 {offsets = [0, 176], sizes = [20, 16], strides = [1, 1]} : vector<20x192xf32> to vector<20x16xf32>
    %233 = tpu.concatenate %229, %230, %231, %232 in 0 : vector<20x16xf32>, vector<20x16xf32>, vector<20x16xf32>, vector<20x16xf32> -> vector<80x16xf32>
    %234 = arith.truncf %223 : vector<80x16xf32> to vector<80x16xbf16>
    %235 = arith.truncf %228 : vector<80x16xf32> to vector<80x16xbf16>
    %cst_103 = arith.constant dense<0.000000e+00> : vector<80x80xf32>
    %236 = tpu.matmul %234, %235, %cst_103 {dimension_numbers = #tpu.dot_dimension_numbers<[1], [1], [0], [0], [0, 0, 1, 0], [], []>} : vector<80x16xbf16>, vector<80x16xbf16>, vector<80x80xf32> -> vector<80x80xf32>
    %237 = arith.addf %236, %89 : vector<80x80xf32>
    %cst_104 = arith.constant dense<0xFF800000> : vector<80xf32>
    %238 = vector.multi_reduction <maximumf>, %237, %cst_104 [1] : vector<80x80xf32> to vector<80xf32>
    %239 = vector.shape_cast %238 : vector<80xf32> to vector<80x1xf32>
    %240 = vector.broadcast %239 : vector<80x1xf32> to vector<80x80xf32>
    %241 = arith.subf %237, %240 : vector<80x80xf32>
    %242 = math.exp %241 : vector<80x80xf32>
    %cst_105 = arith.constant dense<0.000000e+00> : vector<80xf32>
    %243 = vector.multi_reduction <add>, %242, %cst_105 [1] : vector<80x80xf32> to vector<80xf32>
    %244 = vector.shape_cast %243 : vector<80xf32> to vector<80x1xf32>
    %245 = tpu.reciprocal %244 {approx = true} : vector<80x1xf32> -> vector<80x1xf32>
    %246 = vector.broadcast %245 : vector<80x1xf32> to vector<80x80xf32>
    %247 = arith.mulf %242, %246 : vector<80x80xf32>
    %248 = arith.truncf %247 : vector<80x80xf32> to vector<80x80xbf16>
    %249 = arith.truncf %233 : vector<80x16xf32> to vector<80x16xbf16>
    %cst_106 = arith.constant dense<0.000000e+00> : vector<80x16xf32>
    %250 = tpu.matmul %248, %249, %cst_106 {dimension_numbers = #tpu.dot_dimension_numbers<[1], [0], [0], [1], [0, 0, 1, 1], [], []>} : vector<80x80xbf16>, vector<80x16xbf16>, vector<80x16xf32> -> vector<80x16xf32>
    %251 = vector.extract_strided_slice %250 {offsets = [0, 0], sizes = [20, 16], strides = [1, 1]} : vector<80x16xf32> to vector<20x16xf32>
    %252 = vector.extract_strided_slice %250 {offsets = [20, 0], sizes = [20, 16], strides = [1, 1]} : vector<80x16xf32> to vector<20x16xf32>
    %253 = vector.extract_strided_slice %250 {offsets = [40, 0], sizes = [20, 16], strides = [1, 1]} : vector<80x16xf32> to vector<20x16xf32>
    %254 = vector.extract_strided_slice %250 {offsets = [60, 0], sizes = [20, 16], strides = [1, 1]} : vector<80x16xf32> to vector<20x16xf32>
    %255 = tpu.concatenate %251, %252, %253, %254 in 1 : vector<20x16xf32>, vector<20x16xf32>, vector<20x16xf32>, vector<20x16xf32> -> vector<20x64xf32>
    %c1_107 = arith.constant 1 : index
    %c0_108 = arith.constant 0 : index
    %c0_109 = arith.constant 0 : index
    %256 = vector.load %arg14[%c1_107, %c0_108, %c0_109] : memref<2x64x64xbf16, #tpu.memory_space<vmem>>, vector<1x64x64xbf16>
    %257 = vector.shape_cast %256 : vector<1x64x64xbf16> to vector<64x64xbf16>
    %258 = arith.truncf %255 : vector<20x64xf32> to vector<20x64xbf16>
    %cst_110 = arith.constant dense<0.000000e+00> : vector<20x64xf32>
    %259 = tpu.matmul %258, %257, %cst_110 {dimension_numbers = #tpu.dot_dimension_numbers<[1], [0], [0], [1], [0, 0, 1, 1], [], []>} : vector<20x64xbf16>, vector<64x64xbf16>, vector<20x64xf32> -> vector<20x64xf32>
    %c1_111 = arith.constant 1 : index
    %c0_112 = arith.constant 0 : index
    %c0_113 = arith.constant 0 : index
    %260 = vector.load %arg15[%c1_111, %c0_112, %c0_113] : memref<2x1x64xf32, #tpu.memory_space<vmem>>, vector<1x1x64xf32>
    %261 = vector.shape_cast %260 : vector<1x1x64xf32> to vector<1x64xf32>
    %262 = vector.broadcast %261 : vector<1x64xf32> to vector<20x64xf32>
    %263 = arith.addf %259, %262 : vector<20x64xf32>
    %264 = arith.addf %210, %263 : vector<20x64xf32>
    %c1_114 = arith.constant 1 : index
    %c0_115 = arith.constant 0 : index
    %c0_116 = arith.constant 0 : index
    %265 = vector.load %arg16[%c1_114, %c0_115, %c0_116] : memref<2x1x64xf32, #tpu.memory_space<vmem>>, vector<1x1x64xf32>
    %266 = vector.shape_cast %265 : vector<1x1x64xf32> to vector<1x64xf32>
    %c1_117 = arith.constant 1 : index
    %c0_118 = arith.constant 0 : index
    %c0_119 = arith.constant 0 : index
    %267 = vector.load %arg17[%c1_117, %c0_118, %c0_119] : memref<2x1x64xf32, #tpu.memory_space<vmem>>, vector<1x1x64xf32>
    %268 = vector.shape_cast %267 : vector<1x1x64xf32> to vector<1x64xf32>
    %cst_120 = arith.constant dense<0.000000e+00> : vector<20xf32>
    %269 = vector.multi_reduction <add>, %264, %cst_120 [1] : vector<20x64xf32> to vector<20xf32>
    %270 = vector.shape_cast %269 : vector<20xf32> to vector<20x1xf32>
    %cst_121 = arith.constant 6.400000e+01 : f32
    %271 = vector.broadcast %cst_121 : f32 to vector<20x1xf32>
    %272 = arith.divf %270, %271 : vector<20x1xf32>
    %273 = vector.broadcast %272 : vector<20x1xf32> to vector<20x64xf32>
    %274 = arith.subf %264, %273 : vector<20x64xf32>
    %275 = arith.mulf %274, %274 : vector<20x64xf32>
    %cst_122 = arith.constant dense<0.000000e+00> : vector<20xf32>
    %276 = vector.multi_reduction <add>, %275, %cst_122 [1] : vector<20x64xf32> to vector<20xf32>
    %277 = vector.shape_cast %276 : vector<20xf32> to vector<20x1xf32>
    %cst_123 = arith.constant 6.400000e+01 : f32
    %278 = vector.broadcast %cst_123 : f32 to vector<20x1xf32>
    %279 = arith.divf %277, %278 : vector<20x1xf32>
    %cst_124 = arith.constant 9.99999974E-6 : f32
    %280 = vector.broadcast %cst_124 : f32 to vector<20x1xf32>
    %281 = arith.addf %279, %280 : vector<20x1xf32>
    %282 = math.rsqrt %281 : vector<20x1xf32>
    %283 = vector.broadcast %282 : vector<20x1xf32> to vector<20x64xf32>
    %284 = arith.mulf %274, %283 : vector<20x64xf32>
    %285 = vector.broadcast %266 : vector<1x64xf32> to vector<20x64xf32>
    %286 = arith.mulf %284, %285 : vector<20x64xf32>
    %287 = vector.broadcast %268 : vector<1x64xf32> to vector<20x64xf32>
    %288 = arith.addf %286, %287 : vector<20x64xf32>
    %c1_125 = arith.constant 1 : index
    %c0_126 = arith.constant 0 : index
    %c0_127 = arith.constant 0 : index
    %289 = vector.load %arg18[%c1_125, %c0_126, %c0_127] : memref<2x64x128xbf16, #tpu.memory_space<vmem>>, vector<1x64x128xbf16>
    %290 = vector.shape_cast %289 : vector<1x64x128xbf16> to vector<64x128xbf16>
    %291 = arith.truncf %288 : vector<20x64xf32> to vector<20x64xbf16>
    %cst_128 = arith.constant dense<0.000000e+00> : vector<20x128xf32>
    %292 = tpu.matmul %291, %290, %cst_128 {dimension_numbers = #tpu.dot_dimension_numbers<[1], [0], [0], [1], [0, 0, 1, 1], [], []>} : vector<20x64xbf16>, vector<64x128xbf16>, vector<20x128xf32> -> vector<20x128xf32>
    %c1_129 = arith.constant 1 : index
    %c0_130 = arith.constant 0 : index
    %c0_131 = arith.constant 0 : index
    %293 = vector.load %arg19[%c1_129, %c0_130, %c0_131] : memref<2x1x128xf32, #tpu.memory_space<vmem>>, vector<1x1x128xf32>
    %294 = vector.shape_cast %293 : vector<1x1x128xf32> to vector<1x128xf32>
    %295 = vector.broadcast %294 : vector<1x128xf32> to vector<20x128xf32>
    %296 = arith.addf %292, %295 : vector<20x128xf32>
    %cst_132 = arith.constant 0.000000e+00 : f32
    %297 = vector.broadcast %cst_132 : f32 to vector<20x128xf32>
    %298 = arith.maximumf %296, %297 : vector<20x128xf32>
    %c1_133 = arith.constant 1 : index
    %c0_134 = arith.constant 0 : index
    %c0_135 = arith.constant 0 : index
    %299 = vector.load %arg20[%c1_133, %c0_134, %c0_135] : memref<2x128x64xbf16, #tpu.memory_space<vmem>>, vector<1x128x64xbf16>
    %300 = vector.shape_cast %299 : vector<1x128x64xbf16> to vector<128x64xbf16>
    %301 = arith.truncf %298 : vector<20x128xf32> to vector<20x128xbf16>
    %cst_136 = arith.constant dense<0.000000e+00> : vector<20x64xf32>
    %302 = tpu.matmul %301, %300, %cst_136 {dimension_numbers = #tpu.dot_dimension_numbers<[1], [0], [0], [1], [0, 0, 1, 1], [], []>} : vector<20x128xbf16>, vector<128x64xbf16>, vector<20x64xf32> -> vector<20x64xf32>
    %303 = arith.addf %288, %302 : vector<20x64xf32>
    %c1_137 = arith.constant 1 : index
    %c0_138 = arith.constant 0 : index
    %c0_139 = arith.constant 0 : index
    %304 = vector.load %arg21[%c1_137, %c0_138, %c0_139] : memref<2x1x64xf32, #tpu.memory_space<vmem>>, vector<1x1x64xf32>
    %305 = vector.shape_cast %304 : vector<1x1x64xf32> to vector<1x64xf32>
    %306 = vector.broadcast %305 : vector<1x64xf32> to vector<20x64xf32>
    %307 = arith.addf %303, %306 : vector<20x64xf32>
    %c1_140 = arith.constant 1 : index
    %c0_141 = arith.constant 0 : index
    %c0_142 = arith.constant 0 : index
    %308 = vector.load %arg22[%c1_140, %c0_141, %c0_142] : memref<2x1x64xf32, #tpu.memory_space<vmem>>, vector<1x1x64xf32>
    %309 = vector.shape_cast %308 : vector<1x1x64xf32> to vector<1x64xf32>
    %c1_143 = arith.constant 1 : index
    %c0_144 = arith.constant 0 : index
    %c0_145 = arith.constant 0 : index
    %310 = vector.load %arg23[%c1_143, %c0_144, %c0_145] : memref<2x1x64xf32, #tpu.memory_space<vmem>>, vector<1x1x64xf32>
    %311 = vector.shape_cast %310 : vector<1x1x64xf32> to vector<1x64xf32>
    %cst_146 = arith.constant dense<0.000000e+00> : vector<20xf32>
    %312 = vector.multi_reduction <add>, %307, %cst_146 [1] : vector<20x64xf32> to vector<20xf32>
    %313 = vector.shape_cast %312 : vector<20xf32> to vector<20x1xf32>
    %cst_147 = arith.constant 6.400000e+01 : f32
    %314 = vector.broadcast %cst_147 : f32 to vector<20x1xf32>
    %315 = arith.divf %313, %314 : vector<20x1xf32>
    %316 = vector.broadcast %315 : vector<20x1xf32> to vector<20x64xf32>
    %317 = arith.subf %307, %316 : vector<20x64xf32>
    %318 = arith.mulf %317, %317 : vector<20x64xf32>
    %cst_148 = arith.constant dense<0.000000e+00> : vector<20xf32>
    %319 = vector.multi_reduction <add>, %318, %cst_148 [1] : vector<20x64xf32> to vector<20xf32>
    %320 = vector.shape_cast %319 : vector<20xf32> to vector<20x1xf32>
    %cst_149 = arith.constant 6.400000e+01 : f32
    %321 = vector.broadcast %cst_149 : f32 to vector<20x1xf32>
    %322 = arith.divf %320, %321 : vector<20x1xf32>
    %cst_150 = arith.constant 9.99999974E-6 : f32
    %323 = vector.broadcast %cst_150 : f32 to vector<20x1xf32>
    %324 = arith.addf %322, %323 : vector<20x1xf32>
    %325 = math.rsqrt %324 : vector<20x1xf32>
    %326 = vector.broadcast %325 : vector<20x1xf32> to vector<20x64xf32>
    %327 = arith.mulf %317, %326 : vector<20x64xf32>
    %328 = vector.broadcast %309 : vector<1x64xf32> to vector<20x64xf32>
    %329 = arith.mulf %327, %328 : vector<20x64xf32>
    %330 = vector.broadcast %311 : vector<1x64xf32> to vector<20x64xf32>
    %331 = arith.addf %329, %330 : vector<20x64xf32>
    %c0_151 = arith.constant 0 : index
    %c0_152 = arith.constant 0 : index
    %332 = vector.load %arg24[%c0_151, %c0_152] : memref<1x64xf32, #tpu.memory_space<vmem>>, vector<1x64xf32>
    %c0_153 = arith.constant 0 : index
    %c0_154 = arith.constant 0 : index
    %333 = vector.load %arg25[%c0_153, %c0_154] : memref<1x64xf32, #tpu.memory_space<vmem>>, vector<1x64xf32>
    %cst_155 = arith.constant dense<0.000000e+00> : vector<20xf32>
    %334 = vector.multi_reduction <add>, %331, %cst_155 [1] : vector<20x64xf32> to vector<20xf32>
    %335 = vector.shape_cast %334 : vector<20xf32> to vector<20x1xf32>
    %cst_156 = arith.constant 6.400000e+01 : f32
    %336 = vector.broadcast %cst_156 : f32 to vector<20x1xf32>
    %337 = arith.divf %335, %336 : vector<20x1xf32>
    %338 = vector.broadcast %337 : vector<20x1xf32> to vector<20x64xf32>
    %339 = arith.subf %331, %338 : vector<20x64xf32>
    %340 = arith.mulf %339, %339 : vector<20x64xf32>
    %cst_157 = arith.constant dense<0.000000e+00> : vector<20xf32>
    %341 = vector.multi_reduction <add>, %340, %cst_157 [1] : vector<20x64xf32> to vector<20xf32>
    %342 = vector.shape_cast %341 : vector<20xf32> to vector<20x1xf32>
    %cst_158 = arith.constant 6.400000e+01 : f32
    %343 = vector.broadcast %cst_158 : f32 to vector<20x1xf32>
    %344 = arith.divf %342, %343 : vector<20x1xf32>
    %cst_159 = arith.constant 9.99999974E-6 : f32
    %345 = vector.broadcast %cst_159 : f32 to vector<20x1xf32>
    %346 = arith.addf %344, %345 : vector<20x1xf32>
    %347 = math.rsqrt %346 : vector<20x1xf32>
    %348 = vector.broadcast %347 : vector<20x1xf32> to vector<20x64xf32>
    %349 = arith.mulf %339, %348 : vector<20x64xf32>
    %350 = vector.broadcast %332 : vector<1x64xf32> to vector<20x64xf32>
    %351 = arith.mulf %349, %350 : vector<20x64xf32>
    %352 = vector.broadcast %333 : vector<1x64xf32> to vector<20x64xf32>
    %353 = arith.addf %351, %352 : vector<20x64xf32>
    %c0_160 = arith.constant 0 : index
    %c0_161 = arith.constant 0 : index
    %354 = vector.load %arg26[%c0_160, %c0_161] : memref<64x64xbf16, #tpu.memory_space<vmem>>, vector<64x64xbf16>
    %355 = arith.truncf %353 : vector<20x64xf32> to vector<20x64xbf16>
    %cst_162 = arith.constant dense<0.000000e+00> : vector<20x64xf32>
    %356 = tpu.matmul %355, %354, %cst_162 {dimension_numbers = #tpu.dot_dimension_numbers<[1], [0], [0], [1], [0, 0, 1, 1], [], []>} : vector<20x64xbf16>, vector<64x64xbf16>, vector<20x64xf32> -> vector<20x64xf32>
    %c0_163 = arith.constant 0 : index
    %c0_164 = arith.constant 0 : index
    %357 = vector.load %arg27[%c0_163, %c0_164] : memref<1x64xf32, #tpu.memory_space<vmem>>, vector<1x64xf32>
    %358 = vector.broadcast %357 : vector<1x64xf32> to vector<20x64xf32>
    %359 = arith.addf %356, %358 : vector<20x64xf32>
    %cst_165 = arith.constant 0.000000e+00 : f32
    %360 = vector.broadcast %cst_165 : f32 to vector<20x64xf32>
    %361 = arith.maximumf %359, %360 : vector<20x64xf32>
    %c0_166 = arith.constant 0 : index
    %c0_167 = arith.constant 0 : index
    %362 = vector.load %arg28[%c0_166, %c0_167] : memref<64x128xbf16, #tpu.memory_space<vmem>>, vector<64x128xbf16>
    %363 = arith.truncf %361 : vector<20x64xf32> to vector<20x64xbf16>
    %cst_168 = arith.constant dense<0.000000e+00> : vector<20x128xf32>
    %364 = tpu.matmul %363, %362, %cst_168 {dimension_numbers = #tpu.dot_dimension_numbers<[1], [0], [0], [1], [0, 0, 1, 1], [], []>} : vector<20x64xbf16>, vector<64x128xbf16>, vector<20x128xf32> -> vector<20x128xf32>
    %c0_169 = arith.constant 0 : index
    %c0_170 = arith.constant 0 : index
    %365 = vector.load %arg29[%c0_169, %c0_170] : memref<1x128xf32, #tpu.memory_space<vmem>>, vector<1x128xf32>
    %366 = vector.broadcast %365 : vector<1x128xf32> to vector<20x128xf32>
    %367 = arith.addf %364, %366 : vector<20x128xf32>
    %368 = tpu.iota {dimensions = array<i32: 1>} : vector<1x128xi32>
    %c5_i32 = arith.constant 5 : i32
    %369 = vector.broadcast %c5_i32 : i32 to vector<1x128xi32>
    %370 = arith.cmpi slt, %368, %369 : vector<1x128xi32>
    %cst_171 = arith.constant -1.000000e+30 : f32
    %371 = vector.shape_cast %370 : vector<1x128xi1> to vector<1x128xi1>
    %372 = vector.broadcast %371 : vector<1x128xi1> to vector<20x128xi1>
    %373 = vector.broadcast %cst_171 : f32 to vector<20x128xf32>
    %374 = arith.select %372, %367, %373 : vector<20x128xi1>, vector<20x128xf32>
    %cst_172 = arith.constant dense<0xFF800000> : vector<20xf32>
    %375 = vector.multi_reduction <maximumf>, %374, %cst_172 [1] : vector<20x128xf32> to vector<20xf32>
    %376 = vector.shape_cast %375 : vector<20xf32> to vector<20x1xf32>
    %377 = vector.broadcast %376 : vector<20x1xf32> to vector<20x128xf32>
    %378 = arith.subf %374, %377 : vector<20x128xf32>
    %379 = math.exp %378 : vector<20x128xf32>
    %cst_173 = arith.constant dense<0.000000e+00> : vector<20xf32>
    %380 = vector.multi_reduction <add>, %379, %cst_173 [1] : vector<20x128xf32> to vector<20xf32>
    %381 = vector.shape_cast %380 : vector<20xf32> to vector<20x1xf32>
    %382 = math.log %381 : vector<20x1xf32>
    %383 = vector.broadcast %382 : vector<20x1xf32> to vector<20x128xf32>
    %384 = arith.subf %378, %383 : vector<20x128xf32>
    %c0_174 = arith.constant 0 : index
    %c0_175 = arith.constant 0 : index
    %385 = vector.load %arg30[%c0_174, %c0_175] : memref<20x128xf32, #tpu.memory_space<vmem>>, vector<20x128xf32>
    tpu.vector_store %arg30[%c0_174, %c0_175], %384 {strides = array<i32>} : memref<20x128xf32, #tpu.memory_space<vmem>>, vector<20x128xf32>,
    return
  }
  func.func @transform_0(%arg0: i32) -> (i32, i32) {
    %c0_i32 = arith.constant 0 : i32
    %c0_i32_0 = arith.constant 0 : i32
    %c0_i32_1 = arith.constant 0 : i32
    return %c0_i32, %c0_i32_0 : i32, i32
  }
  func.func @transform_1(%arg0: i32) -> (i32, i32) {
    %c0_i32 = arith.constant 0 : i32
    %c0_i32_0 = arith.constant 0 : i32
    %c0_i32_1 = arith.constant 0 : i32
    return %c0_i32, %c0_i32_0 : i32, i32
  }
  func.func @transform_2(%arg0: i32) -> (i32, i32) {
    %c0_i32 = arith.constant 0 : i32
    %c0_i32_0 = arith.constant 0 : i32
    %c0_i32_1 = arith.constant 0 : i32
    return %c0_i32, %c0_i32_0 : i32, i32
  }
  func.func @transform_3(%arg0: i32) -> (i32, i32) {
    %c0_i32 = arith.constant 0 : i32
    %c0_i32_0 = arith.constant 0 : i32
    %c0_i32_1 = arith.constant 0 : i32
    return %c0_i32, %c0_i32_0 : i32, i32
  }
  func.func @transform_4(%arg0: i32) -> (i32, i32) {
    %c0_i32 = arith.constant 0 : i32
    %c0_i32_0 = arith.constant 0 : i32
    %c0_i32_1 = arith.constant 0 : i32
    return %c0_i32, %c0_i32_0 : i32, i32
  }
  func.func @transform_5(%arg0: i32) -> (i32, i32) {
    %c0_i32 = arith.constant 0 : i32
    %c0_i32_0 = arith.constant 0 : i32
    %c0_i32_1 = arith.constant 0 : i32
    return %c0_i32, %c0_i32_0 : i32, i32
  }
  func.func @transform_6(%arg0: i32) -> (i32, i32) {
    %c0_i32 = arith.constant 0 : i32
    %c0_i32_0 = arith.constant 0 : i32
    %c0_i32_1 = arith.constant 0 : i32
    return %c0_i32, %c0_i32_0 : i32, i32
  }
  func.func @transform_7(%arg0: i32) -> (i32, i32) {
    %c0_i32 = arith.constant 0 : i32
    %c0_i32_0 = arith.constant 0 : i32
    %c0_i32_1 = arith.constant 0 : i32
    return %c0_i32, %c0_i32_0 : i32, i32
  }
  func.func @transform_8(%arg0: i32) -> (i32, i32) {
    %c0_i32 = arith.constant 0 : i32
    %c0_i32_0 = arith.constant 0 : i32
    %c0_i32_1 = arith.constant 0 : i32
    return %c0_i32, %c0_i32_0 : i32, i32
  }
  func.func @transform_9(%arg0: i32) -> (i32, i32) {
    %c0_i32 = arith.constant 0 : i32
    %c0_i32_0 = arith.constant 0 : i32
    %c0_i32_1 = arith.constant 0 : i32
    return %c0_i32, %c0_i32_0 : i32, i32
  }
  func.func @transform_10(%arg0: i32) -> (i32, i32) {
    %c0_i32 = arith.constant 0 : i32
    %c0_i32_0 = arith.constant 0 : i32
    %c0_i32_1 = arith.constant 0 : i32
    return %c0_i32, %c0_i32_0 : i32, i32
  }
  func.func @transform_11(%arg0: i32) -> (i32, i32, i32) {
    %c0_i32 = arith.constant 0 : i32
    %c0_i32_0 = arith.constant 0 : i32
    %c0_i32_1 = arith.constant 0 : i32
    %c0_i32_2 = arith.constant 0 : i32
    return %c0_i32, %c0_i32_0, %c0_i32_1 : i32, i32, i32
  }
  func.func @transform_12(%arg0: i32) -> (i32, i32, i32) {
    %c0_i32 = arith.constant 0 : i32
    %c0_i32_0 = arith.constant 0 : i32
    %c0_i32_1 = arith.constant 0 : i32
    %c0_i32_2 = arith.constant 0 : i32
    return %c0_i32, %c0_i32_0, %c0_i32_1 : i32, i32, i32
  }
  func.func @transform_13(%arg0: i32) -> (i32, i32, i32) {
    %c0_i32 = arith.constant 0 : i32
    %c0_i32_0 = arith.constant 0 : i32
    %c0_i32_1 = arith.constant 0 : i32
    %c0_i32_2 = arith.constant 0 : i32
    return %c0_i32, %c0_i32_0, %c0_i32_1 : i32, i32, i32
  }
  func.func @transform_14(%arg0: i32) -> (i32, i32, i32) {
    %c0_i32 = arith.constant 0 : i32
    %c0_i32_0 = arith.constant 0 : i32
    %c0_i32_1 = arith.constant 0 : i32
    %c0_i32_2 = arith.constant 0 : i32
    return %c0_i32, %c0_i32_0, %c0_i32_1 : i32, i32, i32
  }
  func.func @transform_15(%arg0: i32) -> (i32, i32, i32) {
    %c0_i32 = arith.constant 0 : i32
    %c0_i32_0 = arith.constant 0 : i32
    %c0_i32_1 = arith.constant 0 : i32
    %c0_i32_2 = arith.constant 0 : i32
    return %c0_i32, %c0_i32_0, %c0_i32_1 : i32, i32, i32
  }
  func.func @transform_16(%arg0: i32) -> (i32, i32, i32) {
    %c0_i32 = arith.constant 0 : i32
    %c0_i32_0 = arith.constant 0 : i32
    %c0_i32_1 = arith.constant 0 : i32
    %c0_i32_2 = arith.constant 0 : i32
    return %c0_i32, %c0_i32_0, %c0_i32_1 : i32, i32, i32
  }
  func.func @transform_17(%arg0: i32) -> (i32, i32, i32) {
    %c0_i32 = arith.constant 0 : i32
    %c0_i32_0 = arith.constant 0 : i32
    %c0_i32_1 = arith.constant 0 : i32
    %c0_i32_2 = arith.constant 0 : i32
    return %c0_i32, %c0_i32_0, %c0_i32_1 : i32, i32, i32
  }
  func.func @transform_18(%arg0: i32) -> (i32, i32, i32) {
    %c0_i32 = arith.constant 0 : i32
    %c0_i32_0 = arith.constant 0 : i32
    %c0_i32_1 = arith.constant 0 : i32
    %c0_i32_2 = arith.constant 0 : i32
    return %c0_i32, %c0_i32_0, %c0_i32_1 : i32, i32, i32
  }
  func.func @transform_19(%arg0: i32) -> (i32, i32, i32) {
    %c0_i32 = arith.constant 0 : i32
    %c0_i32_0 = arith.constant 0 : i32
    %c0_i32_1 = arith.constant 0 : i32
    %c0_i32_2 = arith.constant 0 : i32
    return %c0_i32, %c0_i32_0, %c0_i32_1 : i32, i32, i32
  }
  func.func @transform_20(%arg0: i32) -> (i32, i32, i32) {
    %c0_i32 = arith.constant 0 : i32
    %c0_i32_0 = arith.constant 0 : i32
    %c0_i32_1 = arith.constant 0 : i32
    %c0_i32_2 = arith.constant 0 : i32
    return %c0_i32, %c0_i32_0, %c0_i32_1 : i32, i32, i32
  }
  func.func @transform_21(%arg0: i32) -> (i32, i32, i32) {
    %c0_i32 = arith.constant 0 : i32
    %c0_i32_0 = arith.constant 0 : i32
    %c0_i32_1 = arith.constant 0 : i32
    %c0_i32_2 = arith.constant 0 : i32
    return %c0_i32, %c0_i32_0, %c0_i32_1 : i32, i32, i32
  }
  func.func @transform_22(%arg0: i32) -> (i32, i32, i32) {
    %c0_i32 = arith.constant 0 : i32
    %c0_i32_0 = arith.constant 0 : i32
    %c0_i32_1 = arith.constant 0 : i32
    %c0_i32_2 = arith.constant 0 : i32
    return %c0_i32, %c0_i32_0, %c0_i32_1 : i32, i32, i32
  }
  func.func @transform_23(%arg0: i32) -> (i32, i32) {
    %c0_i32 = arith.constant 0 : i32
    %c0_i32_0 = arith.constant 0 : i32
    %c0_i32_1 = arith.constant 0 : i32
    return %c0_i32, %c0_i32_0 : i32, i32
  }
  func.func @transform_24(%arg0: i32) -> (i32, i32) {
    %c0_i32 = arith.constant 0 : i32
    %c0_i32_0 = arith.constant 0 : i32
    %c0_i32_1 = arith.constant 0 : i32
    return %c0_i32, %c0_i32_0 : i32, i32
  }
  func.func @transform_25(%arg0: i32) -> (i32, i32) {
    %c0_i32 = arith.constant 0 : i32
    %c0_i32_0 = arith.constant 0 : i32
    %c0_i32_1 = arith.constant 0 : i32
    return %c0_i32, %c0_i32_0 : i32, i32
  }
  func.func @transform_26(%arg0: i32) -> (i32, i32) {
    %c0_i32 = arith.constant 0 : i32
    %c0_i32_0 = arith.constant 0 : i32
    %c0_i32_1 = arith.constant 0 : i32
    return %c0_i32, %c0_i32_0 : i32, i32
  }
  func.func @transform_27(%arg0: i32) -> (i32, i32) {
    %c0_i32 = arith.constant 0 : i32
    %c0_i32_0 = arith.constant 0 : i32
    %c0_i32_1 = arith.constant 0 : i32
    return %c0_i32, %c0_i32_0 : i32, i32
  }
  func.func @transform_28(%arg0: i32) -> (i32, i32) {
    %c0_i32 = arith.constant 0 : i32
    %c0_i32_0 = arith.constant 0 : i32
    %c0_i32_1 = arith.constant 0 : i32
    return %c0_i32, %c0_i32_0 : i32, i32
  }
  func.func @transform_29(%arg0: i32) -> (i32, i32) {
    %c0_i32 = arith.constant 0 : i32
    %c0_i32_0 = arith.constant 0 : i32
    %c0_i32_1 = arith.constant 0 : i32
    return %c0_i32, %c0_i32_0 : i32, i32
  }
}

</mosaic_0001>

<llo_original>
// kernel: transformer_model_forward.1
$region0: #{transformer_model_forward.1}
  #allocation0 [shape = 'u32[]', space=smem, size = 0x4, offset = 0x4, fixed_abs, tag = 'smem constant byte address 0x4 - core index']
  #allocation1 [shape = 'u32[144,128]{1,0:T(1,128)}', space=vmem, size = 0x12000, scoped, tag = 'internal scratch']
  %s0 = inlined_call_operand.smem [shape: u32[30], index: -1, kind: input, shape index: {}]
  %s1 = sld [smem:[%s0]]
  %s2 = scalar_lea.smem %s0, 1
  %s3 = sld [smem:[%s2]]
  %s4 = scalar_lea.smem %s0, 2
  %s5 = sld [smem:[%s4]]
  %s6 = scalar_lea.smem %s0, 3
  %s7 = sld [smem:[%s6]]
  %s8 = scalar_lea.smem %s0, 4
  %s9 = sld [smem:[%s8]]
  %s10 = scalar_lea.smem %s0, 5
  %s11 = sld [smem:[%s10]]
  %s12 = scalar_lea.smem %s0, 6
  %s13 = sld [smem:[%s12]]
  %s14 = scalar_lea.smem %s0, 7
  %s15 = sld [smem:[%s14]]
  %s16 = scalar_lea.smem %s0, 8
  %s17 = sld [smem:[%s16]]
  %s18 = scalar_lea.smem %s0, 9
  %s19 = sld [smem:[%s18]]
  %s20 = scalar_lea.smem %s0, 10
  %s21 = sld [smem:[%s20]]
  %s22 = scalar_lea.smem %s0, 11
  %s23 = sld [smem:[%s22]]
  %s24 = scalar_lea.smem %s0, 12
  %s25 = sld [smem:[%s24]]
  %s26 = scalar_lea.smem %s0, 13
  %s27 = sld [smem:[%s26]]
  %s28 = scalar_lea.smem %s0, 14
  %s29 = sld [smem:[%s28]]
  %s30 = scalar_lea.smem %s0, 15
  %s31 = sld [smem:[%s30]]
  %s32 = scalar_lea.smem %s0, 16
  %s33 = sld [smem:[%s32]]
  %s34 = scalar_lea.smem %s0, 17
  %s35 = sld [smem:[%s34]]
  %s36 = scalar_lea.smem %s0, 18
  %s37 = sld [smem:[%s36]]
  %s38 = scalar_lea.smem %s0, 19
  %s39 = sld [smem:[%s38]]
  %s40 = scalar_lea.smem %s0, 20
  %s41 = sld [smem:[%s40]]
  %s42 = scalar_lea.smem %s0, 21
  %s43 = sld [smem:[%s42]]
  %s44 = scalar_lea.smem %s0, 22
  %s45 = sld [smem:[%s44]]
  %s46 = scalar_lea.smem %s0, 23
  %s47 = sld [smem:[%s46]]
  %s48 = scalar_lea.smem %s0, 24
  %s49 = sld [smem:[%s48]]
  %s50 = scalar_lea.smem %s0, 25
  %s51 = sld [smem:[%s50]]
  %s52 = scalar_lea.smem %s0, 26
  %s53 = sld [smem:[%s52]]
  %s54 = scalar_lea.smem %s0, 27
  %s55 = sld [smem:[%s54]]
  %s56 = scalar_lea.smem %s0, 28
  %s57 = sld [smem:[%s56]]
  %s58 = scalar_lea.smem %s0, 29
  %s59 = sld [smem:[%s58]]
  %s60 = sld [smem:[#allocation0]]
  $region126: #{transformer_model_forward.1} parent=0
    _
  %s62 = ssub.s32 1, %s60
  %s63 = scalar_select 0, %s62, %s60
  // Predicated region
  $region2: #{transformer_model_forward.1} parent=0 // pred_check
    _
  $region3: #{transformer_model_forward.1} parent=0 // pred_check_branch
    %65 = sbr.rel (0) target = $region5
  $region4: #{transformer_model_forward.1} parent=0 // pred_region
    _
  $region5: #{transformer_model_forward.1} parent=0 // pred_fallthru
    _
  // Predicated region
  $region6: #{transformer_model_forward.1} parent=0 // pred_check
    _
  $region7: #{transformer_model_forward.1} parent=0 // pred_check_branch
    %67 = sbr.rel (0) target = $region9
  $region8: #{transformer_model_forward.1} parent=0 // pred_region
    _
  $region9: #{transformer_model_forward.1} parent=0 // pred_fallthru
    _
  // Predicated region
  $region10: #{transformer_model_forward.1} parent=0 // pred_check
    _
  $region11: #{transformer_model_forward.1} parent=0 // pred_check_branch
    %69 = sbr.rel (0) target = $region13
  $region12: #{transformer_model_forward.1} parent=0 // pred_region
    _
  $region13: #{transformer_model_forward.1} parent=0 // pred_fallthru
    _
  // Predicated region
  $region14: #{transformer_model_forward.1} parent=0 // pred_check
    _
  $region15: #{transformer_model_forward.1} parent=0 // pred_check_branch
    %71 = sbr.rel (0) target = $region17
  $region16: #{transformer_model_forward.1} parent=0 // pred_region
    _
  $region17: #{transformer_model_forward.1} parent=0 // pred_fallthru
    _
  // Predicated region
  $region18: #{transformer_model_forward.1} parent=0 // pred_check
    _
  $region19: #{transformer_model_forward.1} parent=0 // pred_check_branch
    %73 = sbr.rel (0) target = $region21
  $region20: #{transformer_model_forward.1} parent=0 // pred_region
    _
  $region21: #{transformer_model_forward.1} parent=0 // pred_fallthru
    _
  // Predicated region
  $region22: #{transformer_model_forward.1} parent=0 // pred_check
    _
  $region23: #{transformer_model_forward.1} parent=0 // pred_check_branch
    %75 = sbr.rel (0) target = $region25
  $region24: #{transformer_model_forward.1} parent=0 // pred_region
    _
  $region25: #{transformer_model_forward.1} parent=0 // pred_fallthru
    _
  // Predicated region
  $region26: #{transformer_model_forward.1} parent=0 // pred_check
    _
  $region27: #{transformer_model_forward.1} parent=0 // pred_check_branch
    %77 = sbr.rel (0) target = $region29
  $region28: #{transformer_model_forward.1} parent=0 // pred_region
    _
  $region29: #{transformer_model_forward.1} parent=0 // pred_fallthru
    _
  // Predicated region
  $region30: #{transformer_model_forward.1} parent=0 // pred_check
    _
  $region31: #{transformer_model_forward.1} parent=0 // pred_check_branch
    %79 = sbr.rel (0) target = $region33
  $region32: #{transformer_model_forward.1} parent=0 // pred_region
    _
  $region33: #{transformer_model_forward.1} parent=0 // pred_fallthru
    _
  // Predicated region
  $region34: #{transformer_model_forward.1} parent=0 // pred_check
    _
  $region35: #{transformer_model_forward.1} parent=0 // pred_check_branch
    %81 = sbr.rel (0) target = $region37
  $region36: #{transformer_model_forward.1} parent=0 // pred_region
    _
  $region37: #{transformer_model_forward.1} parent=0 // pred_fallthru
    _
  // Predicated region
  $region38: #{transformer_model_forward.1} parent=0 // pred_check
    _
  $region39: #{transformer_model_forward.1} parent=0 // pred_check_branch
    %83 = sbr.rel (0) target = $region41
  $region40: #{transformer_model_forward.1} parent=0 // pred_region
    _
  $region41: #{transformer_model_forward.1} parent=0 // pred_fallthru
    _
  // Predicated region
  $region42: #{transformer_model_forward.1} parent=0 // pred_check
    _
  $region43: #{transformer_model_forward.1} parent=0 // pred_check_branch
    %85 = sbr.rel (0) target = $region45
  $region44: #{transformer_model_forward.1} parent=0 // pred_region
    _
  $region45: #{transformer_model_forward.1} parent=0 // pred_fallthru
    _
  // Predicated region
  $region46: #{transformer_model_forward.1} parent=0 // pred_check
    _
  $region47: #{transformer_model_forward.1} parent=0 // pred_check_branch
    %87 = sbr.rel (0) target = $region49
  $region48: #{transformer_model_forward.1} parent=0 // pred_region
    _
  $region49: #{transformer_model_forward.1} parent=0 // pred_fallthru
    _
  // Predicated region
  $region50: #{transformer_model_forward.1} parent=0 // pred_check
    _
  $region51: #{transformer_model_forward.1} parent=0 // pred_check_branch
    %89 = sbr.rel (0) target = $region53
  $region52: #{transformer_model_forward.1} parent=0 // pred_region
    _
  $region53: #{transformer_model_forward.1} parent=0 // pred_fallthru
    _
  // Predicated region
  $region54: #{transformer_model_forward.1} parent=0 // pred_check
    _
  $region55: #{transformer_model_forward.1} parent=0 // pred_check_branch
    %91 = sbr.rel (0) target = $region57
  $region56: #{transformer_model_forward.1} parent=0 // pred_region
    _
  $region57: #{transformer_model_forward.1} parent=0 // pred_fallthru
    _
  // Predicated region
  $region58: #{transformer_model_forward.1} parent=0 // pred_check
    _
  $region59: #{transformer_model_forward.1} parent=0 // pred_check_branch
    %93 = sbr.rel (0) target = $region61
  $region60: #{transformer_model_forward.1} parent=0 // pred_region
    _
  $region61: #{transformer_model_forward.1} parent=0 // pred_fallthru
    _
  // Predicated region
  $region62: #{transformer_model_forward.1} parent=0 // pred_check
    _
  $region63: #{transformer_model_forward.1} parent=0 // pred_check_branch
    %95 = sbr.rel (0) target = $region65
  $region64: #{transformer_model_forward.1} parent=0 // pred_region
    _
  $region65: #{transformer_model_forward.1} parent=0 // pred_fallthru
    _
  // Predicated region
  $region66: #{transformer_model_forward.1} parent=0 // pred_check
    _
  $region67: #{transformer_model_forward.1} parent=0 // pred_check_branch
    %97 = sbr.rel (0) target = $region69
  $region68: #{transformer_model_forward.1} parent=0 // pred_region
    _
  $region69: #{transformer_model_forward.1} parent=0 // pred_fallthru
    _
  // Predicated region
  $region70: #{transformer_model_forward.1} parent=0 // pred_check
    _
  $region71: #{transformer_model_forward.1} parent=0 // pred_check_branch
    %99 = sbr.rel (0) target = $region73
  $region72: #{transformer_model_forward.1} parent=0 // pred_region
    _
  $region73: #{transformer_model_forward.1} parent=0 // pred_fallthru
    _
  // Predicated region
  $region74: #{transformer_model_forward.1} parent=0 // pred_check
    _
  $region75: #{transformer_model_forward.1} parent=0 // pred_check_branch
    %101 = sbr.rel (0) target = $region77
  $region76: #{transformer_model_forward.1} parent=0 // pred_region
    _
  $region77: #{transformer_model_forward.1} parent=0 // pred_fallthru
    _
  // Predicated region
  $region78: #{transformer_model_forward.1} parent=0 // pred_check
    _
  $region79: #{transformer_model_forward.1} parent=0 // pred_check_branch
    %103 = sbr.rel (0) target = $region81
  $region80: #{transformer_model_forward.1} parent=0 // pred_region
    _
  $region81: #{transformer_model_forward.1} parent=0 // pred_fallthru
    _
  // Predicated region
  $region82: #{transformer_model_forward.1} parent=0 // pred_check
    _
  $region83: #{transformer_model_forward.1} parent=0 // pred_check_branch
    %105 = sbr.rel (0) target = $region85
  $region84: #{transformer_model_forward.1} parent=0 // pred_region
    _
  $region85: #{transformer_model_forward.1} parent=0 // pred_fallthru
    _
  // Predicated region
  $region86: #{transformer_model_forward.1} parent=0 // pred_check
    _
  $region87: #{transformer_model_forward.1} parent=0 // pred_check_branch
    %107 = sbr.rel (0) target = $region89
  $region88: #{transformer_model_forward.1} parent=0 // pred_region
    _
  $region89: #{transformer_model_forward.1} parent=0 // pred_fallthru
    _
  // Predicated region
  $region90: #{transformer_model_forward.1} parent=0 // pred_check
    _
  $region91: #{transformer_model_forward.1} parent=0 // pred_check_branch
    %109 = sbr.rel (0) target = $region93
  $region92: #{transformer_model_forward.1} parent=0 // pred_region
    _
  $region93: #{transformer_model_forward.1} parent=0 // pred_fallthru
    _
  // Predicated region
  $region94: #{transformer_model_forward.1} parent=0 // pred_check
    _
  $region95: #{transformer_model_forward.1} parent=0 // pred_check_branch
    %111 = sbr.rel (0) target = $region97
  $region96: #{transformer_model_forward.1} parent=0 // pred_region
    _
  $region97: #{transformer_model_forward.1} parent=0 // pred_fallthru
    _
  // Predicated region
  $region98: #{transformer_model_forward.1} parent=0 // pred_check
    _
  $region99: #{transformer_model_forward.1} parent=0 // pred_check_branch
    %113 = sbr.rel (0) target = $region101
  $region100: #{transformer_model_forward.1} parent=0 // pred_region
    _
  $region101: #{transformer_model_forward.1} parent=0 // pred_fallthru
    _
  // Predicated region
  $region102: #{transformer_model_forward.1} parent=0 // pred_check
    _
  $region103: #{transformer_model_forward.1} parent=0 // pred_check_branch
    %115 = sbr.rel (0) target = $region105
  $region104: #{transformer_model_forward.1} parent=0 // pred_region
    _
  $region105: #{transformer_model_forward.1} parent=0 // pred_fallthru
    _
  // Predicated region
  $region106: #{transformer_model_forward.1} parent=0 // pred_check
    _
  $region107: #{transformer_model_forward.1} parent=0 // pred_check_branch
    %117 = sbr.rel (0) target = $region109
  $region108: #{transformer_model_forward.1} parent=0 // pred_region
    _
  $region109: #{transformer_model_forward.1} parent=0 // pred_fallthru
    _
  // Predicated region
  $region110: #{transformer_model_forward.1} parent=0 // pred_check
    _
  $region111: #{transformer_model_forward.1} parent=0 // pred_check_branch
    %119 = sbr.rel (0) target = $region113
  $region112: #{transformer_model_forward.1} parent=0 // pred_region
    _
  $region113: #{transformer_model_forward.1} parent=0 // pred_fallthru
    _
  // Predicated region
  $region114: #{transformer_model_forward.1} parent=0 // pred_check
    _
  $region115: #{transformer_model_forward.1} parent=0 // pred_check_branch
    %121 = sbr.rel (0) target = $region117
  $region116: #{transformer_model_forward.1} parent=0 // pred_region
    _
  $region117: #{transformer_model_forward.1} parent=0 // pred_fallthru
    _
  %v123 = vlaneseq
  %v124 = vshrl.u32 %v123, 7
  %v125 = vadd.s32 %v124, 8
  %v126 = vadd.s32 %v124, 16
  %vm127 = vcmp.eq.s32.totalorder %v124, 0
  %vm128 = vcmp.eq.s32.totalorder %v125, 0
  %vm129 = vcmp.eq.s32.totalorder %v126, 0
  %vm130 = vcmp.eq.s32.totalorder %v124, 9
  %vm131 = vcmp.eq.s32.totalorder %v125, 9
  %vm132 = vcmp.eq.s32.totalorder %v126, 9
  %vm133 = vcmp.eq.s32.totalorder %v124, 10
  %vm134 = vcmp.eq.s32.totalorder %v125, 10
  %vm135 = vcmp.eq.s32.totalorder %v126, 10
  %vm136 = vmor %vm127, %vm133
  %vm137 = vmor %vm128, %vm134
  %vm138 = vmor %vm129, %vm135
  %vm139 = vcmp.eq.s32.totalorder %v124, 19
  %vm140 = vcmp.eq.s32.totalorder %v125, 19
  %vm141 = vcmp.eq.s32.totalorder %v126, 19
  %vm142 = vmor %vm130, %vm139
  %vm143 = vmor %vm131, %vm140
  %vm144 = vmor %vm132, %vm141
  %v145 = vsel %vm136, 0.0, 1.0
  %v146 = vsel %vm137, 0.0, 1.0
  %v147 = vsel %vm138, 0.0, 1.0
  %v148 = vsel %vm142, 0.0, 1.0
  %v149 = vsel %vm143, 0.0, 1.0
  %v150 = vsel %vm144, 0.0, 1.0
  %v151 = vld [vmem:[%s1] sm:$0xf]
  %v152 = vld [vmem:[%s1 + $0x4] sm:$0xf]
  %v153 = vld [vmem:[%s1 + $0x8] sm:$0xf]
  %v154 = vld [vmem:[%s1 + $0xc] sm:$0xf]
  %v155 = vld [vmem:[%s1 + $0x10] sm:$0xf]
  %v156 = vld [vmem:[%s1 + $0x14] sm:$0xf]
  %v157 = vld [vmem:[%s1 + $0x18] sm:$0xf]
  %v158 = vld [vmem:[%s1 + $0x1c] sm:$0xf]
  %v159 = vld [vmem:[%s1 + $0x20] sm:$0xf]
  %v160 = vld [vmem:[%s1 + $0x24] sm:$0xf]
  %v161 = vld [vmem:[%s1 + $0x28] sm:$0xf]
  %v162 = vld [vmem:[%s1 + $0x2c] sm:$0xf]
  %v163 = vld [vmem:[%s1 + $0x30] sm:$0xf]
  %v164 = vld [vmem:[%s1 + $0x34] sm:$0xf]
  %v165 = vld [vmem:[%s1 + $0x38] sm:$0xf]
  %v166 = vld [vmem:[%s3] sm:$0xf]
  %v167 = vld [vmem:[%s3 + $0x4] sm:$0xf]
  %v168 = vld [vmem:[%s3 + $0x8] sm:$0x3]
  %v169 = vld [vmem:[%s5] sm:$0x1]
  %v171 = vlaneseq
  %v172 = vshrl.u32 %v171, 7
  %v173 = vsub.s32 0, %v172
  %v174 = vrot.slane %v169, %v173
  %v191 = vunpack.c.l.b16 %v151
  %v192 = vunpack.c.l.b16 %v152
  %v193 = vunpack.c.l.b16 %v153
  %v194 = vunpack.c.l.b16 %v154
  %v195 = vunpack.c.l.b16 %v155
  %v196 = vunpack.c.l.b16 %v156
  %v197 = vunpack.c.l.b16 %v157
  %v198 = vunpack.c.l.b16 %v158
  %v199 = vunpack.c.l.b16 %v159
  %v200 = vunpack.c.l.b16 %v160
  %v201 = vunpack.c.l.b16 %v161
  %v202 = vunpack.c.l.b16 %v162
  %v203 = vunpack.c.l.b16 %v163
  %v204 = vunpack.c.l.b16 %v164
  %v205 = vunpack.c.l.b16 %v165
  %v206 = vpack.c.b16 %v192, %v191
  %v207 = vpack.c.b16 %v194, %v193
  %v208 = vpack.c.b16 %v196, %v195
  %v209 = vpack.c.b16 %v198, %v197
  %v210 = vpack.c.b16 %v200, %v199
  %v211 = vpack.c.b16 %v202, %v201
  %v212 = vpack.c.b16 %v204, %v203
  %v213 = vpack.c.b16 %v205, %v205
  %v217 = vunpack.c.l.b16 %v166
  %v218 = vunpack.c.l.b16 %v167
  %v219 = vunpack.c.l.b16 %v168
  %v220 = vpack.c.b16 %v218, %v217
  %v221 = vpack.c.b16 %v219, %v219
  %vm223 = vcmask 162816
  %v225 = vsel %vm223, %v206, 0
  %v228 = vsel %vm223, %v207, 0
  %v231 = vsel %vm223, %v208, 0
  %v234 = vsel %vm223, %v209, 0
  %v237 = vsel %vm223, %v210, 0
  %v240 = vsel %vm223, %v211, 0
  %v243 = vsel %vm223, %v212, 0
  %v246 = vsel %vm223, %v213, 0
  %vm248 = vcmask 1041408
  %v250 = vsel %vm248, %v221, 0
  %252 = vmatprep.subr.bf16.mxu0 0
  %253 = vmatpush1.bf16.msra.mxu0 0
  %254 = vmatprep.subr.bf16.mxu0 0
  %255 = vmatpush1.bf16.msra.mxu0 0
  %256 = vmatprep.subr.bf16.mxu0 0
  %257 = vmatpush1.bf16.msra.mxu0 0
  %258 = vmatprep.subr.bf16.mxu0 0
  %259 = vmatpush1.bf16.msra.mxu0 0
  %260 = vmatprep.subr.bf16.mxu0 0
  %261 = vmatpush1.bf16.msra.mxu0 0
  %262 = vmatprep.subr.bf16.mxu0 0
  %263 = vmatpush1.bf16.msra.mxu0 0
  %264 = vmatprep.subr.bf16.mxu0 0
  %265 = vmatpush1.bf16.msra.mxu0 %v250
  %266 = vmatprep.subr.bf16.mxu0 0
  %267 = vmatpush1.bf16.msra.mxu0 %v220
  %268 = vmatprep.subr.bf16.mxu0 0
  %269 = vmatpush2.bf16.msra.mxu0 0
  %270 = vmatprep.subr.bf16.mxu0 0
  %271 = vmatpush2.bf16.msra.mxu0 0
  %272 = vmatprep.subr.bf16.mxu0 0
  %273 = vmatpush2.bf16.msra.mxu0 0
  %274 = vmatprep.subr.bf16.mxu0 0
  %275 = vmatpush2.bf16.msra.mxu0 0
  %276 = vmatprep.subr.bf16.mxu0 0
  %277 = vmatpush2.bf16.msra.mxu0 0
  %278 = vmatprep.subr.bf16.mxu0 0
  %279 = vmatpush2.bf16.msra.mxu0 0
  %280 = vmatprep.subr.bf16.mxu0 0
  %281 = vmatpush2.bf16.msra.mxu0 0
  %282 = vmatprep.subr.bf16.mxu0 0
  %283 = vmatpush2.bf16.msra.mxu0 0
  %284 = vmatprep.mubr.bf16.mxu0 0
  %285 = vmatmul.mubr.bf16.gmra.mxu0 %v225
  %v286 = vpop.f32.mrf.mxu0
  %v287 = vadd.f32 %v174, %v286
  %v288 = vpop.f32.mrf.mxu0
  %v289 = vpop.f32.mrf.mxu0
  %v290 = vadd.f32 %v174, %v289
  %v291 = vpop.f32.mrf.mxu0
  %292 = vmatprep.mubr.bf16.mxu0 0
  %293 = vmatmul.mubr.bf16.gmra.mxu0 %v228
  %v294 = vpop.f32.mrf.mxu0
  %v295 = vadd.f32 %v174, %v294
  %v296 = vpop.f32.mrf.mxu0
  %v297 = vpop.f32.mrf.mxu0
  %v298 = vadd.f32 %v174, %v297
  %v299 = vpop.f32.mrf.mxu0
  %300 = vmatprep.mubr.bf16.mxu0 0
  %301 = vmatmul.mubr.bf16.gmra.mxu0 %v231
  %v302 = vpop.f32.mrf.mxu0
  %v303 = vadd.f32 %v174, %v302
  %v304 = vpop.f32.mrf.mxu0
  %v305 = vpop.f32.mrf.mxu0
  %v306 = vadd.f32 %v174, %v305
  %v307 = vpop.f32.mrf.mxu0
  %308 = vmatprep.mubr.bf16.mxu0 0
  %309 = vmatmul.mubr.bf16.gmra.mxu0 %v234
  %v310 = vpop.f32.mrf.mxu0
  %v311 = vadd.f32 %v174, %v310
  %v312 = vpop.f32.mrf.mxu0
  %v313 = vpop.f32.mrf.mxu0
  %v314 = vadd.f32 %v174, %v313
  %v315 = vpop.f32.mrf.mxu0
  %316 = vmatprep.mubr.bf16.mxu0 0
  %317 = vmatmul.mubr.bf16.gmra.mxu0 %v237
  %v318 = vpop.f32.mrf.mxu0
  %v319 = vadd.f32 %v174, %v318
  %v320 = vpop.f32.mrf.mxu0
  %v321 = vpop.f32.mrf.mxu0
  %v322 = vadd.f32 %v174, %v321
  %v323 = vpop.f32.mrf.mxu0
  %324 = vmatprep.mubr.bf16.mxu0 0
  %325 = vmatmul.mubr.bf16.gmra.mxu0 %v240
  %v326 = vpop.f32.mrf.mxu0
  %v327 = vadd.f32 %v174, %v326
  %v328 = vpop.f32.mrf.mxu0
  %v329 = vpop.f32.mrf.mxu0
  %v330 = vadd.f32 %v174, %v329
  %v331 = vpop.f32.mrf.mxu0
  %332 = vmatprep.mubr.bf16.mxu0 0
  %333 = vmatmul.mubr.bf16.gmra.mxu0 %v243
  %v334 = vpop.f32.mrf.mxu0
  %v335 = vadd.f32 %v174, %v334
  %v336 = vpop.f32.mrf.mxu0
  %v337 = vpop.f32.mrf.mxu0
  %v338 = vadd.f32 %v174, %v337
  %v339 = vpop.f32.mrf.mxu0
  %340 = vmatprep.mubr.bf16.mxu0 0
  %341 = vmatmul.mubr.bf16.gmra.mxu0 %v246
  %v342 = vpop.f32.mrf.mxu0
  %v343 = vadd.f32 %v174, %v342
  %v344 = vpop.f32.mrf.mxu0
  %v345 = vpop.f32.mrf.mxu0
  %v346 = vpop.f32.mrf.mxu0
  %347 = vdwg.mxu0
  %v348 = vmax.f32 %v287, 0.0
  %v349 = vmax.f32 %v290, 0.0
  %v350 = vmax.f32 %v295, 0.0
  %v351 = vmax.f32 %v298, 0.0
  %v352 = vmax.f32 %v303, 0.0
  %v353 = vmax.f32 %v306, 0.0
  %v354 = vmax.f32 %v311, 0.0
  %v355 = vmax.f32 %v314, 0.0
  %v356 = vmax.f32 %v319, 0.0
  %v357 = vmax.f32 %v322, 0.0
  %v358 = vmax.f32 %v327, 0.0
  %v359 = vmax.f32 %v330, 0.0
  %v360 = vmax.f32 %v335, 0.0
  %v361 = vmax.f32 %v338, 0.0
  %v362 = vmax.f32 %v343, 0.0
  %vm366 = vcmask 1044480
  %v367 = vrot.slane %v360, 3
  %v368 = vrot.slane %v361, 3
  %v369 = vsel %vm366, %v367, %v368
  %v370 = vrot.slane %v362, 3
  %v371 = vsel %vm366, %v368, %v370
  %vm375 = vcmask 1040384
  %v376 = vsel %vm375, 0.0, %v369
  %v377 = vmul.f32 %v376, %v145
  %v378 = vmul.f32 %v371, %v146
  %v379 = vmul.f32 %v370, %v147
  %383 = vrot.lane.b32.xlu0 %v348, 16
  %v384 = vpop.permute.xlu0 %383
  %385 = vrot.lane.b32.xlu0 %v349, 16
  %v386 = vpop.permute.xlu0 %385
  %387 = vrot.lane.b32.xlu0 %v350, 16
  %v388 = vpop.permute.xlu0 %387
  %vm394 = vcmask 1043456
  %v395 = vrot.slane %v350, 4
  %v396 = vrot.slane %v351, 4
  %v397 = vsel %vm394, %v395, %v396
  %v398 = vrot.slane %v352, 4
  %v399 = vsel %vm394, %v396, %v398
  %400 = vrot.lane.b32.xlu0 %v397, 32
  %v401 = vpop.permute.xlu0 %400
  %402 = vrot.lane.b32.xlu0 %v399, 32
  %v403 = vpop.permute.xlu0 %402
  %404 = vrot.lane.b32.xlu0 %v398, 32
  %v405 = vpop.permute.xlu0 %404
  %vm409 = vcmask 130048
  %v410 = vsel %vm409, %v377, %v384
  %v411 = vsel %vm409, %v378, %v386
  %v412 = vsel %vm409, %v379, %v388
  %vm413 = vcmask 261120
  %v414 = vsel %vm413, %v410, %v401
  %v415 = vsel %vm413, %v411, %v403
  %v416 = vsel %vm413, %v412, %v405
  %v420 = vrot.slane %v355, 4
  %v421 = vrot.slane %v356, 4
  %v422 = vsel %vm394, %v420, %v421
  %v423 = vrot.slane %v357, 4
  %v424 = vsel %vm394, %v421, %v423
  %425 = vrot.lane.b32.xlu0 %v422, 16
  %v426 = vpop.permute.xlu0 %425
  %427 = vrot.lane.b32.xlu0 %v424, 16
  %v428 = vpop.permute.xlu0 %427
  %429 = vrot.lane.b32.xlu0 %v423, 16
  %v430 = vpop.permute.xlu0 %429
  %436 = vrot.lane.b32.xlu0 %v358, 32
  %v437 = vpop.permute.xlu0 %436
  %438 = vrot.lane.b32.xlu0 %v359, 32
  %v439 = vpop.permute.xlu0 %438
  %440 = vrot.lane.b32.xlu0 %v360, 32
  %v441 = vpop.permute.xlu0 %440
  %v445 = vsel %vm409, %v353, %v426
  %v446 = vsel %vm409, %v354, %v428
  %v447 = vsel %vm409, %v355, %v430
  %v448 = vsel %vm413, %v445, %v437
  %v449 = vsel %vm413, %v446, %v439
  %v450 = vsel %vm413, %v447, %v441
  %v451 = vld [vmem:[%s7] sm:$0xf]
  %v452 = vld [vmem:[%s7 + $0x4] sm:$0xf]
  %v453 = vld [vmem:[%s7 + $0x8] sm:$0xf]
  %v454 = vld [vmem:[%s7 + $0xc] sm:$0xf]
  %v455 = vld [vmem:[%s7 + $0x10] sm:$0xf]
  %v456 = vld [vmem:[%s7 + $0x14] sm:$0xf]
  %v457 = vpack.c.bf16 %v415, %v414
  %v458 = vpack.c.bf16 %v416, %v416
  %v459 = vld [vmem:[%s9] sm:$0x1]
  %v461 = vlaneseq
  %v462 = vshrl.u32 %v461, 7
  %v463 = vsub.s32 0, %v462
  %v464 = vrot.slane %v459, %v463
  %v472 = vunpack.c.l.b16 %v451
  %v473 = vunpack.c.l.b16 %v452
  %v474 = vunpack.c.l.b16 %v453
  %v475 = vunpack.c.l.b16 %v454
  %v476 = vunpack.c.l.b16 %v455
  %v477 = vunpack.c.l.b16 %v456
  %v478 = vpack.c.b16 %v473, %v472
  %v479 = vpack.c.b16 %v475, %v474
  %v480 = vpack.c.b16 %v477, %v476
  %vm484 = vcmask 392192
  %v486 = vsel %vm484, %v457, 0
  %v489 = vsel %vm484, %v458, 0
  %491 = vmatprep.subr.bf16.mxu0 0
  %492 = vmatpush1.bf16.msra.mxu0 0
  %493 = vmatprep.subr.bf16.mxu0 0
  %494 = vmatpush1.bf16.msra.mxu0 0
  %495 = vmatprep.subr.bf16.mxu0 0
  %496 = vmatpush1.bf16.msra.mxu0 0
  %497 = vmatprep.subr.bf16.mxu0 0
  %498 = vmatpush1.bf16.msra.mxu0 0
  %499 = vmatprep.subr.bf16.mxu0 0
  %500 = vmatpush1.bf16.msra.mxu0 0
  %501 = vmatprep.subr.bf16.mxu0 0
  %502 = vmatpush1.bf16.msra.mxu0 %v480
  %503 = vmatprep.subr.bf16.mxu0 0
  %504 = vmatpush1.bf16.msra.mxu0 %v479
  %505 = vmatprep.subr.bf16.mxu0 0
  %506 = vmatpush1.bf16.msra.mxu0 %v478
  %507 = vmatprep.subr.bf16.mxu0 0
  %508 = vmatpush2.bf16.msra.mxu0 0
  %509 = vmatprep.subr.bf16.mxu0 0
  %510 = vmatpush2.bf16.msra.mxu0 0
  %511 = vmatprep.subr.bf16.mxu0 0
  %512 = vmatpush2.bf16.msra.mxu0 0
  %513 = vmatprep.subr.bf16.mxu0 0
  %514 = vmatpush2.bf16.msra.mxu0 0
  %515 = vmatprep.subr.bf16.mxu0 0
  %516 = vmatpush2.bf16.msra.mxu0 0
  %517 = vmatprep.subr.bf16.mxu0 0
  %518 = vmatpush2.bf16.msra.mxu0 0
  %519 = vmatprep.subr.bf16.mxu0 0
  %520 = vmatpush2.bf16.msra.mxu0 0
  %521 = vmatprep.subr.bf16.mxu0 0
  %522 = vmatpush2.bf16.msra.mxu0 0
  %523 = vmatprep.mubr.bf16.mxu0 0
  %524 = vmatmul.mubr.bf16.gmra.mxu0 %v486
  %v525 = vpop.f32.mrf.mxu0
  %v526 = vadd.f32 %v464, %v525
  %v527 = vpop.f32.mrf.mxu0
  %v528 = vpop.f32.mrf.mxu0
  %v529 = vadd.f32 %v464, %v528
  %v530 = vpop.f32.mrf.mxu0
  %531 = vmatprep.mubr.bf16.mxu0 0
  %532 = vmatmul.mubr.bf16.gmra.mxu0 %v489
  %v533 = vpop.f32.mrf.mxu0
  %v534 = vadd.f32 %v464, %v533
  %v535 = vpop.f32.mrf.mxu0
  %v536 = vpop.f32.mrf.mxu0
  %v537 = vpop.f32.mrf.mxu0
  %538 = vdwg.mxu0
  %v539 = vmax.f32 %v526, 0.0
  %v540 = vmax.f32 %v529, 0.0
  %v541 = vmax.f32 %v534, 0.0
  %v542 = vpack.c.bf16 %v449, %v448
  %v543 = vpack.c.bf16 %v450, %v450
  %v545 = vsel %vm484, %v542, 0
  %v548 = vsel %vm484, %v543, 0
  %550 = vmatprep.subr.bf16.mxu0 0
  %551 = vmatpush1.bf16.msra.mxu0 0
  %552 = vmatprep.subr.bf16.mxu0 0
  %553 = vmatpush1.bf16.msra.mxu0 0
  %554 = vmatprep.subr.bf16.mxu0 0
  %555 = vmatpush1.bf16.msra.mxu0 0
  %556 = vmatprep.subr.bf16.mxu0 0
  %557 = vmatpush1.bf16.msra.mxu0 0
  %558 = vmatprep.subr.bf16.mxu0 0
  %559 = vmatpush1.bf16.msra.mxu0 0
  %560 = vmatprep.subr.bf16.mxu0 0
  %561 = vmatpush1.bf16.msra.mxu0 %v480
  %562 = vmatprep.subr.bf16.mxu0 0
  %563 = vmatpush1.bf16.msra.mxu0 %v479
  %564 = vmatprep.subr.bf16.mxu0 0
  %565 = vmatpush1.bf16.msra.mxu0 %v478
  %566 = vmatprep.subr.bf16.mxu0 0
  %567 = vmatpush2.bf16.msra.mxu0 0
  %568 = vmatprep.subr.bf16.mxu0 0
  %569 = vmatpush2.bf16.msra.mxu0 0
  %570 = vmatprep.subr.bf16.mxu0 0
  %571 = vmatpush2.bf16.msra.mxu0 0
  %572 = vmatprep.subr.bf16.mxu0 0
  %573 = vmatpush2.bf16.msra.mxu0 0
  %574 = vmatprep.subr.bf16.mxu0 0
  %575 = vmatpush2.bf16.msra.mxu0 0
  %576 = vmatprep.subr.bf16.mxu0 0
  %577 = vmatpush2.bf16.msra.mxu0 0
  %578 = vmatprep.subr.bf16.mxu0 0
  %579 = vmatpush2.bf16.msra.mxu0 0
  %580 = vmatprep.subr.bf16.mxu0 0
  %581 = vmatpush2.bf16.msra.mxu0 0
  %582 = vmatprep.mubr.bf16.mxu0 0
  %583 = vmatmul.mubr.bf16.gmra.mxu0 %v545
  %v584 = vpop.f32.mrf.mxu0
  %v585 = vadd.f32 %v464, %v584
  %v586 = vpop.f32.mrf.mxu0
  %v587 = vpop.f32.mrf.mxu0
  %v588 = vadd.f32 %v464, %v587
  %v589 = vpop.f32.mrf.mxu0
  %590 = vmatprep.mubr.bf16.mxu0 0
  %591 = vmatmul.mubr.bf16.gmra.mxu0 %v548
  %v592 = vpop.f32.mrf.mxu0
  %v593 = vadd.f32 %v464, %v592
  %v594 = vpop.f32.mrf.mxu0
  %v595 = vpop.f32.mrf.mxu0
  %v596 = vpop.f32.mrf.mxu0
  %597 = vdwg.mxu0
  %v598 = vmax.f32 %v585, 0.0
  %v599 = vmax.f32 %v588, 0.0
  %v600 = vmax.f32 %v593, 0.0
  %v604 = vrot.slane %v598, 7
  %v605 = vrot.slane %v599, 7
  %v606 = vsel %vm375, %v604, %v605
  %v607 = vrot.slane %v600, 7
  %v608 = vsel %vm375, %v605, %v607
  %v612 = vsel %vm375, 0.0, %v604
  %v613 = vmul.f32 %v612, %v145
  %v614 = vmul.f32 %v606, %v146
  %v615 = vmul.f32 %v608, %v147
  %619 = vrot.lane.b32.xlu0 %v539, 32
  %v620 = vpop.permute.xlu0 %619
  %621 = vrot.lane.b32.xlu0 %v540, 32
  %v622 = vpop.permute.xlu0 %621
  %623 = vrot.lane.b32.xlu0 %v541, 32
  %v624 = vpop.permute.xlu0 %623
  %628 = vrot.lane.b32.xlu0 %v598, 64
  %v629 = vpop.permute.xlu0 %628
  %630 = vrot.lane.b32.xlu0 %v599, 64
  %v631 = vpop.permute.xlu0 %630
  %632 = vrot.lane.b32.xlu0 %v600, 64
  %v633 = vpop.permute.xlu0 %632
  %v637 = vsel %vm413, %v613, %v620
  %v638 = vsel %vm413, %v614, %v622
  %v639 = vsel %vm413, %v615, %v624
  %vm640 = vcmask 523264
  %v641 = vsel %vm640, %v637, %v629
  %v642 = vsel %vm640, %v638, %v631
  %v643 = vsel %vm640, %v639, %v633
  %v644 = vld [vmem:[%s11] sm:$0xf]
  %v645 = vld [vmem:[%s11 + $0x4] sm:$0xf]
  %v646 = vld [vmem:[%s11 + $0x8] sm:$0xf]
  %v647 = vld [vmem:[%s11 + $0xc] sm:$0xf]
  %v648 = vld [vmem:[%s11 + $0x10] sm:$0xf]
  %v649 = vld [vmem:[%s11 + $0x14] sm:$0xf]
  %v650 = vld [vmem:[%s11 + $0x18] sm:$0xf]
  %v651 = vld [vmem:[%s11 + $0x1c] sm:$0xf]
  %v652 = vld [vmem:[%s11 + $0x20] sm:$0xf]
  %v653 = vld [vmem:[%s11 + $0x24] sm:$0xf]
  %v654 = vld [vmem:[%s11 + $0x28] sm:$0xf]
  %v655 = vld [vmem:[%s11 + $0x2c] sm:$0xf]
  %v656 = vpack.c.bf16 %v642, %v641
  %v657 = vpack.c.bf16 %v643, %v643
  %v658 = vld [vmem:[%s13] sm:$0x1]
  %v660 = vlaneseq
  %v661 = vshrl.u32 %v660, 7
  %v662 = vsub.s32 0, %v661
  %v663 = vrot.slane %v658, %v662
  %v677 = vunpack.c.l.b16 %v644
  %v678 = vunpack.c.l.b16 %v645
  %v679 = vunpack.c.l.b16 %v646
  %v680 = vunpack.c.l.b16 %v647
  %v681 = vunpack.c.l.b16 %v648
  %v682 = vunpack.c.l.b16 %v649
  %v683 = vunpack.c.l.b16 %v650
  %v684 = vunpack.c.l.b16 %v651
  %v685 = vunpack.c.l.b16 %v652
  %v686 = vunpack.c.l.b16 %v653
  %v687 = vunpack.c.l.b16 %v654
  %v688 = vunpack.c.l.b16 %v655
  %v689 = vpack.c.b16 %v678, %v677
  %v690 = vpack.c.b16 %v680, %v679
  %v691 = vpack.c.b16 %v682, %v681
  %v692 = vpack.c.b16 %v684, %v683
  %v693 = vpack.c.b16 %v686, %v685
  %v694 = vpack.c.b16 %v688, %v687
  %vm701 = vcmask 785408
  %v703 = vsel %vm701, %v656, 0
  %v706 = vsel %vm701, %v657, 0
  %708 = vmatprep.subr.bf16.mxu0 0
  %709 = vmatpush1.bf16.msra.mxu0 0
  %710 = vmatprep.subr.bf16.mxu0 0
  %711 = vmatpush1.bf16.msra.mxu0 0
  %712 = vmatprep.subr.bf16.mxu0 0
  %713 = vmatpush1.bf16.msra.mxu0 %v694
  %714 = vmatprep.subr.bf16.mxu0 0
  %715 = vmatpush1.bf16.msra.mxu0 %v693
  %716 = vmatprep.subr.bf16.mxu0 0
  %717 = vmatpush1.bf16.msra.mxu0 %v692
  %718 = vmatprep.subr.bf16.mxu0 0
  %719 = vmatpush1.bf16.msra.mxu0 %v691
  %720 = vmatprep.subr.bf16.mxu0 0
  %721 = vmatpush1.bf16.msra.mxu0 %v690
  %722 = vmatprep.subr.bf16.mxu0 0
  %723 = vmatpush1.bf16.msra.mxu0 %v689
  %724 = vmatprep.subr.bf16.mxu0 0
  %725 = vmatpush2.bf16.msra.mxu0 0
  %726 = vmatprep.subr.bf16.mxu0 0
  %727 = vmatpush2.bf16.msra.mxu0 0
  %728 = vmatprep.subr.bf16.mxu0 0
  %729 = vmatpush2.bf16.msra.mxu0 0
  %730 = vmatprep.subr.bf16.mxu0 0
  %731 = vmatpush2.bf16.msra.mxu0 0
  %732 = vmatprep.subr.bf16.mxu0 0
  %733 = vmatpush2.bf16.msra.mxu0 0
  %734 = vmatprep.subr.bf16.mxu0 0
  %735 = vmatpush2.bf16.msra.mxu0 0
  %736 = vmatprep.subr.bf16.mxu0 0
  %737 = vmatpush2.bf16.msra.mxu0 0
  %738 = vmatprep.subr.bf16.mxu0 0
  %739 = vmatpush2.bf16.msra.mxu0 0
  %740 = vmatprep.mubr.bf16.mxu0 0
  %741 = vmatmul.mubr.bf16.gmra.mxu0 %v703
  %v742 = vpop.f32.mrf.mxu0
  %v743 = vadd.f32 %v663, %v742
  %v744 = vpop.f32.mrf.mxu0
  %v745 = vpop.f32.mrf.mxu0
  %v746 = vadd.f32 %v663, %v745
  %v747 = vpop.f32.mrf.mxu0
  %748 = vmatprep.mubr.bf16.mxu0 0
  %749 = vmatmul.mubr.bf16.gmra.mxu0 %v706
  %v750 = vpop.f32.mrf.mxu0
  %v751 = vadd.f32 %v663, %v750
  %v752 = vpop.f32.mrf.mxu0
  %v753 = vpop.f32.mrf.mxu0
  %v754 = vpop.f32.mrf.mxu0
  %755 = vdwg.mxu0
  %v756 = vmax.f32 %v743, 0.0
  %v757 = vmax.f32 %v746, 0.0
  %v758 = vmax.f32 %v751, 0.0
  %v762 = vrot.slane %v756, 7
  %v763 = vrot.slane %v757, 7
  %v764 = vsel %vm375, %v762, %v763
  %v765 = vrot.slane %v758, 7
  %v766 = vsel %vm375, %v763, %v765
  %v770 = vsel %vm375, 0.0, %v762
  %v771 = vmul.f32 %v770, %v145
  %v772 = vmul.f32 %v764, %v146
  %v773 = vmul.f32 %v766, %v147
  %vm774 = vcmask 1046528
  %v775 = vrot.slane %v756, 1
  %v776 = vrot.slane %v757, 1
  %v777 = vsel %vm774, %v775, %v776
  %v778 = vrot.slane %v758, 1
  %v779 = vsel %vm774, %v776, %v778
  %vm783 = vcmask 1042432
  %v784 = vsel %vm783, %v778, 0.0
  %v785 = vmul.f32 %v777, %v148
  %v786 = vmul.f32 %v779, %v149
  %v787 = vmul.f32 %v784, %v150
  %788 = vrot.lane.b32.xlu0 %v756, 64
  %v789 = vpop.permute.xlu0 %788
  %790 = vrot.lane.b32.xlu0 %v757, 64
  %v791 = vpop.permute.xlu0 %790
  %792 = vrot.lane.b32.xlu0 %v758, 64
  %v793 = vpop.permute.xlu0 %792
  %v797 = vsel %vm640, %v771, %v789
  %v798 = vsel %vm640, %v772, %v791
  %v799 = vsel %vm640, %v773, %v793
  %v800 = vld [vmem:[%s15] sm:$0xf]
  %v801 = vld [vmem:[%s15 + $0x4] sm:$0xf]
  %v802 = vld [vmem:[%s15 + $0x8] sm:$0xf]
  %v803 = vld [vmem:[%s15 + $0xc] sm:$0xf]
  %v804 = vld [vmem:[%s15 + $0x10] sm:$0xf]
  %v805 = vld [vmem:[%s15 + $0x14] sm:$0xf]
  %v806 = vld [vmem:[%s15 + $0x18] sm:$0xf]
  %v807 = vld [vmem:[%s15 + $0x1c] sm:$0xf]
  %v808 = vld [vmem:[%s15 + $0x20] sm:$0xf]
  %v809 = vld [vmem:[%s15 + $0x24] sm:$0xf]
  %v810 = vld [vmem:[%s15 + $0x28] sm:$0xf]
  %v811 = vld [vmem:[%s15 + $0x2c] sm:$0xf]
  %v812 = vld [vmem:[%s15 + $0x30] sm:$0xf]
  %v813 = vld [vmem:[%s15 + $0x34] sm:$0xf]
  %v814 = vld [vmem:[%s15 + $0x38] sm:$0xf]
  %v815 = vld [vmem:[%s15 + $0x3c] sm:$0xf]
  %v816 = vld [vmem:[%s15 + $0x40] sm:$0xf]
  %v817 = vld [vmem:[%s15 + $0x44] sm:$0xf]
  %v818 = vld [vmem:[%s15 + $0x48] sm:$0xf]
  %v819 = vld [vmem:[%s15 + $0x4c] sm:$0xf]
  %v820 = vld [vmem:[%s15 + $0x50] sm:$0xf]
  %v821 = vld [vmem:[%s15 + $0x54] sm:$0xf]
  %v822 = vld [vmem:[%s15 + $0x58] sm:$0xf]
  %v823 = vld [vmem:[%s15 + $0x5c] sm:$0xf]
  %v824 = vpack.c.bf16 %v798, %v797
  %v825 = vpack.c.bf16 %v786, %v785
  %v826 = vpack.c.bf16 %v799, %v799
  %v827 = vpack.c.bf16 %v787, %v787
  %v828 = vld [vmem:[%s17] sm:$0x1]
  %v830 = vlaneseq
  %v831 = vshrl.u32 %v830, 7
  %v832 = vsub.s32 0, %v831
  %v833 = vrot.slane %v828, %v832
  %v859 = vunpack.c.l.b16 %v800
  %v860 = vunpack.c.l.b16 %v801
  %v861 = vunpack.c.l.b16 %v802
  %v862 = vunpack.c.l.b16 %v803
  %v863 = vunpack.c.l.b16 %v804
  %v864 = vunpack.c.l.b16 %v805
  %v865 = vunpack.c.l.b16 %v806
  %v866 = vunpack.c.l.b16 %v807
  %v867 = vunpack.c.l.b16 %v808
  %v868 = vunpack.c.l.b16 %v809
  %v869 = vunpack.c.l.b16 %v810
  %v870 = vunpack.c.l.b16 %v811
  %v871 = vunpack.c.l.b16 %v812
  %v872 = vunpack.c.l.b16 %v813
  %v873 = vunpack.c.l.b16 %v814
  %v874 = vunpack.c.l.b16 %v815
  %v875 = vunpack.c.l.b16 %v816
  %v876 = vunpack.c.l.b16 %v817
  %v877 = vunpack.c.l.b16 %v818
  %v878 = vunpack.c.l.b16 %v819
  %v879 = vunpack.c.l.b16 %v820
  %v880 = vunpack.c.l.b16 %v821
  %v881 = vunpack.c.l.b16 %v822
  %v882 = vunpack.c.l.b16 %v823
  %v883 = vpack.c.b16 %v860, %v859
  %v884 = vpack.c.b16 %v862, %v861
  %v885 = vpack.c.b16 %v864, %v863
  %v886 = vpack.c.b16 %v866, %v865
  %v887 = vpack.c.b16 %v868, %v867
  %v888 = vpack.c.b16 %v870, %v869
  %v889 = vpack.c.b16 %v872, %v871
  %v890 = vpack.c.b16 %v874, %v873
  %v891 = vpack.c.b16 %v876, %v875
  %v892 = vpack.c.b16 %v878, %v877
  %v893 = vpack.c.b16 %v880, %v879
  %v894 = vpack.c.b16 %v882, %v881
  %v908 = vsel %vm640, %v825, 0
  %v911 = vsel %vm640, %v827, 0
  %913 = vmatprep.subr.bf16.mxu0 0
  %914 = vmatpush1.bf16.msra.mxu0 %v890
  %915 = vmatprep.subr.bf16.mxu0 0
  %916 = vmatpush1.bf16.msra.mxu0 %v889
  %917 = vmatprep.subr.bf16.mxu0 0
  %918 = vmatpush1.bf16.msra.mxu0 %v888
  %919 = vmatprep.subr.bf16.mxu0 0
  %920 = vmatpush1.bf16.msra.mxu0 %v887
  %921 = vmatprep.subr.bf16.mxu0 0
  %922 = vmatpush1.bf16.msra.mxu0 %v886
  %923 = vmatprep.subr.bf16.mxu0 0
  %924 = vmatpush1.bf16.msra.mxu0 %v885
  %925 = vmatprep.subr.bf16.mxu0 0
  %926 = vmatpush1.bf16.msra.mxu0 %v884
  %927 = vmatprep.subr.bf16.mxu0 0
  %928 = vmatpush1.bf16.msra.mxu0 %v883
  %929 = vmatprep.subr.bf16.mxu0 0
  %930 = vmatpush2.bf16.msra.mxu0 0
  %931 = vmatprep.subr.bf16.mxu0 0
  %932 = vmatpush2.bf16.msra.mxu0 0
  %933 = vmatprep.subr.bf16.mxu0 0
  %934 = vmatpush2.bf16.msra.mxu0 0
  %935 = vmatprep.subr.bf16.mxu0 0
  %936 = vmatpush2.bf16.msra.mxu0 0
  %937 = vmatprep.subr.bf16.mxu0 0
  %938 = vmatpush2.bf16.msra.mxu0 %v894
  %939 = vmatprep.subr.bf16.mxu0 0
  %940 = vmatpush2.bf16.msra.mxu0 %v893
  %941 = vmatprep.subr.bf16.mxu0 0
  %942 = vmatpush2.bf16.msra.mxu0 %v892
  %943 = vmatprep.subr.bf16.mxu0 0
  %944 = vmatpush2.bf16.msra.mxu0 %v891
  %945 = vmatprep.mubr.bf16.mxu0 %v908
  %946 = vmatmul.mubr.bf16.gmra.mxu0 %v824
  %v947 = vpop.f32.mrf.mxu0
  %v948 = vadd.f32 %v833, %v947
  %v949 = vpop.f32.mrf.mxu0
  %v950 = vpop.f32.mrf.mxu0
  %v951 = vadd.f32 %v833, %v950
  %v952 = vpop.f32.mrf.mxu0
  %953 = vmatprep.mubr.bf16.mxu0 %v911
  %954 = vmatmul.mubr.bf16.gmra.mxu0 %v826
  %v955 = vpop.f32.mrf.mxu0
  %v956 = vadd.f32 %v833, %v955
  %v957 = vpop.f32.mrf.mxu0
  %v958 = vpop.f32.mrf.mxu0
  %v959 = vpop.f32.mrf.mxu0
  %960 = vdwg.mxu0
  %v961 = vmax.f32 %v948, 0.0
  %v962 = vmax.f32 %v951, 0.0
  %v963 = vmax.f32 %v956, 0.0
  %v964 = vld [vmem:[%s19] sm:$0xff]
  %v965 = vld [vmem:[%s19 + $0x8] sm:$0xff]
  %v966 = vld [vmem:[%s19 + $0x10] sm:$0xf]
  %v967 = vadd.f32 %v961, %v964
  %v968 = vadd.f32 %v962, %v965
  %v969 = vadd.f32 %v963, %v966
  %v970 = vld [vmem:[%s21] sm:$0xff]
  %v971 = vld [vmem:[%s21 + $0x8] sm:$0xff]
  %v972 = vld [vmem:[%s21 + $0x10] sm:$0xff]
  %v973 = vld [vmem:[%s21 + $0x18] sm:$0xff]
  %v974 = vld [vmem:[%s21 + $0x20] sm:$0xff]
  %v975 = vld [vmem:[%s21 + $0x28] sm:$0xff]
  %v976 = vld [vmem:[%s21 + $0x30] sm:$0xff]
  %v977 = vld [vmem:[%s21 + $0x38] sm:$0xff]
  %v978 = vld [vmem:[%s21 + $0x40] sm:$0xff]
  %v979 = vld [vmem:[%s21 + $0x48] sm:$0xff]
  %v980 = vld [vmem:[%s23] sm:$0xff]
  %v981 = vld [vmem:[%s23 + $0x8] sm:$0xff]
  %v982 = vld [vmem:[%s23 + $0x10] sm:$0xff]
  %v983 = vld [vmem:[%s23 + $0x18] sm:$0xff]
  %v984 = vld [vmem:[%s23 + $0x20] sm:$0xff]
  %v985 = vld [vmem:[%s23 + $0x28] sm:$0xff]
  %v986 = vld [vmem:[%s23 + $0x30] sm:$0xff]
  %v987 = vld [vmem:[%s23 + $0x38] sm:$0xff]
  %v988 = vpack.c.bf16 %v968, %v967
  %v989 = vpack.c.bf16 %v969, %v969
  %v990 = vld [vmem:[%s25] sm:$0x3]
  %v992 = vlaneseq
  %v993 = vshrl.u32 %v992, 7
  %v994 = vsub.s32 0, %v993
  %v995 = vrot.slane %v990, %v994
  %v996 = vlaneseq
  %v997 = vshrl.u32 %v996, 7
  %v998 = vsub.s32 1, %v997
  %v999 = vrot.slane %v990, %v998
  %v1010 = vunpack.c.l.b16 %v980
  %v1011 = vunpack.c.h.b16 %v980
  %v1012 = vunpack.c.l.b16 %v981
  %v1013 = vunpack.c.h.b16 %v981
  %v1014 = vunpack.c.l.b16 %v982
  %v1015 = vunpack.c.h.b16 %v982
  %v1016 = vunpack.c.l.b16 %v983
  %v1017 = vunpack.c.h.b16 %v983
  %v1018 = vunpack.c.l.b16 %v984
  %v1019 = vunpack.c.h.b16 %v984
  %v1020 = vunpack.c.l.b16 %v985
  %v1021 = vunpack.c.h.b16 %v985
  %v1022 = vunpack.c.l.b16 %v986
  %v1023 = vunpack.c.h.b16 %v986
  %v1024 = vunpack.c.l.b16 %v987
  %v1025 = vunpack.c.h.b16 %v987
  %v1026 = vpack.c.b16 %v1012, %v1010
  %v1027 = vpack.c.b16 %v1013, %v1011
  %v1028 = vpack.c.b16 %v1016, %v1014
  %v1029 = vpack.c.b16 %v1017, %v1015
  %v1030 = vpack.c.b16 %v1020, %v1018
  %v1031 = vpack.c.b16 %v1021, %v1019
  %v1032 = vpack.c.b16 %v1024, %v1022
  %v1033 = vpack.c.b16 %v1025, %v1023
  %v1043 = vsel %vm640, %v988, 0
  %v1046 = vsel %vm640, %v989, 0
  %1048 = vmatprep.subr.bf16.mxu0 0
  %1049 = vmatpush1.bf16.msra.mxu0 0
  %1050 = vmatprep.subr.bf16.mxu0 0
  %1051 = vmatpush1.bf16.msra.mxu0 0
  %1052 = vmatprep.subr.bf16.mxu0 0
  %1053 = vmatpush1.bf16.msra.mxu0 0
  %1054 = vmatprep.subr.bf16.mxu0 0
  %1055 = vmatpush1.bf16.msra.mxu0 0
  %1056 = vmatprep.subr.bf16.mxu0 %v1033
  %1057 = vmatpush1.bf16.msra.mxu0 %v1032
  %1058 = vmatprep.subr.bf16.mxu0 %v1031
  %1059 = vmatpush1.bf16.msra.mxu0 %v1030
  %1060 = vmatprep.subr.bf16.mxu0 %v1029
  %1061 = vmatpush1.bf16.msra.mxu0 %v1028
  %1062 = vmatprep.subr.bf16.mxu0 %v1027
  %1063 = vmatpush1.bf16.msra.mxu0 %v1026
  %1064 = vmatprep.subr.bf16.mxu0 0
  %1065 = vmatpush2.bf16.msra.mxu0 0
  %1066 = vmatprep.subr.bf16.mxu0 0
  %1067 = vmatpush2.bf16.msra.mxu0 0
  %1068 = vmatprep.subr.bf16.mxu0 0
  %1069 = vmatpush2.bf16.msra.mxu0 0
  %1070 = vmatprep.subr.bf16.mxu0 0
  %1071 = vmatpush2.bf16.msra.mxu0 0
  %1072 = vmatprep.subr.bf16.mxu0 0
  %1073 = vmatpush2.bf16.msra.mxu0 0
  %1074 = vmatprep.subr.bf16.mxu0 0
  %1075 = vmatpush2.bf16.msra.mxu0 0
  %1076 = vmatprep.subr.bf16.mxu0 0
  %1077 = vmatpush2.bf16.msra.mxu0 0
  %1078 = vmatprep.subr.bf16.mxu0 0
  %1079 = vmatpush2.bf16.msra.mxu0 0
  %1080 = vmatprep.mubr.bf16.mxu0 0
  %1081 = vmatmul.mubr.bf16.gmra.mxu0 %v1043
  %v1082 = vpop.f32.mrf.mxu0
  %v1083 = vadd.f32 %v995, %v1082
  %v1084 = vpop.f32.mrf.mxu0
  %v1085 = vadd.f32 %v999, %v1084
  %v1086 = vpop.f32.mrf.mxu0
  %v1087 = vadd.f32 %v995, %v1086
  %v1088 = vpop.f32.mrf.mxu0
  %v1089 = vadd.f32 %v999, %v1088
  %1090 = vmatprep.mubr.bf16.mxu0 0
  %1091 = vmatmul.mubr.bf16.gmra.mxu0 %v1046
  %v1092 = vpop.f32.mrf.mxu0
  %v1093 = vadd.f32 %v995, %v1092
  %v1094 = vpop.f32.mrf.mxu0
  %v1095 = vadd.f32 %v999, %v1094
  %v1096 = vpop.f32.mrf.mxu0
  %v1097 = vpop.f32.mrf.mxu0
  %1098 = vdwg.mxu0
  %v1102 = vrot.slane %v1083, 4
  %v1103 = vrot.slane %v1087, 4
  %v1104 = vsel %vm394, %v1102, %v1103
  %v1105 = vrot.slane %v1093, 4
  %v1106 = vsel %vm394, %v1103, %v1105
  %1107 = vrot.lane.b32.xlu0 %v1102, 112
  %v1108 = vpop.permute.xlu0 %1107
  %1109 = vrot.lane.b32.xlu0 %v1104, 112
  %v1110 = vpop.permute.xlu0 %1109
  %1111 = vrot.lane.b32.xlu0 %v1106, 112
  %v1112 = vpop.permute.xlu0 %1111
  %1116 = vrot.lane.b32.xlu0 %v1083, 96
  %v1117 = vpop.permute.xlu0 %1116
  %1118 = vrot.lane.b32.xlu0 %v1087, 96
  %v1119 = vpop.permute.xlu0 %1118
  %1120 = vrot.lane.b32.xlu0 %v1093, 96
  %v1121 = vpop.permute.xlu0 %1120
  %1125 = vrot.lane.b32.xlu0 %v1102, 80
  %v1126 = vpop.permute.xlu0 %1125
  %1127 = vrot.lane.b32.xlu0 %v1104, 80
  %v1128 = vpop.permute.xlu0 %1127
  %1129 = vrot.lane.b32.xlu0 %v1106, 80
  %v1130 = vpop.permute.xlu0 %1129
  %v1134 = vsel %vm394, %v1093, %v1108
  %v1135 = vsel %vm394, %v1121, %v1126
  %v1139 = vrot.slane %v1085, 4
  %v1140 = vrot.slane %v1089, 4
  %v1141 = vsel %vm394, %v1139, %v1140
  %v1142 = vrot.slane %v1095, 4
  %v1143 = vsel %vm394, %v1140, %v1142
  %1144 = vrot.lane.b32.xlu0 %v1139, 112
  %v1145 = vpop.permute.xlu0 %1144
  %1146 = vrot.lane.b32.xlu0 %v1141, 112
  %v1147 = vpop.permute.xlu0 %1146
  %1148 = vrot.lane.b32.xlu0 %v1143, 112
  %v1149 = vpop.permute.xlu0 %1148
  %1153 = vrot.lane.b32.xlu0 %v1085, 96
  %v1154 = vpop.permute.xlu0 %1153
  %1155 = vrot.lane.b32.xlu0 %v1089, 96
  %v1156 = vpop.permute.xlu0 %1155
  %1157 = vrot.lane.b32.xlu0 %v1095, 96
  %v1158 = vpop.permute.xlu0 %1157
  %1162 = vrot.lane.b32.xlu0 %v1139, 80
  %v1163 = vpop.permute.xlu0 %1162
  %1164 = vrot.lane.b32.xlu0 %v1141, 80
  %v1165 = vpop.permute.xlu0 %1164
  %1166 = vrot.lane.b32.xlu0 %v1143, 80
  %v1167 = vpop.permute.xlu0 %1166
  %v1171 = vsel %vm394, %v1095, %v1145
  %v1172 = vsel %vm394, %v1158, %v1163
  %v1173 = vpack.c.bf16 %v1087, %v1083
  %v1174 = vpack.c.bf16 %v1110, %v1134
  %v1175 = vpack.c.bf16 %v1117, %v1112
  %v1176 = vpack.c.bf16 %v1135, %v1119
  %v1177 = vpack.c.bf16 %v1130, %v1128
  %1183 = vrot.lane.b32.xlu0 %v1173, 64
  %v1184 = vpop.permute.xlu0 %1183
  %1185 = vrot.lane.b32.xlu0 %v1174, 64
  %v1186 = vpop.permute.xlu0 %1185
  %1187 = vrot.lane.b32.xlu0 %v1175, 64
  %v1188 = vpop.permute.xlu0 %1187
  %1189 = vrot.lane.b32.xlu0 %v1176, 64
  %v1190 = vpop.permute.xlu0 %1189
  %1191 = vrot.lane.b32.xlu0 %v1177, 64
  %v1192 = vpop.permute.xlu0 %1191
  %v1194 = vsel %vm409, %v1173, 0
  %v1197 = vsel %vm409, %v1174, 0
  %v1200 = vsel %vm409, %v1175, 0
  %v1203 = vsel %vm409, %v1176, 0
  %v1206 = vsel %vm409, %v1177, 0
  %v1209 = vsel %vm409, %v1184, 0
  %v1212 = vsel %vm409, %v1186, 0
  %v1215 = vsel %vm409, %v1188, 0
  %v1218 = vsel %vm409, %v1190, 0
  %v1221 = vsel %vm409, %v1192, 0
  %1223 = vmatprep.subr.bf16.mxu0 0
  %1224 = vmatpush1.bf16.xpose.msra.mxu0 0
  %1225 = vmatprep.subr.bf16.mxu0 0
  %1226 = vmatpush1.bf16.xpose.msra.mxu0 0
  %1227 = vmatprep.subr.bf16.mxu0 0
  %1228 = vmatpush1.bf16.xpose.msra.mxu0 0
  %1229 = vmatprep.subr.bf16.mxu0 0
  %1230 = vmatpush1.bf16.xpose.msra.mxu0 %v1221
  %1231 = vmatprep.subr.bf16.mxu0 0
  %1232 = vmatpush1.bf16.xpose.msra.mxu0 %v1218
  %1233 = vmatprep.subr.bf16.mxu0 0
  %1234 = vmatpush1.bf16.xpose.msra.mxu0 %v1215
  %1235 = vmatprep.subr.bf16.mxu0 0
  %1236 = vmatpush1.bf16.xpose.msra.mxu0 %v1212
  %1237 = vmatprep.subr.bf16.mxu0 0
  %1238 = vmatpush1.bf16.xpose.msra.mxu0 %v1209
  %1239 = vmatprep.subr.bf16.mxu0 0
  %1240 = vmatpush2.bf16.xpose.msra.mxu0 0
  %1241 = vmatprep.subr.bf16.mxu0 0
  %1242 = vmatpush2.bf16.xpose.msra.mxu0 0
  %1243 = vmatprep.subr.bf16.mxu0 0
  %1244 = vmatpush2.bf16.xpose.msra.mxu0 0
  %1245 = vmatprep.subr.bf16.mxu0 0
  %1246 = vmatpush2.bf16.xpose.msra.mxu0 0
  %1247 = vmatprep.subr.bf16.mxu0 0
  %1248 = vmatpush2.bf16.xpose.msra.mxu0 0
  %1249 = vmatprep.subr.bf16.mxu0 0
  %1250 = vmatpush2.bf16.xpose.msra.mxu0 0
  %1251 = vmatprep.subr.bf16.mxu0 0
  %1252 = vmatpush2.bf16.xpose.msra.mxu0 0
  %1253 = vmatprep.subr.bf16.mxu0 0
  %1254 = vmatpush2.bf16.xpose.msra.mxu0 0
  %1255 = vmatprep.mubr.bf16.mxu0 0
  %1256 = vmatmul.mubr.bf16.gmra.mxu0 %v1194
  %v1257 = vpop.f32.mrf.mxu0
  %v1258 = vadd.f32 %v970, %v1257
  %v1259 = vpop.f32.mrf.mxu0
  %v1260 = vpop.f32.mrf.mxu0
  %v1261 = vadd.f32 %v971, %v1260
  %v1262 = vpop.f32.mrf.mxu0
  %1263 = vmatprep.mubr.bf16.mxu0 0
  %1264 = vmatmul.mubr.bf16.gmra.mxu0 %v1197
  %v1265 = vpop.f32.mrf.mxu0
  %v1266 = vadd.f32 %v972, %v1265
  %v1267 = vpop.f32.mrf.mxu0
  %v1268 = vpop.f32.mrf.mxu0
  %v1269 = vadd.f32 %v973, %v1268
  %v1270 = vpop.f32.mrf.mxu0
  %1271 = vmatprep.mubr.bf16.mxu0 0
  %1272 = vmatmul.mubr.bf16.gmra.mxu0 %v1200
  %v1273 = vpop.f32.mrf.mxu0
  %v1274 = vadd.f32 %v974, %v1273
  %v1275 = vpop.f32.mrf.mxu0
  %v1276 = vpop.f32.mrf.mxu0
  %v1277 = vadd.f32 %v975, %v1276
  %v1278 = vpop.f32.mrf.mxu0
  %1279 = vmatprep.mubr.bf16.mxu0 0
  %1280 = vmatmul.mubr.bf16.gmra.mxu0 %v1203
  %v1281 = vpop.f32.mrf.mxu0
  %v1282 = vadd.f32 %v976, %v1281
  %v1283 = vpop.f32.mrf.mxu0
  %v1284 = vpop.f32.mrf.mxu0
  %v1285 = vadd.f32 %v977, %v1284
  %v1286 = vpop.f32.mrf.mxu0
  %1287 = vmatprep.mubr.bf16.mxu0 0
  %1288 = vmatmul.mubr.bf16.gmra.mxu0 %v1206
  %v1289 = vpop.f32.mrf.mxu0
  %v1290 = vadd.f32 %v978, %v1289
  %v1291 = vpop.f32.mrf.mxu0
  %v1292 = vpop.f32.mrf.mxu0
  %v1293 = vadd.f32 %v979, %v1292
  %v1294 = vpop.f32.mrf.mxu0
  %1295 = vdwg.mxu0
  %vm1296 = vcmask 654336
  %v1297 = vsel %vm1296, %v1258, -inf
  %1298 = vmax.xlane.f32.xlu0 %v1297
  %v1299 = vpop.xlane.xlu0 %1298
  %v1300 = vsel %vm1296, %v1261, -inf
  %1301 = vmax.xlane.f32.xlu0 %v1300
  %v1302 = vpop.xlane.xlu0 %1301
  %v1303 = vsel %vm1296, %v1266, -inf
  %1304 = vmax.xlane.f32.xlu0 %v1303
  %v1305 = vpop.xlane.xlu0 %1304
  %v1306 = vsel %vm1296, %v1269, -inf
  %1307 = vmax.xlane.f32.xlu0 %v1306
  %v1308 = vpop.xlane.xlu0 %1307
  %v1309 = vsel %vm1296, %v1274, -inf
  %1310 = vmax.xlane.f32.xlu0 %v1309
  %v1311 = vpop.xlane.xlu0 %1310
  %v1312 = vsel %vm1296, %v1277, -inf
  %1313 = vmax.xlane.f32.xlu0 %v1312
  %v1314 = vpop.xlane.xlu0 %1313
  %v1315 = vsel %vm1296, %v1282, -inf
  %1316 = vmax.xlane.f32.xlu0 %v1315
  %v1317 = vpop.xlane.xlu0 %1316
  %v1318 = vsel %vm1296, %v1285, -inf
  %1319 = vmax.xlane.f32.xlu0 %v1318
  %v1320 = vpop.xlane.xlu0 %1319
  %v1321 = vsel %vm1296, %v1290, -inf
  %1322 = vmax.xlane.f32.xlu0 %v1321
  %v1323 = vpop.xlane.xlu0 %1322
  %v1324 = vsel %vm1296, %v1293, -inf
  %1325 = vmax.xlane.f32.xlu0 %v1324
  %v1326 = vpop.xlane.xlu0 %1325
  %v1327 = vsub.f32 %v1258, %v1299
  %v1328 = vsub.f32 %v1261, %v1302
  %v1329 = vsub.f32 %v1266, %v1305
  %v1330 = vsub.f32 %v1269, %v1308
  %v1331 = vsub.f32 %v1274, %v1311
  %v1332 = vsub.f32 %v1277, %v1314
  %v1333 = vsub.f32 %v1282, %v1317
  %v1334 = vsub.f32 %v1285, %v1320
  %v1335 = vsub.f32 %v1290, %v1323
  %v1336 = vsub.f32 %v1293, %v1326
  %v1337 = vmul.f32 %v1327, 1.442695
  %v1338 = vpow.pop %v1337
  %v1339 = vmul.f32 %v1328, 1.442695
  %v1340 = vpow.pop %v1339
  %v1341 = vmul.f32 %v1329, 1.442695
  %v1342 = vpow.pop %v1341
  %v1343 = vmul.f32 %v1330, 1.442695
  %v1344 = vpow.pop %v1343
  %v1345 = vmul.f32 %v1331, 1.442695
  %v1346 = vpow.pop %v1345
  %v1347 = vmul.f32 %v1332, 1.442695
  %v1348 = vpow.pop %v1347
  %v1349 = vmul.f32 %v1333, 1.442695
  %v1350 = vpow.pop %v1349
  %v1351 = vmul.f32 %v1334, 1.442695
  %v1352 = vpow.pop %v1351
  %v1353 = vmul.f32 %v1335, 1.442695
  %v1354 = vpow.pop %v1353
  %v1355 = vmul.f32 %v1336, 1.442695
  %v1356 = vpow.pop %v1355
  %v1357 = vsel %vm1296, %v1338, 0.0
  %1358 = vadd.xlane.f32.xlu0 %v1357
  %v1359 = vpop.xlane.xlu0 %1358
  %v1360 = vsel %vm1296, %v1340, 0.0
  %1361 = vadd.xlane.f32.xlu0 %v1360
  %v1362 = vpop.xlane.xlu0 %1361
  %v1363 = vsel %vm1296, %v1342, 0.0
  %1364 = vadd.xlane.f32.xlu0 %v1363
  %v1365 = vpop.xlane.xlu0 %1364
  %v1366 = vsel %vm1296, %v1344, 0.0
  %1367 = vadd.xlane.f32.xlu0 %v1366
  %v1368 = vpop.xlane.xlu0 %1367
  %v1369 = vsel %vm1296, %v1346, 0.0
  %1370 = vadd.xlane.f32.xlu0 %v1369
  %v1371 = vpop.xlane.xlu0 %1370
  %v1372 = vsel %vm1296, %v1348, 0.0
  %1373 = vadd.xlane.f32.xlu0 %v1372
  %v1374 = vpop.xlane.xlu0 %1373
  %v1375 = vsel %vm1296, %v1350, 0.0
  %1376 = vadd.xlane.f32.xlu0 %v1375
  %v1377 = vpop.xlane.xlu0 %1376
  %v1378 = vsel %vm1296, %v1352, 0.0
  %1379 = vadd.xlane.f32.xlu0 %v1378
  %v1380 = vpop.xlane.xlu0 %1379
  %v1381 = vsel %vm1296, %v1354, 0.0
  %1382 = vadd.xlane.f32.xlu0 %v1381
  %v1383 = vpop.xlane.xlu0 %1382
  %v1384 = vsel %vm1296, %v1356, 0.0
  %1385 = vadd.xlane.f32.xlu0 %v1384
  %v1386 = vpop.xlane.xlu0 %1385
  %v1387 = vrcp.pop %v1359
  %v1388 = vrcp.pop %v1362
  %v1389 = vrcp.pop %v1365
  %v1390 = vrcp.pop %v1368
  %v1391 = vrcp.pop %v1371
  %v1392 = vrcp.pop %v1374
  %v1393 = vrcp.pop %v1377
  %v1394 = vrcp.pop %v1380
  %v1395 = vrcp.pop %v1383
  %v1396 = vrcp.pop %v1386
  %v1397 = vmul.f32 %v1338, %v1387
  %v1398 = vmul.f32 %v1340, %v1388
  %v1399 = vmul.f32 %v1342, %v1389
  %v1400 = vmul.f32 %v1344, %v1390
  %v1401 = vmul.f32 %v1346, %v1391
  %v1402 = vmul.f32 %v1348, %v1392
  %v1403 = vmul.f32 %v1350, %v1393
  %v1404 = vmul.f32 %v1352, %v1394
  %v1405 = vmul.f32 %v1354, %v1395
  %v1406 = vmul.f32 %v1356, %v1396
  %v1407 = vpack.c.bf16 %v1398, %v1397
  %v1408 = vpack.c.bf16 %v1400, %v1399
  %v1409 = vpack.c.bf16 %v1402, %v1401
  %v1410 = vpack.c.bf16 %v1404, %v1403
  %v1411 = vpack.c.bf16 %v1406, %v1405
  %v1412 = vpack.c.bf16 %v1089, %v1085
  %v1413 = vpack.c.bf16 %v1147, %v1171
  %v1414 = vpack.c.bf16 %v1154, %v1149
  %v1415 = vpack.c.bf16 %v1172, %v1156
  %v1416 = vpack.c.bf16 %v1167, %v1165
  %v1418 = vsel %vm1296, %v1407, 0
  %v1421 = vsel %vm1296, %v1408, 0
  %v1424 = vsel %vm1296, %v1409, 0
  %v1427 = vsel %vm1296, %v1410, 0
  %v1430 = vsel %vm1296, %v1411, 0
  %1432 = vmatprep.subr.bf16.mxu0 0
  %1433 = vmatpush1.bf16.msra.mxu0 0
  %1434 = vmatprep.subr.bf16.mxu0 0
  %1435 = vmatpush1.bf16.msra.mxu0 0
  %1436 = vmatprep.subr.bf16.mxu0 0
  %1437 = vmatpush1.bf16.msra.mxu0 0
  %1438 = vmatprep.subr.bf16.mxu0 0
  %1439 = vmatpush1.bf16.msra.mxu0 %v1416
  %1440 = vmatprep.subr.bf16.mxu0 0
  %1441 = vmatpush1.bf16.msra.mxu0 %v1415
  %1442 = vmatprep.subr.bf16.mxu0 0
  %1443 = vmatpush1.bf16.msra.mxu0 %v1414
  %1444 = vmatprep.subr.bf16.mxu0 0
  %1445 = vmatpush1.bf16.msra.mxu0 %v1413
  %1446 = vmatprep.subr.bf16.mxu0 0
  %1447 = vmatpush1.bf16.msra.mxu0 %v1412
  %1448 = vmatprep.subr.bf16.mxu0 0
  %1449 = vmatpush2.bf16.msra.mxu0 0
  %1450 = vmatprep.subr.bf16.mxu0 0
  %1451 = vmatpush2.bf16.msra.mxu0 0
  %1452 = vmatprep.subr.bf16.mxu0 0
  %1453 = vmatpush2.bf16.msra.mxu0 0
  %1454 = vmatprep.subr.bf16.mxu0 0
  %1455 = vmatpush2.bf16.msra.mxu0 0
  %1456 = vmatprep.subr.bf16.mxu0 0
  %1457 = vmatpush2.bf16.msra.mxu0 0
  %1458 = vmatprep.subr.bf16.mxu0 0
  %1459 = vmatpush2.bf16.msra.mxu0 0
  %1460 = vmatprep.subr.bf16.mxu0 0
  %1461 = vmatpush2.bf16.msra.mxu0 0
  %1462 = vmatprep.subr.bf16.mxu0 0
  %1463 = vmatpush2.bf16.msra.mxu0 0
  %1464 = vmatprep.mubr.bf16.mxu0 0
  %1465 = vmatmul.mubr.bf16.gmra.mxu0 %v1418
  %v1466 = vpop.f32.mrf.mxu0
  %v1467 = vadd.f32 0.0, %v1466
  %v1468 = vpop.f32.mrf.mxu0
  %v1469 = vpop.f32.mrf.mxu0
  %v1470 = vadd.f32 0.0, %v1469
  %v1471 = vpop.f32.mrf.mxu0
  %1472 = vmatprep.mubr.bf16.mxu0 0
  %1473 = vmatmul.mubr.bf16.gmra.mxu0 %v1421
  %v1474 = vpop.f32.mrf.mxu0
  %v1475 = vadd.f32 0.0, %v1474
  %v1476 = vpop.f32.mrf.mxu0
  %v1477 = vpop.f32.mrf.mxu0
  %v1478 = vadd.f32 0.0, %v1477
  %v1479 = vpop.f32.mrf.mxu0
  %1480 = vmatprep.mubr.bf16.mxu0 0
  %1481 = vmatmul.mubr.bf16.gmra.mxu0 %v1424
  %v1482 = vpop.f32.mrf.mxu0
  %v1483 = vadd.f32 0.0, %v1482
  %v1484 = vpop.f32.mrf.mxu0
  %v1485 = vpop.f32.mrf.mxu0
  %v1486 = vadd.f32 0.0, %v1485
  %v1487 = vpop.f32.mrf.mxu0
  %1488 = vmatprep.mubr.bf16.mxu0 0
  %1489 = vmatmul.mubr.bf16.gmra.mxu0 %v1427
  %v1490 = vpop.f32.mrf.mxu0
  %v1491 = vadd.f32 0.0, %v1490
  %v1492 = vpop.f32.mrf.mxu0
  %v1493 = vpop.f32.mrf.mxu0
  %v1494 = vadd.f32 0.0, %v1493
  %v1495 = vpop.f32.mrf.mxu0
  %1496 = vmatprep.mubr.bf16.mxu0 0
  %1497 = vmatmul.mubr.bf16.gmra.mxu0 %v1430
  %v1498 = vpop.f32.mrf.mxu0
  %v1499 = vadd.f32 0.0, %v1498
  %v1500 = vpop.f32.mrf.mxu0
  %v1501 = vpop.f32.mrf.mxu0
  %v1502 = vadd.f32 0.0, %v1501
  %v1503 = vpop.f32.mrf.mxu0
  %1504 = vdwg.mxu0
  %v1508 = vrot.slane %v1475, 4
  %v1509 = vrot.slane %v1478, 4
  %v1510 = vsel %vm394, %v1508, %v1509
  %v1511 = vrot.slane %v1483, 4
  %v1512 = vsel %vm394, %v1509, %v1511
  %1513 = vrot.lane.b32.xlu0 %v1510, 16
  %v1514 = vpop.permute.xlu0 %1513
  %1515 = vrot.lane.b32.xlu0 %v1512, 16
  %v1516 = vpop.permute.xlu0 %1515
  %1517 = vrot.lane.b32.xlu0 %v1511, 16
  %v1518 = vpop.permute.xlu0 %1517
  %1525 = vrot.lane.b32.xlu0 %v1486, 32
  %v1526 = vpop.permute.xlu0 %1525
  %1527 = vrot.lane.b32.xlu0 %v1491, 32
  %v1528 = vpop.permute.xlu0 %1527
  %1529 = vrot.lane.b32.xlu0 %v1494, 32
  %v1530 = vpop.permute.xlu0 %1529
  %v1536 = vrot.slane %v1494, 4
  %v1537 = vrot.slane %v1499, 4
  %v1538 = vsel %vm394, %v1536, %v1537
  %v1539 = vrot.slane %v1502, 4
  %v1540 = vsel %vm394, %v1537, %v1539
  %1541 = vrot.lane.b32.xlu0 %v1538, 48
  %v1542 = vpop.permute.xlu0 %1541
  %1543 = vrot.lane.b32.xlu0 %v1540, 48
  %v1544 = vpop.permute.xlu0 %1543
  %1545 = vrot.lane.b32.xlu0 %v1539, 48
  %v1546 = vpop.permute.xlu0 %1545
  %v1550 = vsel %vm409, %v1467, %v1514
  %v1551 = vsel %vm409, %v1470, %v1516
  %v1552 = vsel %vm409, %v1475, %v1518
  %v1553 = vsel %vm413, %v1550, %v1526
  %v1554 = vsel %vm413, %v1551, %v1528
  %v1555 = vsel %vm413, %v1552, %v1530
  %v1556 = vsel %vm484, %v1553, %v1542
  %v1557 = vsel %vm484, %v1554, %v1544
  %v1558 = vsel %vm484, %v1555, %v1546
  %v1559 = vld [vmem:[%s27] sm:$0xf]
  %v1560 = vld [vmem:[%s27 + $0x4] sm:$0xf]
  %v1561 = vld [vmem:[%s27 + $0x8] sm:$0xf]
  %v1562 = vld [vmem:[%s27 + $0xc] sm:$0xf]
  %v1563 = vld [vmem:[%s27 + $0x10] sm:$0xf]
  %v1564 = vld [vmem:[%s27 + $0x14] sm:$0xf]
  %v1565 = vld [vmem:[%s27 + $0x18] sm:$0xf]
  %v1566 = vld [vmem:[%s27 + $0x1c] sm:$0xf]
  %v1567 = vpack.c.bf16 %v1557, %v1556
  %v1568 = vpack.c.bf16 %v1558, %v1558
  %v1569 = vld [vmem:[%s29] sm:$0x1]
  %v1571 = vlaneseq
  %v1572 = vshrl.u32 %v1571, 7
  %v1573 = vsub.s32 0, %v1572
  %v1574 = vrot.slane %v1569, %v1573
  %v1584 = vunpack.c.l.b16 %v1559
  %v1585 = vunpack.c.l.b16 %v1560
  %v1586 = vunpack.c.l.b16 %v1561
  %v1587 = vunpack.c.l.b16 %v1562
  %v1588 = vunpack.c.l.b16 %v1563
  %v1589 = vunpack.c.l.b16 %v1564
  %v1590 = vunpack.c.l.b16 %v1565
  %v1591 = vunpack.c.l.b16 %v1566
  %v1592 = vpack.c.b16 %v1585, %v1584
  %v1593 = vpack.c.b16 %v1587, %v1586
  %v1594 = vpack.c.b16 %v1589, %v1588
  %v1595 = vpack.c.b16 %v1591, %v1590
  %v1601 = vsel %vm640, %v1567, 0
  %v1604 = vsel %vm640, %v1568, 0
  %1606 = vmatprep.subr.bf16.mxu0 0
  %1607 = vmatpush1.bf16.msra.mxu0 0
  %1608 = vmatprep.subr.bf16.mxu0 0
  %1609 = vmatpush1.bf16.msra.mxu0 0
  %1610 = vmatprep.subr.bf16.mxu0 0
  %1611 = vmatpush1.bf16.msra.mxu0 0
  %1612 = vmatprep.subr.bf16.mxu0 0
  %1613 = vmatpush1.bf16.msra.mxu0 0
  %1614 = vmatprep.subr.bf16.mxu0 0
  %1615 = vmatpush1.bf16.msra.mxu0 %v1595
  %1616 = vmatprep.subr.bf16.mxu0 0
  %1617 = vmatpush1.bf16.msra.mxu0 %v1594
  %1618 = vmatprep.subr.bf16.mxu0 0
  %1619 = vmatpush1.bf16.msra.mxu0 %v1593
  %1620 = vmatprep.subr.bf16.mxu0 0
  %1621 = vmatpush1.bf16.msra.mxu0 %v1592
  %1622 = vmatprep.subr.bf16.mxu0 0
  %1623 = vmatpush2.bf16.msra.mxu0 0
  %1624 = vmatprep.subr.bf16.mxu0 0
  %1625 = vmatpush2.bf16.msra.mxu0 0
  %1626 = vmatprep.subr.bf16.mxu0 0
  %1627 = vmatpush2.bf16.msra.mxu0 0
  %1628 = vmatprep.subr.bf16.mxu0 0
  %1629 = vmatpush2.bf16.msra.mxu0 0
  %1630 = vmatprep.subr.bf16.mxu0 0
  %1631 = vmatpush2.bf16.msra.mxu0 0
  %1632 = vmatprep.subr.bf16.mxu0 0
  %1633 = vmatpush2.bf16.msra.mxu0 0
  %1634 = vmatprep.subr.bf16.mxu0 0
  %1635 = vmatpush2.bf16.msra.mxu0 0
  %1636 = vmatprep.subr.bf16.mxu0 0
  %1637 = vmatpush2.bf16.msra.mxu0 0
  %1638 = vmatprep.mubr.bf16.mxu0 0
  %1639 = vmatmul.mubr.bf16.gmra.mxu0 %v1601
  %v1640 = vpop.f32.mrf.mxu0
  %v1641 = vadd.f32 %v1574, %v1640
  %v1642 = vpop.f32.mrf.mxu0
  %v1643 = vpop.f32.mrf.mxu0
  %v1644 = vadd.f32 %v1574, %v1643
  %v1645 = vpop.f32.mrf.mxu0
  %1646 = vmatprep.mubr.bf16.mxu0 0
  %1647 = vmatmul.mubr.bf16.gmra.mxu0 %v1604
  %v1648 = vpop.f32.mrf.mxu0
  %v1649 = vadd.f32 %v1574, %v1648
  %v1650 = vpop.f32.mrf.mxu0
  %v1651 = vpop.f32.mrf.mxu0
  %v1652 = vpop.f32.mrf.mxu0
  %1653 = vdwg.mxu0
  %v1654 = vadd.f32 %v967, %v1641
  %v1655 = vadd.f32 %v968, %v1644
  %v1656 = vadd.f32 %v969, %v1649
  %v1657 = vld [vmem:[%s31] sm:$0x1]
  %v1658 = vld [vmem:[%s33] sm:$0x1]
  %v1659 = vsel %vm640, %v1654, 0.0
  %1660 = vadd.xlane.f32.xlu0 %v1659
  %v1661 = vpop.xlane.xlu0 %1660
  %v1662 = vsel %vm640, %v1655, 0.0
  %1663 = vadd.xlane.f32.xlu0 %v1662
  %v1664 = vpop.xlane.xlu0 %1663
  %vm1665 = vcmask 519168
  %v1666 = vsel %vm1665, %v1656, 0.0
  %1667 = vadd.xlane.f32.xlu0 %v1666
  %v1668 = vpop.xlane.xlu0 %1667
  %v1669 = vrcp.pop 64.0
  %v1670 = vmul.f32 %v1661, %v1669
  %v1671 = vmul.f32 %v1664, %v1669
  %v1672 = vmul.f32 %v1668, %v1669
  %v1673 = vsub.f32 %v1654, %v1670
  %v1674 = vsub.f32 %v1655, %v1671
  %v1675 = vsub.f32 %v1656, %v1672
  %v1676 = vmul.f32 %v1673, %v1673
  %v1677 = vmul.f32 %v1674, %v1674
  %v1678 = vmul.f32 %v1675, %v1675
  %v1679 = vsel %vm640, %v1676, 0.0
  %1680 = vadd.xlane.f32.xlu0 %v1679
  %v1681 = vpop.xlane.xlu0 %1680
  %v1682 = vsel %vm640, %v1677, 0.0
  %1683 = vadd.xlane.f32.xlu0 %v1682
  %v1684 = vpop.xlane.xlu0 %1683
  %v1685 = vsel %vm1665, %v1678, 0.0
  %1686 = vadd.xlane.f32.xlu0 %v1685
  %v1687 = vpop.xlane.xlu0 %1686
  %v1688 = vmul.f32 %v1681, %v1669
  %v1689 = vmul.f32 %v1684, %v1669
  %v1690 = vmul.f32 %v1687, %v1669
  %v1691 = vadd.f32 %v1688, 1e-05
  %v1692 = vadd.f32 %v1689, 1e-05
  %v1693 = vadd.f32 %v1690, 1e-05
  %v1694 = vrsqrt.pop %v1691
  %v1695 = vrsqrt.pop %v1692
  %v1696 = vrsqrt.pop %v1693
  %v1697 = vmul.f32 %v1673, %v1694
  %v1698 = vmul.f32 %v1674, %v1695
  %v1699 = vmul.f32 %v1675, %v1696
  %v1701 = vlaneseq
  %v1702 = vshrl.u32 %v1701, 7
  %v1703 = vsub.s32 0, %v1702
  %v1704 = vrot.slane %v1657, %v1703
  %v1706 = vmul.f32 %v1697, %v1704
  %v1707 = vmul.f32 %v1698, %v1704
  %v1708 = vmul.f32 %v1699, %v1704
  %v1710 = vlaneseq
  %v1711 = vshrl.u32 %v1710, 7
  %v1712 = vsub.s32 0, %v1711
  %v1713 = vrot.slane %v1658, %v1712
  %v1715 = vadd.f32 %v1706, %v1713
  %v1716 = vadd.f32 %v1707, %v1713
  %v1717 = vadd.f32 %v1708, %v1713
  %v1718 = vld [vmem:[%s35] sm:$0xf]
  %v1719 = vld [vmem:[%s35 + $0x4] sm:$0xf]
  %v1720 = vld [vmem:[%s35 + $0x8] sm:$0xf]
  %v1721 = vld [vmem:[%s35 + $0xc] sm:$0xf]
  %v1722 = vld [vmem:[%s35 + $0x10] sm:$0xf]
  %v1723 = vld [vmem:[%s35 + $0x14] sm:$0xf]
  %v1724 = vld [vmem:[%s35 + $0x18] sm:$0xf]
  %v1725 = vld [vmem:[%s35 + $0x1c] sm:$0xf]
  %v1726 = vpack.c.bf16 %v1716, %v1715
  %v1727 = vpack.c.bf16 %v1717, %v1717
  %v1728 = vld [vmem:[%s37] sm:$0x1]
  %v1730 = vlaneseq
  %v1731 = vshrl.u32 %v1730, 7
  %v1732 = vsub.s32 0, %v1731
  %v1733 = vrot.slane %v1728, %v1732
  %v1743 = vunpack.c.l.b16 %v1718
  %v1744 = vunpack.c.l.b16 %v1719
  %v1745 = vunpack.c.l.b16 %v1720
  %v1746 = vunpack.c.l.b16 %v1721
  %v1747 = vunpack.c.l.b16 %v1722
  %v1748 = vunpack.c.l.b16 %v1723
  %v1749 = vunpack.c.l.b16 %v1724
  %v1750 = vunpack.c.l.b16 %v1725
  %v1751 = vpack.c.b16 %v1744, %v1743
  %v1752 = vpack.c.b16 %v1746, %v1745
  %v1753 = vpack.c.b16 %v1748, %v1747
  %v1754 = vpack.c.b16 %v1750, %v1749
  %v1760 = vsel %vm640, %v1726, 0
  %v1763 = vsel %vm640, %v1727, 0
  %1765 = vmatprep.subr.bf16.mxu0 0
  %1766 = vmatpush1.bf16.msra.mxu0 0
  %1767 = vmatprep.subr.bf16.mxu0 0
  %1768 = vmatpush1.bf16.msra.mxu0 0
  %1769 = vmatprep.subr.bf16.mxu0 0
  %1770 = vmatpush1.bf16.msra.mxu0 0
  %1771 = vmatprep.subr.bf16.mxu0 0
  %1772 = vmatpush1.bf16.msra.mxu0 0
  %1773 = vmatprep.subr.bf16.mxu0 0
  %1774 = vmatpush1.bf16.msra.mxu0 %v1754
  %1775 = vmatprep.subr.bf16.mxu0 0
  %1776 = vmatpush1.bf16.msra.mxu0 %v1753
  %1777 = vmatprep.subr.bf16.mxu0 0
  %1778 = vmatpush1.bf16.msra.mxu0 %v1752
  %1779 = vmatprep.subr.bf16.mxu0 0
  %1780 = vmatpush1.bf16.msra.mxu0 %v1751
  %1781 = vmatprep.subr.bf16.mxu0 0
  %1782 = vmatpush2.bf16.msra.mxu0 0
  %1783 = vmatprep.subr.bf16.mxu0 0
  %1784 = vmatpush2.bf16.msra.mxu0 0
  %1785 = vmatprep.subr.bf16.mxu0 0
  %1786 = vmatpush2.bf16.msra.mxu0 0
  %1787 = vmatprep.subr.bf16.mxu0 0
  %1788 = vmatpush2.bf16.msra.mxu0 0
  %1789 = vmatprep.subr.bf16.mxu0 0
  %1790 = vmatpush2.bf16.msra.mxu0 0
  %1791 = vmatprep.subr.bf16.mxu0 0
  %1792 = vmatpush2.bf16.msra.mxu0 0
  %1793 = vmatprep.subr.bf16.mxu0 0
  %1794 = vmatpush2.bf16.msra.mxu0 0
  %1795 = vmatprep.subr.bf16.mxu0 0
  %1796 = vmatpush2.bf16.msra.mxu0 0
  %1797 = vmatprep.mubr.bf16.mxu0 0
  %1798 = vmatmul.mubr.bf16.gmra.mxu0 %v1760
  %v1799 = vpop.f32.mrf.mxu0
  %v1800 = vadd.f32 %v1733, %v1799
  %v1801 = vpop.f32.mrf.mxu0
  %v1802 = vpop.f32.mrf.mxu0
  %v1803 = vadd.f32 %v1733, %v1802
  %v1804 = vpop.f32.mrf.mxu0
  %1805 = vmatprep.mubr.bf16.mxu0 0
  %1806 = vmatmul.mubr.bf16.gmra.mxu0 %v1763
  %v1807 = vpop.f32.mrf.mxu0
  %v1808 = vadd.f32 %v1733, %v1807
  %v1809 = vpop.f32.mrf.mxu0
  %v1810 = vpop.f32.mrf.mxu0
  %v1811 = vpop.f32.mrf.mxu0
  %1812 = vdwg.mxu0
  %v1813 = vmax.f32 %v1800, 0.0
  %v1814 = vmax.f32 %v1803, 0.0
  %v1815 = vmax.f32 %v1808, 0.0
  %v1816 = vld [vmem:[%s39] sm:$0xf]
  %v1817 = vld [vmem:[%s39 + $0x4] sm:$0xf]
  %v1818 = vld [vmem:[%s39 + $0x8] sm:$0xf]
  %v1819 = vld [vmem:[%s39 + $0xc] sm:$0xf]
  %v1820 = vld [vmem:[%s39 + $0x10] sm:$0xf]
  %v1821 = vld [vmem:[%s39 + $0x14] sm:$0xf]
  %v1822 = vld [vmem:[%s39 + $0x18] sm:$0xf]
  %v1823 = vld [vmem:[%s39 + $0x1c] sm:$0xf]
  %v1824 = vld [vmem:[%s39 + $0x20] sm:$0xf]
  %v1825 = vld [vmem:[%s39 + $0x24] sm:$0xf]
  %v1826 = vld [vmem:[%s39 + $0x28] sm:$0xf]
  %v1827 = vld [vmem:[%s39 + $0x2c] sm:$0xf]
  %v1828 = vld [vmem:[%s39 + $0x30] sm:$0xf]
  %v1829 = vld [vmem:[%s39 + $0x34] sm:$0xf]
  %v1830 = vld [vmem:[%s39 + $0x38] sm:$0xf]
  %v1831 = vld [vmem:[%s39 + $0x3c] sm:$0xf]
  %v1832 = vpack.c.bf16 %v1814, %v1813
  %v1833 = vpack.c.bf16 %v1815, %v1815
  %v1850 = vunpack.c.l.b16 %v1816
  %v1851 = vunpack.c.l.b16 %v1817
  %v1852 = vunpack.c.l.b16 %v1818
  %v1853 = vunpack.c.l.b16 %v1819
  %v1854 = vunpack.c.l.b16 %v1820
  %v1855 = vunpack.c.l.b16 %v1821
  %v1856 = vunpack.c.l.b16 %v1822
  %v1857 = vunpack.c.l.b16 %v1823
  %v1858 = vunpack.c.l.b16 %v1824
  %v1859 = vunpack.c.l.b16 %v1825
  %v1860 = vunpack.c.l.b16 %v1826
  %v1861 = vunpack.c.l.b16 %v1827
  %v1862 = vunpack.c.l.b16 %v1828
  %v1863 = vunpack.c.l.b16 %v1829
  %v1864 = vunpack.c.l.b16 %v1830
  %v1865 = vunpack.c.l.b16 %v1831
  %v1866 = vpack.c.b16 %v1851, %v1850
  %v1867 = vpack.c.b16 %v1853, %v1852
  %v1868 = vpack.c.b16 %v1855, %v1854
  %v1869 = vpack.c.b16 %v1857, %v1856
  %v1870 = vpack.c.b16 %v1859, %v1858
  %v1871 = vpack.c.b16 %v1861, %v1860
  %v1872 = vpack.c.b16 %v1863, %v1862
  %v1873 = vpack.c.b16 %v1865, %v1864
  %1882 = vmatprep.subr.bf16.mxu0 0
  %1883 = vmatpush1.bf16.msra.mxu0 %v1873
  %1884 = vmatprep.subr.bf16.mxu0 0
  %1885 = vmatpush1.bf16.msra.mxu0 %v1872
  %1886 = vmatprep.subr.bf16.mxu0 0
  %1887 = vmatpush1.bf16.msra.mxu0 %v1871
  %1888 = vmatprep.subr.bf16.mxu0 0
  %1889 = vmatpush1.bf16.msra.mxu0 %v1870
  %1890 = vmatprep.subr.bf16.mxu0 0
  %1891 = vmatpush1.bf16.msra.mxu0 %v1869
  %1892 = vmatprep.subr.bf16.mxu0 0
  %1893 = vmatpush1.bf16.msra.mxu0 %v1868
  %1894 = vmatprep.subr.bf16.mxu0 0
  %1895 = vmatpush1.bf16.msra.mxu0 %v1867
  %1896 = vmatprep.subr.bf16.mxu0 0
  %1897 = vmatpush1.bf16.msra.mxu0 %v1866
  %1898 = vmatprep.subr.bf16.mxu0 0
  %1899 = vmatpush2.bf16.msra.mxu0 0
  %1900 = vmatprep.subr.bf16.mxu0 0
  %1901 = vmatpush2.bf16.msra.mxu0 0
  %1902 = vmatprep.subr.bf16.mxu0 0
  %1903 = vmatpush2.bf16.msra.mxu0 0
  %1904 = vmatprep.subr.bf16.mxu0 0
  %1905 = vmatpush2.bf16.msra.mxu0 0
  %1906 = vmatprep.subr.bf16.mxu0 0
  %1907 = vmatpush2.bf16.msra.mxu0 0
  %1908 = vmatprep.subr.bf16.mxu0 0
  %1909 = vmatpush2.bf16.msra.mxu0 0
  %1910 = vmatprep.subr.bf16.mxu0 0
  %1911 = vmatpush2.bf16.msra.mxu0 0
  %1912 = vmatprep.subr.bf16.mxu0 0
  %1913 = vmatpush2.bf16.msra.mxu0 0
  %1914 = vmatprep.mubr.bf16.mxu0 0
  %1915 = vmatmul.mubr.bf16.gmra.mxu0 %v1832
  %v1916 = vpop.f32.mrf.mxu0
  %v1917 = vadd.f32 0.0, %v1916
  %v1918 = vpop.f32.mrf.mxu0
  %v1919 = vpop.f32.mrf.mxu0
  %v1920 = vadd.f32 0.0, %v1919
  %v1921 = vpop.f32.mrf.mxu0
  %1922 = vmatprep.mubr.bf16.mxu0 0
  %1923 = vmatmul.mubr.bf16.gmra.mxu0 %v1833
  %v1924 = vpop.f32.mrf.mxu0
  %v1925 = vadd.f32 0.0, %v1924
  %v1926 = vpop.f32.mrf.mxu0
  %v1927 = vpop.f32.mrf.mxu0
  %v1928 = vpop.f32.mrf.mxu0
  %1929 = vdwg.mxu0
  %v1930 = vadd.f32 %v1715, %v1917
  %v1931 = vadd.f32 %v1716, %v1920
  %v1932 = vadd.f32 %v1717, %v1925
  %v1933 = vld [vmem:[%s41] sm:$0x1]
  %v1935 = vlaneseq
  %v1936 = vshrl.u32 %v1935, 7
  %v1937 = vsub.s32 0, %v1936
  %v1938 = vrot.slane %v1933, %v1937
  %v1940 = vadd.f32 %v1930, %v1938
  %v1941 = vadd.f32 %v1931, %v1938
  %v1942 = vadd.f32 %v1932, %v1938
  %v1943 = vld [vmem:[%s43] sm:$0x1]
  %v1944 = vld [vmem:[%s45] sm:$0x1]
  %v1945 = vsel %vm640, %v1940, 0.0
  %1946 = vadd.xlane.f32.xlu0 %v1945
  %v1947 = vpop.xlane.xlu0 %1946
  %v1948 = vsel %vm640, %v1941, 0.0
  %1949 = vadd.xlane.f32.xlu0 %v1948
  %v1950 = vpop.xlane.xlu0 %1949
  %v1951 = vsel %vm1665, %v1942, 0.0
  %1952 = vadd.xlane.f32.xlu0 %v1951
  %v1953 = vpop.xlane.xlu0 %1952
  %v1954 = vmul.f32 %v1947, %v1669
  %v1955 = vmul.f32 %v1950, %v1669
  %v1956 = vmul.f32 %v1953, %v1669
  %v1957 = vsub.f32 %v1940, %v1954
  %v1958 = vsub.f32 %v1941, %v1955
  %v1959 = vsub.f32 %v1942, %v1956
  %v1960 = vmul.f32 %v1957, %v1957
  %v1961 = vmul.f32 %v1958, %v1958
  %v1962 = vmul.f32 %v1959, %v1959
  %v1963 = vsel %vm640, %v1960, 0.0
  %1964 = vadd.xlane.f32.xlu0 %v1963
  %v1965 = vpop.xlane.xlu0 %1964
  %v1966 = vsel %vm640, %v1961, 0.0
  %1967 = vadd.xlane.f32.xlu0 %v1966
  %v1968 = vpop.xlane.xlu0 %1967
  %v1969 = vsel %vm1665, %v1962, 0.0
  %1970 = vadd.xlane.f32.xlu0 %v1969
  %v1971 = vpop.xlane.xlu0 %1970
  %v1972 = vmul.f32 %v1965, %v1669
  %v1973 = vmul.f32 %v1968, %v1669
  %v1974 = vmul.f32 %v1971, %v1669
  %v1975 = vadd.f32 %v1972, 1e-05
  %v1976 = vadd.f32 %v1973, 1e-05
  %v1977 = vadd.f32 %v1974, 1e-05
  %v1978 = vrsqrt.pop %v1975
  %v1979 = vrsqrt.pop %v1976
  %v1980 = vrsqrt.pop %v1977
  %v1981 = vmul.f32 %v1957, %v1978
  %v1982 = vmul.f32 %v1958, %v1979
  %v1983 = vmul.f32 %v1959, %v1980
  %v1985 = vlaneseq
  %v1986 = vshrl.u32 %v1985, 7
  %v1987 = vsub.s32 0, %v1986
  %v1988 = vrot.slane %v1943, %v1987
  %v1990 = vmul.f32 %v1981, %v1988
  %v1991 = vmul.f32 %v1982, %v1988
  %v1992 = vmul.f32 %v1983, %v1988
  %v1994 = vlaneseq
  %v1995 = vshrl.u32 %v1994, 7
  %v1996 = vsub.s32 0, %v1995
  %v1997 = vrot.slane %v1944, %v1996
  %v1999 = vadd.f32 %v1990, %v1997
  %v2000 = vadd.f32 %v1991, %v1997
  %v2001 = vadd.f32 %v1992, %v1997
  %s2002 = scalar_lea.vmem %s23, 64
  %v2003 = vld [vmem:[%s2002] sm:$0xff]
  %v2004 = vld [vmem:[%s2002 + $0x8] sm:$0xff]
  %v2005 = vld [vmem:[%s2002 + $0x10] sm:$0xff]
  %v2006 = vld [vmem:[%s2002 + $0x18] sm:$0xff]
  %v2007 = vld [vmem:[%s2002 + $0x20] sm:$0xff]
  %v2008 = vld [vmem:[%s2002 + $0x28] sm:$0xff]
  %v2009 = vld [vmem:[%s2002 + $0x30] sm:$0xff]
  %v2010 = vld [vmem:[%s2002 + $0x38] sm:$0xff]
  %v2011 = vpack.c.bf16 %v2000, %v1999
  %v2012 = vpack.c.bf16 %v2001, %v2001
  %s2013 = scalar_lea.vmem %s25, 2
  %v2014 = vld [vmem:[%s2013] sm:$0x3]
  %v2016 = vlaneseq
  %v2017 = vshrl.u32 %v2016, 7
  %v2018 = vsub.s32 0, %v2017
  %v2019 = vrot.slane %v2014, %v2018
  %v2020 = vlaneseq
  %v2021 = vshrl.u32 %v2020, 7
  %v2022 = vsub.s32 1, %v2021
  %v2023 = vrot.slane %v2014, %v2022
  %v2034 = vunpack.c.l.b16 %v2003
  %v2035 = vunpack.c.h.b16 %v2003
  %v2036 = vunpack.c.l.b16 %v2004
  %v2037 = vunpack.c.h.b16 %v2004
  %v2038 = vunpack.c.l.b16 %v2005
  %v2039 = vunpack.c.h.b16 %v2005
  %v2040 = vunpack.c.l.b16 %v2006
  %v2041 = vunpack.c.h.b16 %v2006
  %v2042 = vunpack.c.l.b16 %v2007
  %v2043 = vunpack.c.h.b16 %v2007
  %v2044 = vunpack.c.l.b16 %v2008
  %v2045 = vunpack.c.h.b16 %v2008
  %v2046 = vunpack.c.l.b16 %v2009
  %v2047 = vunpack.c.h.b16 %v2009
  %v2048 = vunpack.c.l.b16 %v2010
  %v2049 = vunpack.c.h.b16 %v2010
  %v2050 = vpack.c.b16 %v2036, %v2034
  %v2051 = vpack.c.b16 %v2037, %v2035
  %v2052 = vpack.c.b16 %v2040, %v2038
  %v2053 = vpack.c.b16 %v2041, %v2039
  %v2054 = vpack.c.b16 %v2044, %v2042
  %v2055 = vpack.c.b16 %v2045, %v2043
  %v2056 = vpack.c.b16 %v2048, %v2046
  %v2057 = vpack.c.b16 %v2049, %v2047
  %v2067 = vsel %vm640, %v2011, 0
  %v2070 = vsel %vm640, %v2012, 0
  %2072 = vmatprep.subr.bf16.mxu0 0
  %2073 = vmatpush1.bf16.msra.mxu0 0
  %2074 = vmatprep.subr.bf16.mxu0 0
  %2075 = vmatpush1.bf16.msra.mxu0 0
  %2076 = vmatprep.subr.bf16.mxu0 0
  %2077 = vmatpush1.bf16.msra.mxu0 0
  %2078 = vmatprep.subr.bf16.mxu0 0
  %2079 = vmatpush1.bf16.msra.mxu0 0
  %2080 = vmatprep.subr.bf16.mxu0 %v2057
  %2081 = vmatpush1.bf16.msra.mxu0 %v2056
  %2082 = vmatprep.subr.bf16.mxu0 %v2055
  %2083 = vmatpush1.bf16.msra.mxu0 %v2054
  %2084 = vmatprep.subr.bf16.mxu0 %v2053
  %2085 = vmatpush1.bf16.msra.mxu0 %v2052
  %2086 = vmatprep.subr.bf16.mxu0 %v2051
  %2087 = vmatpush1.bf16.msra.mxu0 %v2050
  %2088 = vmatprep.subr.bf16.mxu0 0
  %2089 = vmatpush2.bf16.msra.mxu0 0
  %2090 = vmatprep.subr.bf16.mxu0 0
  %2091 = vmatpush2.bf16.msra.mxu0 0
  %2092 = vmatprep.subr.bf16.mxu0 0
  %2093 = vmatpush2.bf16.msra.mxu0 0
  %2094 = vmatprep.subr.bf16.mxu0 0
  %2095 = vmatpush2.bf16.msra.mxu0 0
  %2096 = vmatprep.subr.bf16.mxu0 0
  %2097 = vmatpush2.bf16.msra.mxu0 0
  %2098 = vmatprep.subr.bf16.mxu0 0
  %2099 = vmatpush2.bf16.msra.mxu0 0
  %2100 = vmatprep.subr.bf16.mxu0 0
  %2101 = vmatpush2.bf16.msra.mxu0 0
  %2102 = vmatprep.subr.bf16.mxu0 0
  %2103 = vmatpush2.bf16.msra.mxu0 0
  %2104 = vmatprep.mubr.bf16.mxu0 0
  %2105 = vmatmul.mubr.bf16.gmra.mxu0 %v2067
  %v2106 = vpop.f32.mrf.mxu0
  %v2107 = vadd.f32 %v2019, %v2106
  %v2108 = vpop.f32.mrf.mxu0
  %v2109 = vadd.f32 %v2023, %v2108
  %v2110 = vpop.f32.mrf.mxu0
  %v2111 = vadd.f32 %v2019, %v2110
  %v2112 = vpop.f32.mrf.mxu0
  %v2113 = vadd.f32 %v2023, %v2112
  %2114 = vmatprep.mubr.bf16.mxu0 0
  %2115 = vmatmul.mubr.bf16.gmra.mxu0 %v2070
  %v2116 = vpop.f32.mrf.mxu0
  %v2117 = vadd.f32 %v2019, %v2116
  %v2118 = vpop.f32.mrf.mxu0
  %v2119 = vadd.f32 %v2023, %v2118
  %v2120 = vpop.f32.mrf.mxu0
  %v2121 = vpop.f32.mrf.mxu0
  %2122 = vdwg.mxu0
  %v2126 = vrot.slane %v2107, 4
  %v2127 = vrot.slane %v2111, 4
  %v2128 = vsel %vm394, %v2126, %v2127
  %v2129 = vrot.slane %v2117, 4
  %v2130 = vsel %vm394, %v2127, %v2129
  %2131 = vrot.lane.b32.xlu0 %v2126, 112
  %v2132 = vpop.permute.xlu0 %2131
  %2133 = vrot.lane.b32.xlu0 %v2128, 112
  %v2134 = vpop.permute.xlu0 %2133
  %2135 = vrot.lane.b32.xlu0 %v2130, 112
  %v2136 = vpop.permute.xlu0 %2135
  %2140 = vrot.lane.b32.xlu0 %v2107, 96
  %v2141 = vpop.permute.xlu0 %2140
  %2142 = vrot.lane.b32.xlu0 %v2111, 96
  %v2143 = vpop.permute.xlu0 %2142
  %2144 = vrot.lane.b32.xlu0 %v2117, 96
  %v2145 = vpop.permute.xlu0 %2144
  %2149 = vrot.lane.b32.xlu0 %v2126, 80
  %v2150 = vpop.permute.xlu0 %2149
  %2151 = vrot.lane.b32.xlu0 %v2128, 80
  %v2152 = vpop.permute.xlu0 %2151
  %2153 = vrot.lane.b32.xlu0 %v2130, 80
  %v2154 = vpop.permute.xlu0 %2153
  %v2158 = vsel %vm394, %v2117, %v2132
  %v2159 = vsel %vm394, %v2145, %v2150
  %v2163 = vrot.slane %v2109, 4
  %v2164 = vrot.slane %v2113, 4
  %v2165 = vsel %vm394, %v2163, %v2164
  %v2166 = vrot.slane %v2119, 4
  %v2167 = vsel %vm394, %v2164, %v2166
  %2168 = vrot.lane.b32.xlu0 %v2163, 112
  %v2169 = vpop.permute.xlu0 %2168
  %2170 = vrot.lane.b32.xlu0 %v2165, 112
  %v2171 = vpop.permute.xlu0 %2170
  %2172 = vrot.lane.b32.xlu0 %v2167, 112
  %v2173 = vpop.permute.xlu0 %2172
  %2177 = vrot.lane.b32.xlu0 %v2109, 96
  %v2178 = vpop.permute.xlu0 %2177
  %2179 = vrot.lane.b32.xlu0 %v2113, 96
  %v2180 = vpop.permute.xlu0 %2179
  %2181 = vrot.lane.b32.xlu0 %v2119, 96
  %v2182 = vpop.permute.xlu0 %2181
  %2186 = vrot.lane.b32.xlu0 %v2163, 80
  %v2187 = vpop.permute.xlu0 %2186
  %2188 = vrot.lane.b32.xlu0 %v2165, 80
  %v2189 = vpop.permute.xlu0 %2188
  %2190 = vrot.lane.b32.xlu0 %v2167, 80
  %v2191 = vpop.permute.xlu0 %2190
  %v2195 = vsel %vm394, %v2119, %v2169
  %v2196 = vsel %vm394, %v2182, %v2187
  %v2197 = vpack.c.bf16 %v2111, %v2107
  %v2198 = vpack.c.bf16 %v2134, %v2158
  %v2199 = vpack.c.bf16 %v2141, %v2136
  %v2200 = vpack.c.bf16 %v2159, %v2143
  %v2201 = vpack.c.bf16 %v2154, %v2152
  %2207 = vrot.lane.b32.xlu0 %v2197, 64
  %v2208 = vpop.permute.xlu0 %2207
  %2209 = vrot.lane.b32.xlu0 %v2198, 64
  %v2210 = vpop.permute.xlu0 %2209
  %2211 = vrot.lane.b32.xlu0 %v2199, 64
  %v2212 = vpop.permute.xlu0 %2211
  %2213 = vrot.lane.b32.xlu0 %v2200, 64
  %v2214 = vpop.permute.xlu0 %2213
  %2215 = vrot.lane.b32.xlu0 %v2201, 64
  %v2216 = vpop.permute.xlu0 %2215
  %v2218 = vsel %vm409, %v2197, 0
  %v2221 = vsel %vm409, %v2198, 0
  %v2224 = vsel %vm409, %v2199, 0
  %v2227 = vsel %vm409, %v2200, 0
  %v2230 = vsel %vm409, %v2201, 0
  %v2233 = vsel %vm409, %v2208, 0
  %v2236 = vsel %vm409, %v2210, 0
  %v2239 = vsel %vm409, %v2212, 0
  %v2242 = vsel %vm409, %v2214, 0
  %v2245 = vsel %vm409, %v2216, 0
  %2247 = vmatprep.subr.bf16.mxu0 0
  %2248 = vmatpush1.bf16.xpose.msra.mxu0 0
  %2249 = vmatprep.subr.bf16.mxu0 0
  %2250 = vmatpush1.bf16.xpose.msra.mxu0 0
  %2251 = vmatprep.subr.bf16.mxu0 0
  %2252 = vmatpush1.bf16.xpose.msra.mxu0 0
  %2253 = vmatprep.subr.bf16.mxu0 0
  %2254 = vmatpush1.bf16.xpose.msra.mxu0 %v2245
  %2255 = vmatprep.subr.bf16.mxu0 0
  %2256 = vmatpush1.bf16.xpose.msra.mxu0 %v2242
  %2257 = vmatprep.subr.bf16.mxu0 0
  %2258 = vmatpush1.bf16.xpose.msra.mxu0 %v2239
  %2259 = vmatprep.subr.bf16.mxu0 0
  %2260 = vmatpush1.bf16.xpose.msra.mxu0 %v2236
  %2261 = vmatprep.subr.bf16.mxu0 0
  %2262 = vmatpush1.bf16.xpose.msra.mxu0 %v2233
  %2263 = vmatprep.subr.bf16.mxu0 0
  %2264 = vmatpush2.bf16.xpose.msra.mxu0 0
  %2265 = vmatprep.subr.bf16.mxu0 0
  %2266 = vmatpush2.bf16.xpose.msra.mxu0 0
  %2267 = vmatprep.subr.bf16.mxu0 0
  %2268 = vmatpush2.bf16.xpose.msra.mxu0 0
  %2269 = vmatprep.subr.bf16.mxu0 0
  %2270 = vmatpush2.bf16.xpose.msra.mxu0 0
  %2271 = vmatprep.subr.bf16.mxu0 0
  %2272 = vmatpush2.bf16.xpose.msra.mxu0 0
  %2273 = vmatprep.subr.bf16.mxu0 0
  %2274 = vmatpush2.bf16.xpose.msra.mxu0 0
  %2275 = vmatprep.subr.bf16.mxu0 0
  %2276 = vmatpush2.bf16.xpose.msra.mxu0 0
  %2277 = vmatprep.subr.bf16.mxu0 0
  %2278 = vmatpush2.bf16.xpose.msra.mxu0 0
  %2279 = vmatprep.mubr.bf16.mxu0 0
  %2280 = vmatmul.mubr.bf16.gmra.mxu0 %v2218
  %v2281 = vpop.f32.mrf.mxu0
  %v2282 = vadd.f32 %v970, %v2281
  %v2283 = vpop.f32.mrf.mxu0
  %v2284 = vpop.f32.mrf.mxu0
  %v2285 = vadd.f32 %v971, %v2284
  %v2286 = vpop.f32.mrf.mxu0
  %2287 = vmatprep.mubr.bf16.mxu0 0
  %2288 = vmatmul.mubr.bf16.gmra.mxu0 %v2221
  %v2289 = vpop.f32.mrf.mxu0
  %v2290 = vadd.f32 %v972, %v2289
  %v2291 = vpop.f32.mrf.mxu0
  %v2292 = vpop.f32.mrf.mxu0
  %v2293 = vadd.f32 %v973, %v2292
  %v2294 = vpop.f32.mrf.mxu0
  %2295 = vmatprep.mubr.bf16.mxu0 0
  %2296 = vmatmul.mubr.bf16.gmra.mxu0 %v2224
  %v2297 = vpop.f32.mrf.mxu0
  %v2298 = vadd.f32 %v974, %v2297
  %v2299 = vpop.f32.mrf.mxu0
  %v2300 = vpop.f32.mrf.mxu0
  %v2301 = vadd.f32 %v975, %v2300
  %v2302 = vpop.f32.mrf.mxu0
  %2303 = vmatprep.mubr.bf16.mxu0 0
  %2304 = vmatmul.mubr.bf16.gmra.mxu0 %v2227
  %v2305 = vpop.f32.mrf.mxu0
  %v2306 = vadd.f32 %v976, %v2305
  %v2307 = vpop.f32.mrf.mxu0
  %v2308 = vpop.f32.mrf.mxu0
  %v2309 = vadd.f32 %v977, %v2308
  %v2310 = vpop.f32.mrf.mxu0
  %2311 = vmatprep.mubr.bf16.mxu0 0
  %2312 = vmatmul.mubr.bf16.gmra.mxu0 %v2230
  %v2313 = vpop.f32.mrf.mxu0
  %v2314 = vadd.f32 %v978, %v2313
  %v2315 = vpop.f32.mrf.mxu0
  %v2316 = vpop.f32.mrf.mxu0
  %v2317 = vadd.f32 %v979, %v2316
  %v2318 = vpop.f32.mrf.mxu0
  %2319 = vdwg.mxu0
  %v2320 = vsel %vm1296, %v2282, -inf
  %2321 = vmax.xlane.f32.xlu0 %v2320
  %v2322 = vpop.xlane.xlu0 %2321
  %v2323 = vsel %vm1296, %v2285, -inf
  %2324 = vmax.xlane.f32.xlu0 %v2323
  %v2325 = vpop.xlane.xlu0 %2324
  %v2326 = vsel %vm1296, %v2290, -inf
  %2327 = vmax.xlane.f32.xlu0 %v2326
  %v2328 = vpop.xlane.xlu0 %2327
  %v2329 = vsel %vm1296, %v2293, -inf
  %2330 = vmax.xlane.f32.xlu0 %v2329
  %v2331 = vpop.xlane.xlu0 %2330
  %v2332 = vsel %vm1296, %v2298, -inf
  %2333 = vmax.xlane.f32.xlu0 %v2332
  %v2334 = vpop.xlane.xlu0 %2333
  %v2335 = vsel %vm1296, %v2301, -inf
  %2336 = vmax.xlane.f32.xlu0 %v2335
  %v2337 = vpop.xlane.xlu0 %2336
  %v2338 = vsel %vm1296, %v2306, -inf
  %2339 = vmax.xlane.f32.xlu0 %v2338
  %v2340 = vpop.xlane.xlu0 %2339
  %v2341 = vsel %vm1296, %v2309, -inf
  %2342 = vmax.xlane.f32.xlu0 %v2341
  %v2343 = vpop.xlane.xlu0 %2342
  %v2344 = vsel %vm1296, %v2314, -inf
  %2345 = vmax.xlane.f32.xlu0 %v2344
  %v2346 = vpop.xlane.xlu0 %2345
  %v2347 = vsel %vm1296, %v2317, -inf
  %2348 = vmax.xlane.f32.xlu0 %v2347
  %v2349 = vpop.xlane.xlu0 %2348
  %v2350 = vsub.f32 %v2282, %v2322
  %v2351 = vsub.f32 %v2285, %v2325
  %v2352 = vsub.f32 %v2290, %v2328
  %v2353 = vsub.f32 %v2293, %v2331
  %v2354 = vsub.f32 %v2298, %v2334
  %v2355 = vsub.f32 %v2301, %v2337
  %v2356 = vsub.f32 %v2306, %v2340
  %v2357 = vsub.f32 %v2309, %v2343
  %v2358 = vsub.f32 %v2314, %v2346
  %v2359 = vsub.f32 %v2317, %v2349
  %v2360 = vmul.f32 %v2350, 1.442695
  %v2361 = vpow.pop %v2360
  %v2362 = vmul.f32 %v2351, 1.442695
  %v2363 = vpow.pop %v2362
  %v2364 = vmul.f32 %v2352, 1.442695
  %v2365 = vpow.pop %v2364
  %v2366 = vmul.f32 %v2353, 1.442695
  %v2367 = vpow.pop %v2366
  %v2368 = vmul.f32 %v2354, 1.442695
  %v2369 = vpow.pop %v2368
  %v2370 = vmul.f32 %v2355, 1.442695
  %v2371 = vpow.pop %v2370
  %v2372 = vmul.f32 %v2356, 1.442695
  %v2373 = vpow.pop %v2372
  %v2374 = vmul.f32 %v2357, 1.442695
  %v2375 = vpow.pop %v2374
  %v2376 = vmul.f32 %v2358, 1.442695
  %v2377 = vpow.pop %v2376
  %v2378 = vmul.f32 %v2359, 1.442695
  %v2379 = vpow.pop %v2378
  %v2380 = vsel %vm1296, %v2361, 0.0
  %2381 = vadd.xlane.f32.xlu0 %v2380
  %v2382 = vpop.xlane.xlu0 %2381
  %v2383 = vsel %vm1296, %v2363, 0.0
  %2384 = vadd.xlane.f32.xlu0 %v2383
  %v2385 = vpop.xlane.xlu0 %2384
  %v2386 = vsel %vm1296, %v2365, 0.0
  %2387 = vadd.xlane.f32.xlu0 %v2386
  %v2388 = vpop.xlane.xlu0 %2387
  %v2389 = vsel %vm1296, %v2367, 0.0
  %2390 = vadd.xlane.f32.xlu0 %v2389
  %v2391 = vpop.xlane.xlu0 %2390
  %v2392 = vsel %vm1296, %v2369, 0.0
  %2393 = vadd.xlane.f32.xlu0 %v2392
  %v2394 = vpop.xlane.xlu0 %2393
  %v2395 = vsel %vm1296, %v2371, 0.0
  %2396 = vadd.xlane.f32.xlu0 %v2395
  %v2397 = vpop.xlane.xlu0 %2396
  %v2398 = vsel %vm1296, %v2373, 0.0
  %2399 = vadd.xlane.f32.xlu0 %v2398
  %v2400 = vpop.xlane.xlu0 %2399
  %v2401 = vsel %vm1296, %v2375, 0.0
  %2402 = vadd.xlane.f32.xlu0 %v2401
  %v2403 = vpop.xlane.xlu0 %2402
  %v2404 = vsel %vm1296, %v2377, 0.0
  %2405 = vadd.xlane.f32.xlu0 %v2404
  %v2406 = vpop.xlane.xlu0 %2405
  %v2407 = vsel %vm1296, %v2379, 0.0
  %2408 = vadd.xlane.f32.xlu0 %v2407
  %v2409 = vpop.xlane.xlu0 %2408
  %v2410 = vrcp.pop %v2382
  %v2411 = vrcp.pop %v2385
  %v2412 = vrcp.pop %v2388
  %v2413 = vrcp.pop %v2391
  %v2414 = vrcp.pop %v2394
  %v2415 = vrcp.pop %v2397
  %v2416 = vrcp.pop %v2400
  %v2417 = vrcp.pop %v2403
  %v2418 = vrcp.pop %v2406
  %v2419 = vrcp.pop %v2409
  %v2420 = vmul.f32 %v2361, %v2410
  %v2421 = vmul.f32 %v2363, %v2411
  %v2422 = vmul.f32 %v2365, %v2412
  %v2423 = vmul.f32 %v2367, %v2413
  %v2424 = vmul.f32 %v2369, %v2414
  %v2425 = vmul.f32 %v2371, %v2415
  %v2426 = vmul.f32 %v2373, %v2416
  %v2427 = vmul.f32 %v2375, %v2417
  %v2428 = vmul.f32 %v2377, %v2418
  %v2429 = vmul.f32 %v2379, %v2419
  %v2430 = vpack.c.bf16 %v2421, %v2420
  %v2431 = vpack.c.bf16 %v2423, %v2422
  %v2432 = vpack.c.bf16 %v2425, %v2424
  %v2433 = vpack.c.bf16 %v2427, %v2426
  %v2434 = vpack.c.bf16 %v2429, %v2428
  %v2435 = vpack.c.bf16 %v2113, %v2109
  %v2436 = vpack.c.bf16 %v2171, %v2195
  %v2437 = vpack.c.bf16 %v2178, %v2173
  %v2438 = vpack.c.bf16 %v2196, %v2180
  %v2439 = vpack.c.bf16 %v2191, %v2189
  %v2441 = vsel %vm1296, %v2430, 0
  %v2444 = vsel %vm1296, %v2431, 0
  %v2447 = vsel %vm1296, %v2432, 0
  %v2450 = vsel %vm1296, %v2433, 0
  %v2453 = vsel %vm1296, %v2434, 0
  %2455 = vmatprep.subr.bf16.mxu0 0
  %2456 = vmatpush1.bf16.msra.mxu0 0
  %2457 = vmatprep.subr.bf16.mxu0 0
  %2458 = vmatpush1.bf16.msra.mxu0 0
  %2459 = vmatprep.subr.bf16.mxu0 0
  %2460 = vmatpush1.bf16.msra.mxu0 0
  %2461 = vmatprep.subr.bf16.mxu0 0
  %2462 = vmatpush1.bf16.msra.mxu0 %v2439
  %2463 = vmatprep.subr.bf16.mxu0 0
  %2464 = vmatpush1.bf16.msra.mxu0 %v2438
  %2465 = vmatprep.subr.bf16.mxu0 0
  %2466 = vmatpush1.bf16.msra.mxu0 %v2437
  %2467 = vmatprep.subr.bf16.mxu0 0
  %2468 = vmatpush1.bf16.msra.mxu0 %v2436
  %2469 = vmatprep.subr.bf16.mxu0 0
  %2470 = vmatpush1.bf16.msra.mxu0 %v2435
  %2471 = vmatprep.subr.bf16.mxu0 0
  %2472 = vmatpush2.bf16.msra.mxu0 0
  %2473 = vmatprep.subr.bf16.mxu0 0
  %2474 = vmatpush2.bf16.msra.mxu0 0
  %2475 = vmatprep.subr.bf16.mxu0 0
  %2476 = vmatpush2.bf16.msra.mxu0 0
  %2477 = vmatprep.subr.bf16.mxu0 0
  %2478 = vmatpush2.bf16.msra.mxu0 0
  %2479 = vmatprep.subr.bf16.mxu0 0
  %2480 = vmatpush2.bf16.msra.mxu0 0
  %2481 = vmatprep.subr.bf16.mxu0 0
  %2482 = vmatpush2.bf16.msra.mxu0 0
  %2483 = vmatprep.subr.bf16.mxu0 0
  %2484 = vmatpush2.bf16.msra.mxu0 0
  %2485 = vmatprep.subr.bf16.mxu0 0
  %2486 = vmatpush2.bf16.msra.mxu0 0
  %2487 = vmatprep.mubr.bf16.mxu0 0
  %2488 = vmatmul.mubr.bf16.gmra.mxu0 %v2441
  %v2489 = vpop.f32.mrf.mxu0
  %v2490 = vadd.f32 0.0, %v2489
  %v2491 = vpop.f32.mrf.mxu0
  %v2492 = vpop.f32.mrf.mxu0
  %v2493 = vadd.f32 0.0, %v2492
  %v2494 = vpop.f32.mrf.mxu0
  %2495 = vmatprep.mubr.bf16.mxu0 0
  %2496 = vmatmul.mubr.bf16.gmra.mxu0 %v2444
  %v2497 = vpop.f32.mrf.mxu0
  %v2498 = vadd.f32 0.0, %v2497
  %v2499 = vpop.f32.mrf.mxu0
  %v2500 = vpop.f32.mrf.mxu0
  %v2501 = vadd.f32 0.0, %v2500
  %v2502 = vpop.f32.mrf.mxu0
  %2503 = vmatprep.mubr.bf16.mxu0 0
  %2504 = vmatmul.mubr.bf16.gmra.mxu0 %v2447
  %v2505 = vpop.f32.mrf.mxu0
  %v2506 = vadd.f32 0.0, %v2505
  %v2507 = vpop.f32.mrf.mxu0
  %v2508 = vpop.f32.mrf.mxu0
  %v2509 = vadd.f32 0.0, %v2508
  %v2510 = vpop.f32.mrf.mxu0
  %2511 = vmatprep.mubr.bf16.mxu0 0
  %2512 = vmatmul.mubr.bf16.gmra.mxu0 %v2450
  %v2513 = vpop.f32.mrf.mxu0
  %v2514 = vadd.f32 0.0, %v2513
  %v2515 = vpop.f32.mrf.mxu0
  %v2516 = vpop.f32.mrf.mxu0
  %v2517 = vadd.f32 0.0, %v2516
  %v2518 = vpop.f32.mrf.mxu0
  %2519 = vmatprep.mubr.bf16.mxu0 0
  %2520 = vmatmul.mubr.bf16.gmra.mxu0 %v2453
  %v2521 = vpop.f32.mrf.mxu0
  %v2522 = vadd.f32 0.0, %v2521
  %v2523 = vpop.f32.mrf.mxu0
  %v2524 = vpop.f32.mrf.mxu0
  %v2525 = vadd.f32 0.0, %v2524
  %v2526 = vpop.f32.mrf.mxu0
  %2527 = vdwg.mxu0
  %v2531 = vrot.slane %v2498, 4
  %v2532 = vrot.slane %v2501, 4
  %v2533 = vsel %vm394, %v2531, %v2532
  %v2534 = vrot.slane %v2506, 4
  %v2535 = vsel %vm394, %v2532, %v2534
  %2536 = vrot.lane.b32.xlu0 %v2533, 16
  %v2537 = vpop.permute.xlu0 %2536
  %2538 = vrot.lane.b32.xlu0 %v2535, 16
  %v2539 = vpop.permute.xlu0 %2538
  %2540 = vrot.lane.b32.xlu0 %v2534, 16
  %v2541 = vpop.permute.xlu0 %2540
  %2548 = vrot.lane.b32.xlu0 %v2509, 32
  %v2549 = vpop.permute.xlu0 %2548
  %2550 = vrot.lane.b32.xlu0 %v2514, 32
  %v2551 = vpop.permute.xlu0 %2550
  %2552 = vrot.lane.b32.xlu0 %v2517, 32
  %v2553 = vpop.permute.xlu0 %2552
  %v2559 = vrot.slane %v2517, 4
  %v2560 = vrot.slane %v2522, 4
  %v2561 = vsel %vm394, %v2559, %v2560
  %v2562 = vrot.slane %v2525, 4
  %v2563 = vsel %vm394, %v2560, %v2562
  %2564 = vrot.lane.b32.xlu0 %v2561, 48
  %v2565 = vpop.permute.xlu0 %2564
  %2566 = vrot.lane.b32.xlu0 %v2563, 48
  %v2567 = vpop.permute.xlu0 %2566
  %2568 = vrot.lane.b32.xlu0 %v2562, 48
  %v2569 = vpop.permute.xlu0 %2568
  %v2573 = vsel %vm409, %v2490, %v2537
  %v2574 = vsel %vm409, %v2493, %v2539
  %v2575 = vsel %vm409, %v2498, %v2541
  %v2576 = vsel %vm413, %v2573, %v2549
  %v2577 = vsel %vm413, %v2574, %v2551
  %v2578 = vsel %vm413, %v2575, %v2553
  %v2579 = vsel %vm484, %v2576, %v2565
  %v2580 = vsel %vm484, %v2577, %v2567
  %v2581 = vsel %vm484, %v2578, %v2569
  %s2582 = scalar_lea.vmem %s27, 32
  %v2583 = vld [vmem:[%s2582] sm:$0xf]
  %v2584 = vld [vmem:[%s2582 + $0x4] sm:$0xf]
  %v2585 = vld [vmem:[%s2582 + $0x8] sm:$0xf]
  %v2586 = vld [vmem:[%s2582 + $0xc] sm:$0xf]
  %v2587 = vld [vmem:[%s2582 + $0x10] sm:$0xf]
  %v2588 = vld [vmem:[%s2582 + $0x14] sm:$0xf]
  %v2589 = vld [vmem:[%s2582 + $0x18] sm:$0xf]
  %v2590 = vld [vmem:[%s2582 + $0x1c] sm:$0xf]
  %v2591 = vpack.c.bf16 %v2580, %v2579
  %v2592 = vpack.c.bf16 %v2581, %v2581
  %s2593 = scalar_lea.vmem %s29, 1
  %v2594 = vld [vmem:[%s2593] sm:$0x1]
  %v2596 = vlaneseq
  %v2597 = vshrl.u32 %v2596, 7
  %v2598 = vsub.s32 0, %v2597
  %v2599 = vrot.slane %v2594, %v2598
  %v2609 = vunpack.c.l.b16 %v2583
  %v2610 = vunpack.c.l.b16 %v2584
  %v2611 = vunpack.c.l.b16 %v2585
  %v2612 = vunpack.c.l.b16 %v2586
  %v2613 = vunpack.c.l.b16 %v2587
  %v2614 = vunpack.c.l.b16 %v2588
  %v2615 = vunpack.c.l.b16 %v2589
  %v2616 = vunpack.c.l.b16 %v2590
  %v2617 = vpack.c.b16 %v2610, %v2609
  %v2618 = vpack.c.b16 %v2612, %v2611
  %v2619 = vpack.c.b16 %v2614, %v2613
  %v2620 = vpack.c.b16 %v2616, %v2615
  %v2626 = vsel %vm640, %v2591, 0
  %v2629 = vsel %vm640, %v2592, 0
  %2631 = vmatprep.subr.bf16.mxu0 0
  %2632 = vmatpush1.bf16.msra.mxu0 0
  %2633 = vmatprep.subr.bf16.mxu0 0
  %2634 = vmatpush1.bf16.msra.mxu0 0
  %2635 = vmatprep.subr.bf16.mxu0 0
  %2636 = vmatpush1.bf16.msra.mxu0 0
  %2637 = vmatprep.subr.bf16.mxu0 0
  %2638 = vmatpush1.bf16.msra.mxu0 0
  %2639 = vmatprep.subr.bf16.mxu0 0
  %2640 = vmatpush1.bf16.msra.mxu0 %v2620
  %2641 = vmatprep.subr.bf16.mxu0 0
  %2642 = vmatpush1.bf16.msra.mxu0 %v2619
  %2643 = vmatprep.subr.bf16.mxu0 0
  %2644 = vmatpush1.bf16.msra.mxu0 %v2618
  %2645 = vmatprep.subr.bf16.mxu0 0
  %2646 = vmatpush1.bf16.msra.mxu0 %v2617
  %2647 = vmatprep.subr.bf16.mxu0 0
  %2648 = vmatpush2.bf16.msra.mxu0 0
  %2649 = vmatprep.subr.bf16.mxu0 0
  %2650 = vmatpush2.bf16.msra.mxu0 0
  %2651 = vmatprep.subr.bf16.mxu0 0
  %2652 = vmatpush2.bf16.msra.mxu0 0
  %2653 = vmatprep.subr.bf16.mxu0 0
  %2654 = vmatpush2.bf16.msra.mxu0 0
  %2655 = vmatprep.subr.bf16.mxu0 0
  %2656 = vmatpush2.bf16.msra.mxu0 0
  %2657 = vmatprep.subr.bf16.mxu0 0
  %2658 = vmatpush2.bf16.msra.mxu0 0
  %2659 = vmatprep.subr.bf16.mxu0 0
  %2660 = vmatpush2.bf16.msra.mxu0 0
  %2661 = vmatprep.subr.bf16.mxu0 0
  %2662 = vmatpush2.bf16.msra.mxu0 0
  %2663 = vmatprep.mubr.bf16.mxu0 0
  %2664 = vmatmul.mubr.bf16.gmra.mxu0 %v2626
  %v2665 = vpop.f32.mrf.mxu0
  %v2666 = vadd.f32 %v2599, %v2665
  %v2667 = vpop.f32.mrf.mxu0
  %v2668 = vpop.f32.mrf.mxu0
  %v2669 = vadd.f32 %v2599, %v2668
  %v2670 = vpop.f32.mrf.mxu0
  %2671 = vmatprep.mubr.bf16.mxu0 0
  %2672 = vmatmul.mubr.bf16.gmra.mxu0 %v2629
  %v2673 = vpop.f32.mrf.mxu0
  %v2674 = vadd.f32 %v2599, %v2673
  %v2675 = vpop.f32.mrf.mxu0
  %v2676 = vpop.f32.mrf.mxu0
  %v2677 = vpop.f32.mrf.mxu0
  %2678 = vdwg.mxu0
  %v2679 = vadd.f32 %v1999, %v2666
  %v2680 = vadd.f32 %v2000, %v2669
  %v2681 = vadd.f32 %v2001, %v2674
  %s2682 = scalar_lea.vmem %s31, 1
  %v2683 = vld [vmem:[%s2682] sm:$0x1]
  %s2684 = scalar_lea.vmem %s33, 1
  %v2685 = vld [vmem:[%s2684] sm:$0x1]
  %v2686 = vsel %vm640, %v2679, 0.0
  %2687 = vadd.xlane.f32.xlu0 %v2686
  %v2688 = vpop.xlane.xlu0 %2687
  %v2689 = vsel %vm640, %v2680, 0.0
  %2690 = vadd.xlane.f32.xlu0 %v2689
  %v2691 = vpop.xlane.xlu0 %2690
  %v2692 = vsel %vm1665, %v2681, 0.0
  %2693 = vadd.xlane.f32.xlu0 %v2692
  %v2694 = vpop.xlane.xlu0 %2693
  %v2695 = vmul.f32 %v2688, %v1669
  %v2696 = vmul.f32 %v2691, %v1669
  %v2697 = vmul.f32 %v2694, %v1669
  %v2698 = vsub.f32 %v2679, %v2695
  %v2699 = vsub.f32 %v2680, %v2696
  %v2700 = vsub.f32 %v2681, %v2697
  %v2701 = vmul.f32 %v2698, %v2698
  %v2702 = vmul.f32 %v2699, %v2699
  %v2703 = vmul.f32 %v2700, %v2700
  %v2704 = vsel %vm640, %v2701, 0.0
  %2705 = vadd.xlane.f32.xlu0 %v2704
  %v2706 = vpop.xlane.xlu0 %2705
  %v2707 = vsel %vm640, %v2702, 0.0
  %2708 = vadd.xlane.f32.xlu0 %v2707
  %v2709 = vpop.xlane.xlu0 %2708
  %v2710 = vsel %vm1665, %v2703, 0.0
  %2711 = vadd.xlane.f32.xlu0 %v2710
  %v2712 = vpop.xlane.xlu0 %2711
  %v2713 = vmul.f32 %v2706, %v1669
  %v2714 = vmul.f32 %v2709, %v1669
  %v2715 = vmul.f32 %v2712, %v1669
  %v2716 = vadd.f32 %v2713, 1e-05
  %v2717 = vadd.f32 %v2714, 1e-05
  %v2718 = vadd.f32 %v2715, 1e-05
  %v2719 = vrsqrt.pop %v2716
  %v2720 = vrsqrt.pop %v2717
  %v2721 = vrsqrt.pop %v2718
  %v2722 = vmul.f32 %v2698, %v2719
  %v2723 = vmul.f32 %v2699, %v2720
  %v2724 = vmul.f32 %v2700, %v2721
  %v2726 = vlaneseq
  %v2727 = vshrl.u32 %v2726, 7
  %v2728 = vsub.s32 0, %v2727
  %v2729 = vrot.slane %v2683, %v2728
  %v2731 = vmul.f32 %v2722, %v2729
  %v2732 = vmul.f32 %v2723, %v2729
  %v2733 = vmul.f32 %v2724, %v2729
  %v2735 = vlaneseq
  %v2736 = vshrl.u32 %v2735, 7
  %v2737 = vsub.s32 0, %v2736
  %v2738 = vrot.slane %v2685, %v2737
  %v2740 = vadd.f32 %v2731, %v2738
  %v2741 = vadd.f32 %v2732, %v2738
  %v2742 = vadd.f32 %v2733, %v2738
  %s2743 = scalar_lea.vmem %s35, 32
  %v2744 = vld [vmem:[%s2743] sm:$0xf]
  %v2745 = vld [vmem:[%s2743 + $0x4] sm:$0xf]
  %v2746 = vld [vmem:[%s2743 + $0x8] sm:$0xf]
  %v2747 = vld [vmem:[%s2743 + $0xc] sm:$0xf]
  %v2748 = vld [vmem:[%s2743 + $0x10] sm:$0xf]
  %v2749 = vld [vmem:[%s2743 + $0x14] sm:$0xf]
  %v2750 = vld [vmem:[%s2743 + $0x18] sm:$0xf]
  %v2751 = vld [vmem:[%s2743 + $0x1c] sm:$0xf]
  %v2752 = vpack.c.bf16 %v2741, %v2740
  %v2753 = vpack.c.bf16 %v2742, %v2742
  %s2754 = scalar_lea.vmem %s37, 1
  %v2755 = vld [vmem:[%s2754] sm:$0x1]
  %v2757 = vlaneseq
  %v2758 = vshrl.u32 %v2757, 7
  %v2759 = vsub.s32 0, %v2758
  %v2760 = vrot.slane %v2755, %v2759
  %v2770 = vunpack.c.l.b16 %v2744
  %v2771 = vunpack.c.l.b16 %v2745
  %v2772 = vunpack.c.l.b16 %v2746
  %v2773 = vunpack.c.l.b16 %v2747
  %v2774 = vunpack.c.l.b16 %v2748
  %v2775 = vunpack.c.l.b16 %v2749
  %v2776 = vunpack.c.l.b16 %v2750
  %v2777 = vunpack.c.l.b16 %v2751
  %v2778 = vpack.c.b16 %v2771, %v2770
  %v2779 = vpack.c.b16 %v2773, %v2772
  %v2780 = vpack.c.b16 %v2775, %v2774
  %v2781 = vpack.c.b16 %v2777, %v2776
  %v2787 = vsel %vm640, %v2752, 0
  %v2790 = vsel %vm640, %v2753, 0
  %2792 = vmatprep.subr.bf16.mxu0 0
  %2793 = vmatpush1.bf16.msra.mxu0 0
  %2794 = vmatprep.subr.bf16.mxu0 0
  %2795 = vmatpush1.bf16.msra.mxu0 0
  %2796 = vmatprep.subr.bf16.mxu0 0
  %2797 = vmatpush1.bf16.msra.mxu0 0
  %2798 = vmatprep.subr.bf16.mxu0 0
  %2799 = vmatpush1.bf16.msra.mxu0 0
  %2800 = vmatprep.subr.bf16.mxu0 0
  %2801 = vmatpush1.bf16.msra.mxu0 %v2781
  %2802 = vmatprep.subr.bf16.mxu0 0
  %2803 = vmatpush1.bf16.msra.mxu0 %v2780
  %2804 = vmatprep.subr.bf16.mxu0 0
  %2805 = vmatpush1.bf16.msra.mxu0 %v2779
  %2806 = vmatprep.subr.bf16.mxu0 0
  %2807 = vmatpush1.bf16.msra.mxu0 %v2778
  %2808 = vmatprep.subr.bf16.mxu0 0
  %2809 = vmatpush2.bf16.msra.mxu0 0
  %2810 = vmatprep.subr.bf16.mxu0 0
  %2811 = vmatpush2.bf16.msra.mxu0 0
  %2812 = vmatprep.subr.bf16.mxu0 0
  %2813 = vmatpush2.bf16.msra.mxu0 0
  %2814 = vmatprep.subr.bf16.mxu0 0
  %2815 = vmatpush2.bf16.msra.mxu0 0
  %2816 = vmatprep.subr.bf16.mxu0 0
  %2817 = vmatpush2.bf16.msra.mxu0 0
  %2818 = vmatprep.subr.bf16.mxu0 0
  %2819 = vmatpush2.bf16.msra.mxu0 0
  %2820 = vmatprep.subr.bf16.mxu0 0
  %2821 = vmatpush2.bf16.msra.mxu0 0
  %2822 = vmatprep.subr.bf16.mxu0 0
  %2823 = vmatpush2.bf16.msra.mxu0 0
  %2824 = vmatprep.mubr.bf16.mxu0 0
  %2825 = vmatmul.mubr.bf16.gmra.mxu0 %v2787
  %v2826 = vpop.f32.mrf.mxu0
  %v2827 = vadd.f32 %v2760, %v2826
  %v2828 = vpop.f32.mrf.mxu0
  %v2829 = vpop.f32.mrf.mxu0
  %v2830 = vadd.f32 %v2760, %v2829
  %v2831 = vpop.f32.mrf.mxu0
  %2832 = vmatprep.mubr.bf16.mxu0 0
  %2833 = vmatmul.mubr.bf16.gmra.mxu0 %v2790
  %v2834 = vpop.f32.mrf.mxu0
  %v2835 = vadd.f32 %v2760, %v2834
  %v2836 = vpop.f32.mrf.mxu0
  %v2837 = vpop.f32.mrf.mxu0
  %v2838 = vpop.f32.mrf.mxu0
  %2839 = vdwg.mxu0
  %v2840 = vmax.f32 %v2827, 0.0
  %v2841 = vmax.f32 %v2830, 0.0
  %v2842 = vmax.f32 %v2835, 0.0
  %s2843 = scalar_lea.vmem %s39, 64
  %v2844 = vld [vmem:[%s2843] sm:$0xf]
  %v2845 = vld [vmem:[%s2843 + $0x4] sm:$0xf]
  %v2846 = vld [vmem:[%s2843 + $0x8] sm:$0xf]
  %v2847 = vld [vmem:[%s2843 + $0xc] sm:$0xf]
  %v2848 = vld [vmem:[%s2843 + $0x10] sm:$0xf]
  %v2849 = vld [vmem:[%s2843 + $0x14] sm:$0xf]
  %v2850 = vld [vmem:[%s2843 + $0x18] sm:$0xf]
  %v2851 = vld [vmem:[%s2843 + $0x1c] sm:$0xf]
  %v2852 = vld [vmem:[%s2843 + $0x20] sm:$0xf]
  %v2853 = vld [vmem:[%s2843 + $0x24] sm:$0xf]
  %v2854 = vld [vmem:[%s2843 + $0x28] sm:$0xf]
  %v2855 = vld [vmem:[%s2843 + $0x2c] sm:$0xf]
  %v2856 = vld [vmem:[%s2843 + $0x30] sm:$0xf]
  %v2857 = vld [vmem:[%s2843 + $0x34] sm:$0xf]
  %v2858 = vld [vmem:[%s2843 + $0x38] sm:$0xf]
  %v2859 = vld [vmem:[%s2843 + $0x3c] sm:$0xf]
  %v2860 = vpack.c.bf16 %v2841, %v2840
  %v2861 = vpack.c.bf16 %v2842, %v2842
  %v2878 = vunpack.c.l.b16 %v2844
  %v2879 = vunpack.c.l.b16 %v2845
  %v2880 = vunpack.c.l.b16 %v2846
  %v2881 = vunpack.c.l.b16 %v2847
  %v2882 = vunpack.c.l.b16 %v2848
  %v2883 = vunpack.c.l.b16 %v2849
  %v2884 = vunpack.c.l.b16 %v2850
  %v2885 = vunpack.c.l.b16 %v2851
  %v2886 = vunpack.c.l.b16 %v2852
  %v2887 = vunpack.c.l.b16 %v2853
  %v2888 = vunpack.c.l.b16 %v2854
  %v2889 = vunpack.c.l.b16 %v2855
  %v2890 = vunpack.c.l.b16 %v2856
  %v2891 = vunpack.c.l.b16 %v2857
  %v2892 = vunpack.c.l.b16 %v2858
  %v2893 = vunpack.c.l.b16 %v2859
  %v2894 = vpack.c.b16 %v2879, %v2878
  %v2895 = vpack.c.b16 %v2881, %v2880
  %v2896 = vpack.c.b16 %v2883, %v2882
  %v2897 = vpack.c.b16 %v2885, %v2884
  %v2898 = vpack.c.b16 %v2887, %v2886
  %v2899 = vpack.c.b16 %v2889, %v2888
  %v2900 = vpack.c.b16 %v2891, %v2890
  %v2901 = vpack.c.b16 %v2893, %v2892
  %2910 = vmatprep.subr.bf16.mxu0 0
  %2911 = vmatpush1.bf16.msra.mxu0 %v2901
  %2912 = vmatprep.subr.bf16.mxu0 0
  %2913 = vmatpush1.bf16.msra.mxu0 %v2900
  %2914 = vmatprep.subr.bf16.mxu0 0
  %2915 = vmatpush1.bf16.msra.mxu0 %v2899
  %2916 = vmatprep.subr.bf16.mxu0 0
  %2917 = vmatpush1.bf16.msra.mxu0 %v2898
  %2918 = vmatprep.subr.bf16.mxu0 0
  %2919 = vmatpush1.bf16.msra.mxu0 %v2897
  %2920 = vmatprep.subr.bf16.mxu0 0
  %2921 = vmatpush1.bf16.msra.mxu0 %v2896
  %2922 = vmatprep.subr.bf16.mxu0 0
  %2923 = vmatpush1.bf16.msra.mxu0 %v2895
  %2924 = vmatprep.subr.bf16.mxu0 0
  %2925 = vmatpush1.bf16.msra.mxu0 %v2894
  %2926 = vmatprep.subr.bf16.mxu0 0
  %2927 = vmatpush2.bf16.msra.mxu0 0
  %2928 = vmatprep.subr.bf16.mxu0 0
  %2929 = vmatpush2.bf16.msra.mxu0 0
  %2930 = vmatprep.subr.bf16.mxu0 0
  %2931 = vmatpush2.bf16.msra.mxu0 0
  %2932 = vmatprep.subr.bf16.mxu0 0
  %2933 = vmatpush2.bf16.msra.mxu0 0
  %2934 = vmatprep.subr.bf16.mxu0 0
  %2935 = vmatpush2.bf16.msra.mxu0 0
  %2936 = vmatprep.subr.bf16.mxu0 0
  %2937 = vmatpush2.bf16.msra.mxu0 0
  %2938 = vmatprep.subr.bf16.mxu0 0
  %2939 = vmatpush2.bf16.msra.mxu0 0
  %2940 = vmatprep.subr.bf16.mxu0 0
  %2941 = vmatpush2.bf16.msra.mxu0 0
  %2942 = vmatprep.mubr.bf16.mxu0 0
  %2943 = vmatmul.mubr.bf16.gmra.mxu0 %v2860
  %v2944 = vpop.f32.mrf.mxu0
  %v2945 = vadd.f32 0.0, %v2944
  %v2946 = vpop.f32.mrf.mxu0
  %v2947 = vpop.f32.mrf.mxu0
  %v2948 = vadd.f32 0.0, %v2947
  %v2949 = vpop.f32.mrf.mxu0
  %2950 = vmatprep.mubr.bf16.mxu0 0
  %2951 = vmatmul.mubr.bf16.gmra.mxu0 %v2861
  %v2952 = vpop.f32.mrf.mxu0
  %v2953 = vadd.f32 0.0, %v2952
  %v2954 = vpop.f32.mrf.mxu0
  %v2955 = vpop.f32.mrf.mxu0
  %v2956 = vpop.f32.mrf.mxu0
  %2957 = vdwg.mxu0
  %v2958 = vadd.f32 %v2740, %v2945
  %v2959 = vadd.f32 %v2741, %v2948
  %v2960 = vadd.f32 %v2742, %v2953
  %s2961 = scalar_lea.vmem %s41, 1
  %v2962 = vld [vmem:[%s2961] sm:$0x1]
  %v2964 = vlaneseq
  %v2965 = vshrl.u32 %v2964, 7
  %v2966 = vsub.s32 0, %v2965
  %v2967 = vrot.slane %v2962, %v2966
  %v2969 = vadd.f32 %v2958, %v2967
  %v2970 = vadd.f32 %v2959, %v2967
  %v2971 = vadd.f32 %v2960, %v2967
  %s2972 = scalar_lea.vmem %s43, 1
  %v2973 = vld [vmem:[%s2972] sm:$0x1]
  %s2974 = scalar_lea.vmem %s45, 1
  %v2975 = vld [vmem:[%s2974] sm:$0x1]
  %v2976 = vsel %vm640, %v2969, 0.0
  %2977 = vadd.xlane.f32.xlu0 %v2976
  %v2978 = vpop.xlane.xlu0 %2977
  %v2979 = vsel %vm640, %v2970, 0.0
  %2980 = vadd.xlane.f32.xlu0 %v2979
  %v2981 = vpop.xlane.xlu0 %2980
  %v2982 = vsel %vm1665, %v2971, 0.0
  %2983 = vadd.xlane.f32.xlu0 %v2982
  %v2984 = vpop.xlane.xlu0 %2983
  %v2985 = vmul.f32 %v2978, %v1669
  %v2986 = vmul.f32 %v2981, %v1669
  %v2987 = vmul.f32 %v2984, %v1669
  %v2988 = vsub.f32 %v2969, %v2985
  %v2989 = vsub.f32 %v2970, %v2986
  %v2990 = vsub.f32 %v2971, %v2987
  %v2991 = vmul.f32 %v2988, %v2988
  %v2992 = vmul.f32 %v2989, %v2989
  %v2993 = vmul.f32 %v2990, %v2990
  %v2994 = vsel %vm640, %v2991, 0.0
  %2995 = vadd.xlane.f32.xlu0 %v2994
  %v2996 = vpop.xlane.xlu0 %2995
  %v2997 = vsel %vm640, %v2992, 0.0
  %2998 = vadd.xlane.f32.xlu0 %v2997
  %v2999 = vpop.xlane.xlu0 %2998
  %v3000 = vsel %vm1665, %v2993, 0.0
  %3001 = vadd.xlane.f32.xlu0 %v3000
  %v3002 = vpop.xlane.xlu0 %3001
  %v3003 = vmul.f32 %v2996, %v1669
  %v3004 = vmul.f32 %v2999, %v1669
  %v3005 = vmul.f32 %v3002, %v1669
  %v3006 = vadd.f32 %v3003, 1e-05
  %v3007 = vadd.f32 %v3004, 1e-05
  %v3008 = vadd.f32 %v3005, 1e-05
  %v3009 = vrsqrt.pop %v3006
  %v3010 = vrsqrt.pop %v3007
  %v3011 = vrsqrt.pop %v3008
  %v3012 = vmul.f32 %v2988, %v3009
  %v3013 = vmul.f32 %v2989, %v3010
  %v3014 = vmul.f32 %v2990, %v3011
  %v3016 = vlaneseq
  %v3017 = vshrl.u32 %v3016, 7
  %v3018 = vsub.s32 0, %v3017
  %v3019 = vrot.slane %v2973, %v3018
  %v3021 = vmul.f32 %v3012, %v3019
  %v3022 = vmul.f32 %v3013, %v3019
  %v3023 = vmul.f32 %v3014, %v3019
  %v3025 = vlaneseq
  %v3026 = vshrl.u32 %v3025, 7
  %v3027 = vsub.s32 0, %v3026
  %v3028 = vrot.slane %v2975, %v3027
  %v3030 = vadd.f32 %v3021, %v3028
  %v3031 = vadd.f32 %v3022, %v3028
  %v3032 = vadd.f32 %v3023, %v3028
  %v3033 = vld [vmem:[%s47] sm:$0x1]
  %v3034 = vld [vmem:[%s49] sm:$0x1]
  %v3035 = vsel %vm640, %v3030, 0.0
  %3036 = vadd.xlane.f32.xlu0 %v3035
  %v3037 = vpop.xlane.xlu0 %3036
  %v3038 = vsel %vm640, %v3031, 0.0
  %3039 = vadd.xlane.f32.xlu0 %v3038
  %v3040 = vpop.xlane.xlu0 %3039
  %v3041 = vsel %vm1665, %v3032, 0.0
  %3042 = vadd.xlane.f32.xlu0 %v3041
  %v3043 = vpop.xlane.xlu0 %3042
  %v3044 = vmul.f32 %v3037, %v1669
  %v3045 = vmul.f32 %v3040, %v1669
  %v3046 = vmul.f32 %v3043, %v1669
  %v3047 = vsub.f32 %v3030, %v3044
  %v3048 = vsub.f32 %v3031, %v3045
  %v3049 = vsub.f32 %v3032, %v3046
  %v3050 = vmul.f32 %v3047, %v3047
  %v3051 = vmul.f32 %v3048, %v3048
  %v3052 = vmul.f32 %v3049, %v3049
  %v3053 = vsel %vm640, %v3050, 0.0
  %3054 = vadd.xlane.f32.xlu0 %v3053
  %v3055 = vpop.xlane.xlu0 %3054
  %v3056 = vsel %vm640, %v3051, 0.0
  %3057 = vadd.xlane.f32.xlu0 %v3056
  %v3058 = vpop.xlane.xlu0 %3057
  %v3059 = vsel %vm1665, %v3052, 0.0
  %3060 = vadd.xlane.f32.xlu0 %v3059
  %v3061 = vpop.xlane.xlu0 %3060
  %v3062 = vmul.f32 %v3055, %v1669
  %v3063 = vmul.f32 %v3058, %v1669
  %v3064 = vmul.f32 %v3061, %v1669
  %v3065 = vadd.f32 %v3062, 1e-05
  %v3066 = vadd.f32 %v3063, 1e-05
  %v3067 = vadd.f32 %v3064, 1e-05
  %v3068 = vrsqrt.pop %v3065
  %v3069 = vrsqrt.pop %v3066
  %v3070 = vrsqrt.pop %v3067
  %v3071 = vmul.f32 %v3047, %v3068
  %v3072 = vmul.f32 %v3048, %v3069
  %v3073 = vmul.f32 %v3049, %v3070
  %v3075 = vlaneseq
  %v3076 = vshrl.u32 %v3075, 7
  %v3077 = vsub.s32 0, %v3076
  %v3078 = vrot.slane %v3033, %v3077
  %v3080 = vmul.f32 %v3071, %v3078
  %v3081 = vmul.f32 %v3072, %v3078
  %v3082 = vmul.f32 %v3073, %v3078
  %v3084 = vlaneseq
  %v3085 = vshrl.u32 %v3084, 7
  %v3086 = vsub.s32 0, %v3085
  %v3087 = vrot.slane %v3034, %v3086
  %v3089 = vadd.f32 %v3080, %v3087
  %v3090 = vadd.f32 %v3081, %v3087
  %v3091 = vadd.f32 %v3082, %v3087
  %v3092 = vld [vmem:[%s51] sm:$0xf]
  %v3093 = vld [vmem:[%s51 + $0x4] sm:$0xf]
  %v3094 = vld [vmem:[%s51 + $0x8] sm:$0xf]
  %v3095 = vld [vmem:[%s51 + $0xc] sm:$0xf]
  %v3096 = vld [vmem:[%s51 + $0x10] sm:$0xf]
  %v3097 = vld [vmem:[%s51 + $0x14] sm:$0xf]
  %v3098 = vld [vmem:[%s51 + $0x18] sm:$0xf]
  %v3099 = vld [vmem:[%s51 + $0x1c] sm:$0xf]
  %v3100 = vpack.c.bf16 %v3090, %v3089
  %v3101 = vpack.c.bf16 %v3091, %v3091
  %v3102 = vld [vmem:[%s53] sm:$0x1]
  %v3104 = vlaneseq
  %v3105 = vshrl.u32 %v3104, 7
  %v3106 = vsub.s32 0, %v3105
  %v3107 = vrot.slane %v3102, %v3106
  %v3117 = vunpack.c.l.b16 %v3092
  %v3118 = vunpack.c.l.b16 %v3093
  %v3119 = vunpack.c.l.b16 %v3094
  %v3120 = vunpack.c.l.b16 %v3095
  %v3121 = vunpack.c.l.b16 %v3096
  %v3122 = vunpack.c.l.b16 %v3097
  %v3123 = vunpack.c.l.b16 %v3098
  %v3124 = vunpack.c.l.b16 %v3099
  %v3125 = vpack.c.b16 %v3118, %v3117
  %v3126 = vpack.c.b16 %v3120, %v3119
  %v3127 = vpack.c.b16 %v3122, %v3121
  %v3128 = vpack.c.b16 %v3124, %v3123
  %v3134 = vsel %vm640, %v3100, 0
  %v3137 = vsel %vm640, %v3101, 0
  %3139 = vmatprep.subr.bf16.mxu0 0
  %3140 = vmatpush1.bf16.msra.mxu0 0
  %3141 = vmatprep.subr.bf16.mxu0 0
  %3142 = vmatpush1.bf16.msra.mxu0 0
  %3143 = vmatprep.subr.bf16.mxu0 0
  %3144 = vmatpush1.bf16.msra.mxu0 0
  %3145 = vmatprep.subr.bf16.mxu0 0
  %3146 = vmatpush1.bf16.msra.mxu0 0
  %3147 = vmatprep.subr.bf16.mxu0 0
  %3148 = vmatpush1.bf16.msra.mxu0 %v3128
  %3149 = vmatprep.subr.bf16.mxu0 0
  %3150 = vmatpush1.bf16.msra.mxu0 %v3127
  %3151 = vmatprep.subr.bf16.mxu0 0
  %3152 = vmatpush1.bf16.msra.mxu0 %v3126
  %3153 = vmatprep.subr.bf16.mxu0 0
  %3154 = vmatpush1.bf16.msra.mxu0 %v3125
  %3155 = vmatprep.subr.bf16.mxu0 0
  %3156 = vmatpush2.bf16.msra.mxu0 0
  %3157 = vmatprep.subr.bf16.mxu0 0
  %3158 = vmatpush2.bf16.msra.mxu0 0
  %3159 = vmatprep.subr.bf16.mxu0 0
  %3160 = vmatpush2.bf16.msra.mxu0 0
  %3161 = vmatprep.subr.bf16.mxu0 0
  %3162 = vmatpush2.bf16.msra.mxu0 0
  %3163 = vmatprep.subr.bf16.mxu0 0
  %3164 = vmatpush2.bf16.msra.mxu0 0
  %3165 = vmatprep.subr.bf16.mxu0 0
  %3166 = vmatpush2.bf16.msra.mxu0 0
  %3167 = vmatprep.subr.bf16.mxu0 0
  %3168 = vmatpush2.bf16.msra.mxu0 0
  %3169 = vmatprep.subr.bf16.mxu0 0
  %3170 = vmatpush2.bf16.msra.mxu0 0
  %3171 = vmatprep.mubr.bf16.mxu0 0
  %3172 = vmatmul.mubr.bf16.gmra.mxu0 %v3134
  %v3173 = vpop.f32.mrf.mxu0
  %v3174 = vadd.f32 %v3107, %v3173
  %v3175 = vpop.f32.mrf.mxu0
  %v3176 = vpop.f32.mrf.mxu0
  %v3177 = vadd.f32 %v3107, %v3176
  %v3178 = vpop.f32.mrf.mxu0
  %3179 = vmatprep.mubr.bf16.mxu0 0
  %3180 = vmatmul.mubr.bf16.gmra.mxu0 %v3137
  %v3181 = vpop.f32.mrf.mxu0
  %v3182 = vadd.f32 %v3107, %v3181
  %v3183 = vpop.f32.mrf.mxu0
  %v3184 = vpop.f32.mrf.mxu0
  %v3185 = vpop.f32.mrf.mxu0
  %3186 = vdwg.mxu0
  %v3187 = vmax.f32 %v3174, 0.0
  %v3188 = vmax.f32 %v3177, 0.0
  %v3189 = vmax.f32 %v3182, 0.0
  %v3190 = vld [vmem:[%s55] sm:$0xf]
  %v3191 = vld [vmem:[%s55 + $0x4] sm:$0xf]
  %v3192 = vld [vmem:[%s55 + $0x8] sm:$0xf]
  %v3193 = vld [vmem:[%s55 + $0xc] sm:$0xf]
  %v3194 = vld [vmem:[%s55 + $0x10] sm:$0xf]
  %v3195 = vld [vmem:[%s55 + $0x14] sm:$0xf]
  %v3196 = vld [vmem:[%s55 + $0x18] sm:$0xf]
  %v3197 = vld [vmem:[%s55 + $0x1c] sm:$0xf]
  %v3198 = vpack.c.bf16 %v3188, %v3187
  %v3199 = vpack.c.bf16 %v3189, %v3189
  %v3200 = vld [vmem:[%s57] sm:$0x1]
  %v3202 = vlaneseq
  %v3203 = vshrl.u32 %v3202, 7
  %v3204 = vsub.s32 0, %v3203
  %v3205 = vrot.slane %v3200, %v3204
  %v3215 = vunpack.c.l.b16 %v3190
  %v3216 = vunpack.c.l.b16 %v3191
  %v3217 = vunpack.c.l.b16 %v3192
  %v3218 = vunpack.c.l.b16 %v3193
  %v3219 = vunpack.c.l.b16 %v3194
  %v3220 = vunpack.c.l.b16 %v3195
  %v3221 = vunpack.c.l.b16 %v3196
  %v3222 = vunpack.c.l.b16 %v3197
  %v3223 = vpack.c.b16 %v3216, %v3215
  %v3224 = vpack.c.b16 %v3218, %v3217
  %v3225 = vpack.c.b16 %v3220, %v3219
  %v3226 = vpack.c.b16 %v3222, %v3221
  %v3232 = vsel %vm640, %v3198, 0
  %v3235 = vsel %vm640, %v3199, 0
  %3237 = vmatprep.subr.bf16.mxu0 0
  %3238 = vmatpush1.bf16.msra.mxu0 0
  %3239 = vmatprep.subr.bf16.mxu0 0
  %3240 = vmatpush1.bf16.msra.mxu0 0
  %3241 = vmatprep.subr.bf16.mxu0 0
  %3242 = vmatpush1.bf16.msra.mxu0 0
  %3243 = vmatprep.subr.bf16.mxu0 0
  %3244 = vmatpush1.bf16.msra.mxu0 0
  %3245 = vmatprep.subr.bf16.mxu0 0
  %3246 = vmatpush1.bf16.msra.mxu0 %v3226
  %3247 = vmatprep.subr.bf16.mxu0 0
  %3248 = vmatpush1.bf16.msra.mxu0 %v3225
  %3249 = vmatprep.subr.bf16.mxu0 0
  %3250 = vmatpush1.bf16.msra.mxu0 %v3224
  %3251 = vmatprep.subr.bf16.mxu0 0
  %3252 = vmatpush1.bf16.msra.mxu0 %v3223
  %3253 = vmatprep.subr.bf16.mxu0 0
  %3254 = vmatpush2.bf16.msra.mxu0 0
  %3255 = vmatprep.subr.bf16.mxu0 0
  %3256 = vmatpush2.bf16.msra.mxu0 0
  %3257 = vmatprep.subr.bf16.mxu0 0
  %3258 = vmatpush2.bf16.msra.mxu0 0
  %3259 = vmatprep.subr.bf16.mxu0 0
  %3260 = vmatpush2.bf16.msra.mxu0 0
  %3261 = vmatprep.subr.bf16.mxu0 0
  %3262 = vmatpush2.bf16.msra.mxu0 0
  %3263 = vmatprep.subr.bf16.mxu0 0
  %3264 = vmatpush2.bf16.msra.mxu0 0
  %3265 = vmatprep.subr.bf16.mxu0 0
  %3266 = vmatpush2.bf16.msra.mxu0 0
  %3267 = vmatprep.subr.bf16.mxu0 0
  %3268 = vmatpush2.bf16.msra.mxu0 0
  %3269 = vmatprep.mubr.bf16.mxu0 0
  %3270 = vmatmul.mubr.bf16.gmra.mxu0 %v3232
  %v3271 = vpop.f32.mrf.mxu0
  %v3272 = vadd.f32 %v3205, %v3271
  %v3273 = vpop.f32.mrf.mxu0
  %v3274 = vpop.f32.mrf.mxu0
  %v3275 = vadd.f32 %v3205, %v3274
  %v3276 = vpop.f32.mrf.mxu0
  %3277 = vmatprep.mubr.bf16.mxu0 0
  %3278 = vmatmul.mubr.bf16.gmra.mxu0 %v3235
  %v3279 = vpop.f32.mrf.mxu0
  %v3280 = vadd.f32 %v3205, %v3279
  %v3281 = vpop.f32.mrf.mxu0
  %v3282 = vpop.f32.mrf.mxu0
  %v3283 = vpop.f32.mrf.mxu0
  %3284 = vdwg.mxu0
  %v3285 = vlaneseq
  %v3286 = vand.u32 %v3285, 127
  %vm3287 = vcmp.lt.s32.totalorder %v3286, 5
  %v3288 = vsel %vm3287, 1, 0
  %vm3289 = vcmp.eq.s32.totalorder %v3288, 1
  %v3290 = vsel %vm3289, %v3272, -1e+30
  %v3291 = vsel %vm3289, %v3275, -1e+30
  %v3292 = vsel %vm3289, %v3280, -1e+30
  %3293 = vmax.xlane.f32.xlu0 %v3290
  %v3294 = vpop.xlane.xlu0 %3293
  %3295 = vmax.xlane.f32.xlu0 %v3291
  %v3296 = vpop.xlane.xlu0 %3295
  %v3297 = vsel %vm394, %v3292, -inf
  %3298 = vmax.xlane.f32.xlu0 %v3297
  %v3299 = vpop.xlane.xlu0 %3298
  %v3300 = vsub.f32 %v3290, %v3294
  %v3301 = vsub.f32 %v3291, %v3296
  %v3302 = vsub.f32 %v3292, %v3299
  %v3303 = vmul.f32 %v3300, 1.442695
  %v3304 = vpow.pop %v3303
  %v3305 = vmul.f32 %v3301, 1.442695
  %v3306 = vpow.pop %v3305
  %v3307 = vmul.f32 %v3302, 1.442695
  %v3308 = vpow.pop %v3307
  %3309 = vadd.xlane.f32.xlu0 %v3304
  %v3310 = vpop.xlane.xlu0 %3309
  %3311 = vadd.xlane.f32.xlu0 %v3306
  %v3312 = vpop.xlane.xlu0 %3311
  %v3313 = vsel %vm394, %v3308, 0.0
  %3314 = vadd.xlane.f32.xlu0 %v3313
  %v3315 = vpop.xlane.xlu0 %3314
  %v3316 = vlog2.pop %v3310
  %v3317 = vmul.f32 %v3316, 0.6931472
  %v3318 = vlog2.pop %v3312
  %v3319 = vmul.f32 %v3318, 0.6931472
  %v3320 = vlog2.pop %v3315
  %v3321 = vmul.f32 %v3320, 0.6931472
  %v3322 = vsub.f32 %v3300, %v3317
  %v3323 = vsub.f32 %v3301, %v3319
  %v3324 = vsub.f32 %v3302, %v3321
  %3325 = vst [vmem:[%s59] sm:$0xff] %v3322
  %3326 = vst [vmem:[%s59 + $0x8] sm:$0xff] %v3323
  %3327 = vst [vmem:[%s59 + $0x10] sm:$0xf] %v3324
  // Predicated region
  $region118: #{transformer_model_forward.1} parent=0 // pred_check
    _
  $region119: #{transformer_model_forward.1} parent=0 // pred_check_branch
    %3329 = sbr.rel (0) target = $region121
  $region120: #{transformer_model_forward.1} parent=0 // pred_region
    _
  $region121: #{transformer_model_forward.1} parent=0 // pred_fallthru
    _
  // Predicated region
  $region122: #{transformer_model_forward.1} parent=0 // pred_check
    _
  $region123: #{transformer_model_forward.1} parent=0 // pred_check_branch
    %3331 = sbr.rel (0) target = $region125
  $region124: #{transformer_model_forward.1} parent=0 // pred_region
    _
  $region125: #{transformer_model_forward.1} parent=0 // pred_fallthru
    _

</llo_original>
